<compile_context>
chip_gen: v5e
topology: v5e:2x2
jax: 0.10.0
libtpu: 0.0.40
codegen_flags: <defaults>
</compile_context>

<pallas_src>
import functools

import numpy as np
import jax
import jax.numpy as jnp
from jax import lax
from jax.experimental import pallas as pl
from jax.experimental.pallas import tpu as pltpu

_WDTYPE = jnp.bfloat16   # MXU-native weight/activation dtype; f32 accumulation.


# ----------------------------------------------------------------------------
# Weight preprocessing (plain JAX, traced together with the forward under jit)
# ----------------------------------------------------------------------------
def _band_matrices(w, Wsp):
    """w: (3,3,Cin,Cout) HWIO conv weight -> (3, Wsp*Cin, Wsp*Cout) per-dy band mats.

    With x lane-dense as (H, Wsp*Cin) (lane = w*Cin + ci), a same-padded 3x3 conv is
    y[h,:] = sum_dy x[h+dy-1,:] @ M[dy]; dx taps and zero column padding are encoded
    in the block-band structure of M[dy]."""
    mats = []
    for dy in range(3):
        M = jnp.zeros((Wsp * w.shape[2], Wsp * w.shape[3]), jnp.float32)
        for dx in range(3):
            S = jnp.eye(Wsp, k=1 - dx, dtype=jnp.float32)   # w_in == w_out + dx - 1
            M = M + jnp.kron(S, w[dy, dx])
        mats.append(M)
    return jnp.stack(mats)                                   # (3, K, Nout)


def _cat_dy(mats, dtype=_WDTYPE):
    """(3, K, Nout) -> (K, 3*Nout): merge the 3 dy matmuls into one MXU issue."""
    return jnp.concatenate([mats[0], mats[1], mats[2]], axis=-1).astype(dtype)


def _build_kernel_inputs(params, *, W, nFeat, nChannel, scale, idx):
    """Lane-dense, dy-merged, bf16 band matrices + lane-replicated f32 biases."""
    f32 = jnp.float32
    head_M = _cat_dy(_band_matrices(params["head_w"], W))        # (W*C, 3*W*F)
    head_b = jnp.tile(params["head_b"], W)[None, :].astype(f32)  # (1, W*F)

    body_Ms, body_bs = [], []
    for i in range(idx):
        w1, b1, w2, b2 = params["body"][i]
        body_Ms += [_cat_dy(_band_matrices(w1, W)), _cat_dy(_band_matrices(w2, W))]
        body_bs += [jnp.tile(b1, W), jnp.tile(b2, W)]
    body_Ms.append(_cat_dy(_band_matrices(params["body_end_w"], W)))
    body_bs.append(jnp.tile(params["body_end_b"], W))
    body_M = jnp.stack(body_Ms)                                  # (2*idx+1, W*F, 3*W*F)
    body_b = jnp.stack(body_bs)[:, None, :].astype(f32)          # (2*idx+1, 1, W*F)

    inputs = [head_M, head_b, body_M, body_b]

    if scale > 1:
        r = scale
        up_full = _band_matrices(params["up_w"], W)              # (3, W*F, W*r*r*F)
        Lup_a = W * r * nFeat                                    # lanes per parity plane
        # Fold PixelShuffle into the columns: plane-a lane q = (w*r+b)*F + c comes
        # from up-conv lane  w*(r*r*F) + (c*r*r + a*r + b).
        q = np.arange(Lup_a)
        w_ = q // (r * nFeat)
        rem = q % (r * nFeat)
        b_ = rem // nFeat
        c_ = rem % nFeat
        dy_blocks, up_bias = [], []
        for dy in range(3):
            planes = [up_full[dy][:, w_ * (r * r * nFeat) + c_ * (r * r) + a * r + b_]
                      for a in range(r)]
            dy_blocks.append(jnp.concatenate(planes, axis=-1))   # (W*F, r*Lup_a)
        for a in range(r):
            up_bias.append(params["up_b"][c_ * (r * r) + a * r + b_])
        up_M = jnp.concatenate(dy_blocks, axis=-1).astype(_WDTYPE)   # (W*F, 3*r*Lup_a)
        up_b = jnp.concatenate(up_bias)[None, :].astype(f32)         # (1, r*Lup_a)
        inputs += [up_M, up_b]
        Wt = W * r
    else:
        Wt = W

    # Tail: pad output channels to a 128-lane multiple for unmasked stores.
    Lout = Wt * nChannel
    Lpad = ((Lout + 127) // 128) * 128
    tail_mats = _band_matrices(params["tail_w"], Wt)             # (3, Wt*F, Lout)
    tail_mats = jnp.pad(tail_mats, ((0, 0), (0, 0), (0, Lpad - Lout)))
    tail_M = _cat_dy(tail_mats)                                  # (Wt*F, 3*Lpad)
    tail_b = jnp.pad(jnp.tile(params["tail_b"], Wt),
                     (0, Lpad - Lout))[None, :].astype(f32)      # (1, Lpad)
    inputs += [tail_M, tail_b]
    return inputs, Lpad


# ----------------------------------------------------------------------------
# Fused forward kernel (one batch element per grid step; all layers in vregs/VMEM)
# ----------------------------------------------------------------------------
def _row_shift(y, q):
    """z[h] = y[h+q] for q in {-1,+1}, zero-filled at the image boundary (XLU roll)."""
    H = y.shape[0]
    rows = lax.broadcasted_iota(jnp.int32, y.shape, 0)
    if q == -1:                                   # z[h] = y[h-1], z[0] = 0
        return jnp.where(rows == 0, 0.0, pltpu.roll(y, shift=1, axis=0))
    else:                                         # z[h] = y[h+1], z[H-1] = 0
        return jnp.where(rows == H - 1, 0.0, pltpu.roll(y, shift=H - 1, axis=0))


def _conv3(x, w_cat, b):
    """3x3 same conv: one merged bf16 MXU matmul + sublane shifts of the dy taps."""
    nout = w_cat.shape[-1] // 3
    y = jnp.dot(x.astype(w_cat.dtype), w_cat, preferred_element_type=jnp.float32)
    a0 = y[:, :nout]
    a1 = y[:, nout:2 * nout]
    a2 = y[:, 2 * nout:]
    return _row_shift(a0, -1) + a1 + _row_shift(a2, +1) + b


def _fused_forward_kernel(*refs, scale, idx):
    if scale > 1:
        (x_ref, hm, hb, bm, bb, um, ub, tm, tb, o_ref) = refs
    else:
        (x_ref, hm, hb, bm, bb, tm, tb, o_ref) = refs

    x = x_ref[0]                                           # (H, W*C) f32

    # --- head ---
    xh = _conv3(x, hm[...], hb[...])                       # (H, W*F); kept live (global skip)

    # --- body: idx ResBlocks (conv -> ReLU -> conv -> +skip), all in registers ---
    res = xh
    for i in range(idx):
        t = jnp.maximum(_conv3(res, bm[2 * i], bb[2 * i]), 0.0)
        res = _conv3(t, bm[2 * i + 1], bb[2 * i + 1]) + res

    # --- body_end + global skip ---
    res = _conv3(res, bm[2 * idx], bb[2 * idx]) + xh

    if scale > 1:
        rr = scale
        # Upsample conv with PixelShuffle folded into the (permuted) band matrices;
        # all parity planes and dy taps merged into a single MXU matmul.
        up = _conv3(res, um[...], ub[...])                 # (H, rr*Lup_a), shuffled planes
        Lup_a = up.shape[-1] // rr
        planes = [up[:, a * Lup_a:(a + 1) * Lup_a] for a in range(rr)]

        tmat = tm[...]
        Lpad = tmat.shape[-1] // 3
        # Tail: per plane one merged matmul; B[p][d] = P_p @ T[d].
        B = []
        for p in range(rr):
            yp = jnp.dot(planes[p].astype(tmat.dtype), tmat,
                         preferred_element_type=jnp.float32)
            B.append([yp[:, d * Lpad:(d + 1) * Lpad] for d in range(3)])
        # Combine: output parity a, full row rr*h + a reads full rows rr*h + a + d - 1.
        for a in range(rr):
            acc = None
            for d in range(3):
                m_src = a + d - 1
                p, q = m_src % rr, m_src // rr             # source plane / row offset
                term = B[p][d] if q == 0 else _row_shift(B[p][d], q)
                acc = term if acc is None else acc + term
            o_ref[0, a] = (acc + tb[...]).astype(o_ref.dtype)
    else:
        o_ref[0, 0] = _conv3(res, tm[...], tb[...]).astype(o_ref.dtype)


# ----------------------------------------------------------------------------
# Forward wrapper
# ----------------------------------------------------------------------------
@functools.partial(jax.jit, static_argnames=("idx", "scale"))
def single_network_forward(x_nchw, params, *, idx, scale):
    # TODO(synk): idx selection via common.random_gradual_03 (random schedule) is not
    # reproduced; idx is passed explicitly, matching forward(x, idx=idx).
    N, nChannel, H, W = x_nchw.shape
    nFeat = params["head_w"].shape[-1]
    assert scale in (1, 2, 3)  # TODO(synk): scale=4 is two PixelShuffle(2) stages

    # NCHW -> lane-dense (N, H, W*C)
    x = jnp.transpose(x_nchw, (0, 2, 3, 1)).reshape(N, H, W * nChannel)
    weights, Lpad = _build_kernel_inputs(params, W=W, nFeat=nFeat,
                                         nChannel=nChannel, scale=scale, idx=idx)

    r_out = scale if scale > 1 else 1
    Wout = W * r_out
    Lin = W * nChannel
    Lout = Wout * nChannel

    if scale > 1:
        head_M, head_b, body_M, body_b, up_M, up_b, tail_M, tail_b = weights
    else:
        head_M, head_b, body_M, body_b, tail_M, tail_b = weights

    def const_spec(a):
        nd = a.ndim

        def imap(n):
            return (0,) * nd

        return pl.BlockSpec(a.shape, imap)

    in_specs = [pl.BlockSpec((1, H, Lin), lambda n: (n, 0, 0))]
    in_specs += [const_spec(w) for w in weights]
    out_specs = pl.BlockSpec((1, r_out, H, Lpad), lambda n: (n, 0, 0, 0))
    out_shape = jax.ShapeDtypeStruct((N, r_out, H, Lpad), x.dtype)

    # Advisory cost hint.
    flops = 2 * H * head_M.shape[0] * head_M.shape[1]
    flops += body_M.shape[0] * 2 * H * body_M.shape[1] * body_M.shape[2]
    if scale > 1:
        flops += 2 * H * up_M.shape[0] * up_M.shape[1]
    flops += r_out * 2 * H * tail_M.shape[0] * tail_M.shape[1]
    flops *= N
    bytes_accessed = int(x.size * x.dtype.itemsize
                         + sum(int(w.size) * w.dtype.itemsize for w in weights)
                         + N * r_out * H * Lpad * x.dtype.itemsize)

    kernel = functools.partial(_fused_forward_kernel, scale=scale, idx=idx)
    out = pl.pallas_call(
        kernel,
        out_shape=out_shape,
        grid=(N,),
        in_specs=in_specs,
        out_specs=out_specs,
        compiler_params=pltpu.CompilerParams(
            dimension_semantics=("parallel",)),
        cost_estimate=pl.CostEstimate(flops=flops, transcendentals=0,
                                      bytes_accessed=bytes_accessed),
    )(x, *weights)

    # (N, parity, H, Lpad) -> drop lane padding -> interleave rows -> NCHW.
    out = out[..., :Lout].reshape(N, r_out, H, Wout, nChannel)
    out = jnp.transpose(out, (0, 2, 1, 3, 4)).reshape(N, H * r_out, Wout, nChannel)
    return jnp.transpose(out, (0, 3, 1, 2))


# ----------------------------------------------------------------------------
# Parameters
# ----------------------------------------------------------------------------
def make_params(key, nChannel, nFeat, nResblock, scale):
    keys = jax.random.split(key, 8 + 4 * nResblock)
    it = iter(keys)

    def conv_w(cin, cout):
        return jax.random.normal(next(it), (3, 3, cin, cout), jnp.float32) * 0.05

    def conv_b(cout):
        return jax.random.normal(next(it), (cout,), jnp.float32) * 0.01

    params = {
        "head_w": conv_w(nChannel, nFeat), "head_b": conv_b(nFeat),
        "body": [],
        "body_end_w": conv_w(nFeat, nFeat), "body_end_b": conv_b(nFeat),
        "tail_w": conv_w(nFeat, nChannel), "tail_b": conv_b(nChannel),
    }
    for _ in range(nResblock):
        params["body"].append((conv_w(nFeat, nFeat), conv_b(nFeat),
                               conv_w(nFeat, nFeat), conv_b(nFeat)))
    if scale > 1:
        assert scale in (2, 3), "scale=4 would be two scale-2 stages"
        params["up_w"] = conv_w(nFeat, nFeat * scale * scale)
        params["up_b"] = conv_b(nFeat * scale * scale)
    return params


# ----------------------------------------------------------------------------
# Pure-JAX reference (correctness check only)
# ----------------------------------------------------------------------------
def pixel_shuffle_nhwc(x, r):
    N, H, W, C = x.shape
    c = C // (r * r)
    x = x.reshape(N, H, W, c, r, r)
    x = jnp.transpose(x, (0, 1, 4, 2, 5, 3))
    return x.reshape(N, H * r, W * r, c)


def _ref_conv(x, w, b, relu=False, skip=None):
    y = lax.conv_general_dilated(
        x, w, window_strides=(1, 1), padding="SAME",
        dimension_numbers=("NHWC", "HWIO", "NHWC"),
        precision=lax.Precision.HIGHEST) + b
    if relu:
        y = jnp.maximum(y, 0.0)
    if skip is not None:
        y = y + skip
    return y


def reference_forward(x_nchw, params, *, idx, scale):
    x = jnp.transpose(x_nchw, (0, 2, 3, 1))
    x = _ref_conv(x, params["head_w"], params["head_b"])
    res = x
    for i in range(idx):
        w1, b1, w2, b2 = params["body"][i]
        res = _ref_conv(_ref_conv(res, w1, b1, relu=True), w2, b2, skip=res)
    res = _ref_conv(res, params["body_end_w"], params["body_end_b"], skip=x)
    if scale > 1:
        up = pixel_shuffle_nhwc(_ref_conv(res, params["up_w"], params["up_b"]),
                                scale)
    else:
        up = res
    out = _ref_conv(up, params["tail_w"], params["tail_b"])
    return jnp.transpose(out, (0, 3, 1, 2))


# ----------------------------------------------------------------------------
if __name__ == "__main__":
    # Module config: nLayer=6 -> nResblock=(6-2)//2=2, nFeat=8, nChannel=3, scale=2;
    # idx = nResblock (full depth).
    nLayer, nFeat, nChannel, scale = 6, 8, 3, 2
    nResblock = (nLayer - 2) // 2
    idx = nResblock

    key = jax.random.PRNGKey(0)
    kx, kp = jax.random.split(key)
    x = jax.random.normal(kx, (2, nChannel, 16, 16), jnp.float32)  # NCHW input
    params = make_params(kp, nChannel, nFeat, nResblock, scale)

    out = jax.block_until_ready(single_network_forward(x, params, idx=idx,
                                                       scale=scale))
    assert out.shape == (2, nChannel, 16 * scale, 16 * scale), out.shape

    ref = jax.block_until_ready(reference_forward(x, params, idx=idx,
                                                  scale=scale))
    err = float(jnp.max(jnp.abs(out - ref)))
    # bf16 weights/activations vs f32 HIGHEST-precision reference -> loosened tol.
    assert jnp.allclose(out, ref, atol=2e-2, rtol=2e-2), f"max abs err {err}"

    print("KERNEL_OK")
</pallas_src>

<mosaic_0001>
module attributes {stable_mosaic.version = 11 : i64} {
  func.func @_fused_forward_kernel(%arg0: i32, %arg1: memref<1x16x48xf32, #tpu.memory_space<vmem>>, %arg2: memref<48x384xbf16, #tpu.memory_space<vmem>>, %arg3: memref<1x128xf32, #tpu.memory_space<vmem>>, %arg4: memref<5x128x384xbf16, #tpu.memory_space<vmem>>, %arg5: memref<5x1x128xf32, #tpu.memory_space<vmem>>, %arg6: memref<128x1536xbf16, #tpu.memory_space<vmem>>, %arg7: memref<1x512xf32, #tpu.memory_space<vmem>>, %arg8: memref<256x384xbf16, #tpu.memory_space<vmem>>, %arg9: memref<1x128xf32, #tpu.memory_space<vmem>>, %arg10: memref<1x2x16x128xf32, #tpu.memory_space<vmem>>) attributes {dimension_semantics = [#tpu.dimension_semantics<parallel>], iteration_bounds = array<i64: 2>, scalar_prefetch = 0 : i64, scratch_operands = 0 : i64, tpu.core_type = #tpu.core_type<tc>, window_params = [{transform_indices = @transform_0, window_bounds = array<i64: 1, 16, 48>}, {pipeline_mode = #tpu.pipeline_mode<synchronous>, transform_indices = @transform_1, window_bounds = array<i64: 48, 384>}, {pipeline_mode = #tpu.pipeline_mode<synchronous>, transform_indices = @transform_2, window_bounds = array<i64: 1, 128>}, {pipeline_mode = #tpu.pipeline_mode<synchronous>, transform_indices = @transform_3, window_bounds = array<i64: 5, 128, 384>}, {pipeline_mode = #tpu.pipeline_mode<synchronous>, transform_indices = @transform_4, window_bounds = array<i64: 5, 1, 128>}, {pipeline_mode = #tpu.pipeline_mode<synchronous>, transform_indices = @transform_5, window_bounds = array<i64: 128, 1536>}, {pipeline_mode = #tpu.pipeline_mode<synchronous>, transform_indices = @transform_6, window_bounds = array<i64: 1, 512>}, {pipeline_mode = #tpu.pipeline_mode<synchronous>, transform_indices = @transform_7, window_bounds = array<i64: 256, 384>}, {pipeline_mode = #tpu.pipeline_mode<synchronous>, transform_indices = @transform_8, window_bounds = array<i64: 1, 128>}, {transform_indices = @transform_9, window_bounds = array<i64: 1, 2, 16, 128>}]} {
    %c0 = arith.constant 0 : index
    %c0_0 = arith.constant 0 : index
    %c0_1 = arith.constant 0 : index
    %0 = vector.load %arg1[%c0, %c0_0, %c0_1] : memref<1x16x48xf32, #tpu.memory_space<vmem>>, vector<1x16x48xf32>
    %1 = vector.shape_cast %0 : vector<1x16x48xf32> to vector<16x48xf32>
    %c0_2 = arith.constant 0 : index
    %c0_3 = arith.constant 0 : index
    %2 = vector.load %arg2[%c0_2, %c0_3] : memref<48x384xbf16, #tpu.memory_space<vmem>>, vector<48x384xbf16>
    %c0_4 = arith.constant 0 : index
    %c0_5 = arith.constant 0 : index
    %3 = vector.load %arg3[%c0_4, %c0_5] : memref<1x128xf32, #tpu.memory_space<vmem>>, vector<1x128xf32>
    %4 = arith.truncf %1 : vector<16x48xf32> to vector<16x48xbf16>
    %cst = arith.constant dense<0.000000e+00> : vector<16x384xf32>
    %5 = tpu.matmul %4, %2, %cst {dimension_numbers = #tpu.dot_dimension_numbers<[1], [0], [0], [1], [0, 0, 1, 1], [], []>} : vector<16x48xbf16>, vector<48x384xbf16>, vector<16x384xf32> -> vector<16x384xf32>
    %6 = vector.extract_strided_slice %5 {offsets = [0, 0], sizes = [16, 128], strides = [1, 1]} : vector<16x384xf32> to vector<16x128xf32>
    %7 = vector.extract_strided_slice %5 {offsets = [0, 128], sizes = [16, 128], strides = [1, 1]} : vector<16x384xf32> to vector<16x128xf32>
    %8 = vector.extract_strided_slice %5 {offsets = [0, 256], sizes = [16, 128], strides = [1, 1]} : vector<16x384xf32> to vector<16x128xf32>
    %9 = tpu.iota {dimensions = array<i32: 0>} : vector<16x128xi32>
    %c0_i32 = arith.constant 0 : i32
    %10 = vector.broadcast %c0_i32 : i32 to vector<16x128xi32>
    %11 = arith.cmpi eq, %9, %10 : vector<16x128xi32>
    %c1_i32 = arith.constant 1 : i32
    %12 = tpu.dynamic_rotate %6 by %c1_i32 dim 0 : vector<16x128xf32>, i32 -> vector<16x128xf32>
    %cst_6 = arith.constant 0.000000e+00 : f32
    %13 = vector.broadcast %cst_6 : f32 to vector<16x128xf32>
    %14 = arith.select %11, %13, %12 : vector<16x128xi1>, vector<16x128xf32>
    %15 = arith.addf %14, %7 : vector<16x128xf32>
    %16 = tpu.iota {dimensions = array<i32: 0>} : vector<16x128xi32>
    %c15_i32 = arith.constant 15 : i32
    %17 = vector.broadcast %c15_i32 : i32 to vector<16x128xi32>
    %18 = arith.cmpi eq, %16, %17 : vector<16x128xi32>
    %c15_i32_7 = arith.constant 15 : i32
    %19 = tpu.dynamic_rotate %8 by %c15_i32_7 dim 0 : vector<16x128xf32>, i32 -> vector<16x128xf32>
    %cst_8 = arith.constant 0.000000e+00 : f32
    %20 = vector.broadcast %cst_8 : f32 to vector<16x128xf32>
    %21 = arith.select %18, %20, %19 : vector<16x128xi1>, vector<16x128xf32>
    %22 = arith.addf %15, %21 : vector<16x128xf32>
    %23 = vector.broadcast %3 : vector<1x128xf32> to vector<16x128xf32>
    %24 = arith.addf %22, %23 : vector<16x128xf32>
    %c0_9 = arith.constant 0 : index
    %c0_10 = arith.constant 0 : index
    %c0_11 = arith.constant 0 : index
    %25 = vector.load %arg4[%c0_9, %c0_10, %c0_11] : memref<5x128x384xbf16, #tpu.memory_space<vmem>>, vector<1x128x384xbf16>
    %26 = vector.shape_cast %25 : vector<1x128x384xbf16> to vector<128x384xbf16>
    %c0_12 = arith.constant 0 : index
    %c0_13 = arith.constant 0 : index
    %c0_14 = arith.constant 0 : index
    %27 = vector.load %arg5[%c0_12, %c0_13, %c0_14] : memref<5x1x128xf32, #tpu.memory_space<vmem>>, vector<1x1x128xf32>
    %28 = vector.shape_cast %27 : vector<1x1x128xf32> to vector<1x128xf32>
    %29 = arith.truncf %24 : vector<16x128xf32> to vector<16x128xbf16>
    %cst_15 = arith.constant dense<0.000000e+00> : vector<16x384xf32>
    %30 = tpu.matmul %29, %26, %cst_15 {dimension_numbers = #tpu.dot_dimension_numbers<[1], [0], [0], [1], [0, 0, 1, 1], [], []>} : vector<16x128xbf16>, vector<128x384xbf16>, vector<16x384xf32> -> vector<16x384xf32>
    %31 = vector.extract_strided_slice %30 {offsets = [0, 0], sizes = [16, 128], strides = [1, 1]} : vector<16x384xf32> to vector<16x128xf32>
    %32 = vector.extract_strided_slice %30 {offsets = [0, 128], sizes = [16, 128], strides = [1, 1]} : vector<16x384xf32> to vector<16x128xf32>
    %33 = vector.extract_strided_slice %30 {offsets = [0, 256], sizes = [16, 128], strides = [1, 1]} : vector<16x384xf32> to vector<16x128xf32>
    %34 = tpu.iota {dimensions = array<i32: 0>} : vector<16x128xi32>
    %c0_i32_16 = arith.constant 0 : i32
    %35 = vector.broadcast %c0_i32_16 : i32 to vector<16x128xi32>
    %36 = arith.cmpi eq, %34, %35 : vector<16x128xi32>
    %c1_i32_17 = arith.constant 1 : i32
    %37 = tpu.dynamic_rotate %31 by %c1_i32_17 dim 0 : vector<16x128xf32>, i32 -> vector<16x128xf32>
    %cst_18 = arith.constant 0.000000e+00 : f32
    %38 = vector.broadcast %cst_18 : f32 to vector<16x128xf32>
    %39 = arith.select %36, %38, %37 : vector<16x128xi1>, vector<16x128xf32>
    %40 = arith.addf %39, %32 : vector<16x128xf32>
    %41 = tpu.iota {dimensions = array<i32: 0>} : vector<16x128xi32>
    %c15_i32_19 = arith.constant 15 : i32
    %42 = vector.broadcast %c15_i32_19 : i32 to vector<16x128xi32>
    %43 = arith.cmpi eq, %41, %42 : vector<16x128xi32>
    %c15_i32_20 = arith.constant 15 : i32
    %44 = tpu.dynamic_rotate %33 by %c15_i32_20 dim 0 : vector<16x128xf32>, i32 -> vector<16x128xf32>
    %cst_21 = arith.constant 0.000000e+00 : f32
    %45 = vector.broadcast %cst_21 : f32 to vector<16x128xf32>
    %46 = arith.select %43, %45, %44 : vector<16x128xi1>, vector<16x128xf32>
    %47 = arith.addf %40, %46 : vector<16x128xf32>
    %48 = vector.broadcast %28 : vector<1x128xf32> to vector<16x128xf32>
    %49 = arith.addf %47, %48 : vector<16x128xf32>
    %cst_22 = arith.constant 0.000000e+00 : f32
    %50 = vector.broadcast %cst_22 : f32 to vector<16x128xf32>
    %51 = arith.maximumf %49, %50 : vector<16x128xf32>
    %c1 = arith.constant 1 : index
    %c0_23 = arith.constant 0 : index
    %c0_24 = arith.constant 0 : index
    %52 = vector.load %arg4[%c1, %c0_23, %c0_24] : memref<5x128x384xbf16, #tpu.memory_space<vmem>>, vector<1x128x384xbf16>
    %53 = vector.shape_cast %52 : vector<1x128x384xbf16> to vector<128x384xbf16>
    %c1_25 = arith.constant 1 : index
    %c0_26 = arith.constant 0 : index
    %c0_27 = arith.constant 0 : index
    %54 = vector.load %arg5[%c1_25, %c0_26, %c0_27] : memref<5x1x128xf32, #tpu.memory_space<vmem>>, vector<1x1x128xf32>
    %55 = vector.shape_cast %54 : vector<1x1x128xf32> to vector<1x128xf32>
    %56 = arith.truncf %51 : vector<16x128xf32> to vector<16x128xbf16>
    %cst_28 = arith.constant dense<0.000000e+00> : vector<16x384xf32>
    %57 = tpu.matmul %56, %53, %cst_28 {dimension_numbers = #tpu.dot_dimension_numbers<[1], [0], [0], [1], [0, 0, 1, 1], [], []>} : vector<16x128xbf16>, vector<128x384xbf16>, vector<16x384xf32> -> vector<16x384xf32>
    %58 = vector.extract_strided_slice %57 {offsets = [0, 0], sizes = [16, 128], strides = [1, 1]} : vector<16x384xf32> to vector<16x128xf32>
    %59 = vector.extract_strided_slice %57 {offsets = [0, 128], sizes = [16, 128], strides = [1, 1]} : vector<16x384xf32> to vector<16x128xf32>
    %60 = vector.extract_strided_slice %57 {offsets = [0, 256], sizes = [16, 128], strides = [1, 1]} : vector<16x384xf32> to vector<16x128xf32>
    %61 = tpu.iota {dimensions = array<i32: 0>} : vector<16x128xi32>
    %c0_i32_29 = arith.constant 0 : i32
    %62 = vector.broadcast %c0_i32_29 : i32 to vector<16x128xi32>
    %63 = arith.cmpi eq, %61, %62 : vector<16x128xi32>
    %c1_i32_30 = arith.constant 1 : i32
    %64 = tpu.dynamic_rotate %58 by %c1_i32_30 dim 0 : vector<16x128xf32>, i32 -> vector<16x128xf32>
    %cst_31 = arith.constant 0.000000e+00 : f32
    %65 = vector.broadcast %cst_31 : f32 to vector<16x128xf32>
    %66 = arith.select %63, %65, %64 : vector<16x128xi1>, vector<16x128xf32>
    %67 = arith.addf %66, %59 : vector<16x128xf32>
    %68 = tpu.iota {dimensions = array<i32: 0>} : vector<16x128xi32>
    %c15_i32_32 = arith.constant 15 : i32
    %69 = vector.broadcast %c15_i32_32 : i32 to vector<16x128xi32>
    %70 = arith.cmpi eq, %68, %69 : vector<16x128xi32>
    %c15_i32_33 = arith.constant 15 : i32
    %71 = tpu.dynamic_rotate %60 by %c15_i32_33 dim 0 : vector<16x128xf32>, i32 -> vector<16x128xf32>
    %cst_34 = arith.constant 0.000000e+00 : f32
    %72 = vector.broadcast %cst_34 : f32 to vector<16x128xf32>
    %73 = arith.select %70, %72, %71 : vector<16x128xi1>, vector<16x128xf32>
    %74 = arith.addf %67, %73 : vector<16x128xf32>
    %75 = vector.broadcast %55 : vector<1x128xf32> to vector<16x128xf32>
    %76 = arith.addf %74, %75 : vector<16x128xf32>
    %77 = arith.addf %76, %24 : vector<16x128xf32>
    %c2 = arith.constant 2 : index
    %c0_35 = arith.constant 0 : index
    %c0_36 = arith.constant 0 : index
    %78 = vector.load %arg4[%c2, %c0_35, %c0_36] : memref<5x128x384xbf16, #tpu.memory_space<vmem>>, vector<1x128x384xbf16>
    %79 = vector.shape_cast %78 : vector<1x128x384xbf16> to vector<128x384xbf16>
    %c2_37 = arith.constant 2 : index
    %c0_38 = arith.constant 0 : index
    %c0_39 = arith.constant 0 : index
    %80 = vector.load %arg5[%c2_37, %c0_38, %c0_39] : memref<5x1x128xf32, #tpu.memory_space<vmem>>, vector<1x1x128xf32>
    %81 = vector.shape_cast %80 : vector<1x1x128xf32> to vector<1x128xf32>
    %82 = arith.truncf %77 : vector<16x128xf32> to vector<16x128xbf16>
    %cst_40 = arith.constant dense<0.000000e+00> : vector<16x384xf32>
    %83 = tpu.matmul %82, %79, %cst_40 {dimension_numbers = #tpu.dot_dimension_numbers<[1], [0], [0], [1], [0, 0, 1, 1], [], []>} : vector<16x128xbf16>, vector<128x384xbf16>, vector<16x384xf32> -> vector<16x384xf32>
    %84 = vector.extract_strided_slice %83 {offsets = [0, 0], sizes = [16, 128], strides = [1, 1]} : vector<16x384xf32> to vector<16x128xf32>
    %85 = vector.extract_strided_slice %83 {offsets = [0, 128], sizes = [16, 128], strides = [1, 1]} : vector<16x384xf32> to vector<16x128xf32>
    %86 = vector.extract_strided_slice %83 {offsets = [0, 256], sizes = [16, 128], strides = [1, 1]} : vector<16x384xf32> to vector<16x128xf32>
    %87 = tpu.iota {dimensions = array<i32: 0>} : vector<16x128xi32>
    %c0_i32_41 = arith.constant 0 : i32
    %88 = vector.broadcast %c0_i32_41 : i32 to vector<16x128xi32>
    %89 = arith.cmpi eq, %87, %88 : vector<16x128xi32>
    %c1_i32_42 = arith.constant 1 : i32
    %90 = tpu.dynamic_rotate %84 by %c1_i32_42 dim 0 : vector<16x128xf32>, i32 -> vector<16x128xf32>
    %cst_43 = arith.constant 0.000000e+00 : f32
    %91 = vector.broadcast %cst_43 : f32 to vector<16x128xf32>
    %92 = arith.select %89, %91, %90 : vector<16x128xi1>, vector<16x128xf32>
    %93 = arith.addf %92, %85 : vector<16x128xf32>
    %94 = tpu.iota {dimensions = array<i32: 0>} : vector<16x128xi32>
    %c15_i32_44 = arith.constant 15 : i32
    %95 = vector.broadcast %c15_i32_44 : i32 to vector<16x128xi32>
    %96 = arith.cmpi eq, %94, %95 : vector<16x128xi32>
    %c15_i32_45 = arith.constant 15 : i32
    %97 = tpu.dynamic_rotate %86 by %c15_i32_45 dim 0 : vector<16x128xf32>, i32 -> vector<16x128xf32>
    %cst_46 = arith.constant 0.000000e+00 : f32
    %98 = vector.broadcast %cst_46 : f32 to vector<16x128xf32>
    %99 = arith.select %96, %98, %97 : vector<16x128xi1>, vector<16x128xf32>
    %100 = arith.addf %93, %99 : vector<16x128xf32>
    %101 = vector.broadcast %81 : vector<1x128xf32> to vector<16x128xf32>
    %102 = arith.addf %100, %101 : vector<16x128xf32>
    %cst_47 = arith.constant 0.000000e+00 : f32
    %103 = vector.broadcast %cst_47 : f32 to vector<16x128xf32>
    %104 = arith.maximumf %102, %103 : vector<16x128xf32>
    %c3 = arith.constant 3 : index
    %c0_48 = arith.constant 0 : index
    %c0_49 = arith.constant 0 : index
    %105 = vector.load %arg4[%c3, %c0_48, %c0_49] : memref<5x128x384xbf16, #tpu.memory_space<vmem>>, vector<1x128x384xbf16>
    %106 = vector.shape_cast %105 : vector<1x128x384xbf16> to vector<128x384xbf16>
    %c3_50 = arith.constant 3 : index
    %c0_51 = arith.constant 0 : index
    %c0_52 = arith.constant 0 : index
    %107 = vector.load %arg5[%c3_50, %c0_51, %c0_52] : memref<5x1x128xf32, #tpu.memory_space<vmem>>, vector<1x1x128xf32>
    %108 = vector.shape_cast %107 : vector<1x1x128xf32> to vector<1x128xf32>
    %109 = arith.truncf %104 : vector<16x128xf32> to vector<16x128xbf16>
    %cst_53 = arith.constant dense<0.000000e+00> : vector<16x384xf32>
    %110 = tpu.matmul %109, %106, %cst_53 {dimension_numbers = #tpu.dot_dimension_numbers<[1], [0], [0], [1], [0, 0, 1, 1], [], []>} : vector<16x128xbf16>, vector<128x384xbf16>, vector<16x384xf32> -> vector<16x384xf32>
    %111 = vector.extract_strided_slice %110 {offsets = [0, 0], sizes = [16, 128], strides = [1, 1]} : vector<16x384xf32> to vector<16x128xf32>
    %112 = vector.extract_strided_slice %110 {offsets = [0, 128], sizes = [16, 128], strides = [1, 1]} : vector<16x384xf32> to vector<16x128xf32>
    %113 = vector.extract_strided_slice %110 {offsets = [0, 256], sizes = [16, 128], strides = [1, 1]} : vector<16x384xf32> to vector<16x128xf32>
    %114 = tpu.iota {dimensions = array<i32: 0>} : vector<16x128xi32>
    %c0_i32_54 = arith.constant 0 : i32
    %115 = vector.broadcast %c0_i32_54 : i32 to vector<16x128xi32>
    %116 = arith.cmpi eq, %114, %115 : vector<16x128xi32>
    %c1_i32_55 = arith.constant 1 : i32
    %117 = tpu.dynamic_rotate %111 by %c1_i32_55 dim 0 : vector<16x128xf32>, i32 -> vector<16x128xf32>
    %cst_56 = arith.constant 0.000000e+00 : f32
    %118 = vector.broadcast %cst_56 : f32 to vector<16x128xf32>
    %119 = arith.select %116, %118, %117 : vector<16x128xi1>, vector<16x128xf32>
    %120 = arith.addf %119, %112 : vector<16x128xf32>
    %121 = tpu.iota {dimensions = array<i32: 0>} : vector<16x128xi32>
    %c15_i32_57 = arith.constant 15 : i32
    %122 = vector.broadcast %c15_i32_57 : i32 to vector<16x128xi32>
    %123 = arith.cmpi eq, %121, %122 : vector<16x128xi32>
    %c15_i32_58 = arith.constant 15 : i32
    %124 = tpu.dynamic_rotate %113 by %c15_i32_58 dim 0 : vector<16x128xf32>, i32 -> vector<16x128xf32>
    %cst_59 = arith.constant 0.000000e+00 : f32
    %125 = vector.broadcast %cst_59 : f32 to vector<16x128xf32>
    %126 = arith.select %123, %125, %124 : vector<16x128xi1>, vector<16x128xf32>
    %127 = arith.addf %120, %126 : vector<16x128xf32>
    %128 = vector.broadcast %108 : vector<1x128xf32> to vector<16x128xf32>
    %129 = arith.addf %127, %128 : vector<16x128xf32>
    %130 = arith.addf %129, %77 : vector<16x128xf32>
    %c4 = arith.constant 4 : index
    %c0_60 = arith.constant 0 : index
    %c0_61 = arith.constant 0 : index
    %131 = vector.load %arg4[%c4, %c0_60, %c0_61] : memref<5x128x384xbf16, #tpu.memory_space<vmem>>, vector<1x128x384xbf16>
    %132 = vector.shape_cast %131 : vector<1x128x384xbf16> to vector<128x384xbf16>
    %c4_62 = arith.constant 4 : index
    %c0_63 = arith.constant 0 : index
    %c0_64 = arith.constant 0 : index
    %133 = vector.load %arg5[%c4_62, %c0_63, %c0_64] : memref<5x1x128xf32, #tpu.memory_space<vmem>>, vector<1x1x128xf32>
    %134 = vector.shape_cast %133 : vector<1x1x128xf32> to vector<1x128xf32>
    %135 = arith.truncf %130 : vector<16x128xf32> to vector<16x128xbf16>
    %cst_65 = arith.constant dense<0.000000e+00> : vector<16x384xf32>
    %136 = tpu.matmul %135, %132, %cst_65 {dimension_numbers = #tpu.dot_dimension_numbers<[1], [0], [0], [1], [0, 0, 1, 1], [], []>} : vector<16x128xbf16>, vector<128x384xbf16>, vector<16x384xf32> -> vector<16x384xf32>
    %137 = vector.extract_strided_slice %136 {offsets = [0, 0], sizes = [16, 128], strides = [1, 1]} : vector<16x384xf32> to vector<16x128xf32>
    %138 = vector.extract_strided_slice %136 {offsets = [0, 128], sizes = [16, 128], strides = [1, 1]} : vector<16x384xf32> to vector<16x128xf32>
    %139 = vector.extract_strided_slice %136 {offsets = [0, 256], sizes = [16, 128], strides = [1, 1]} : vector<16x384xf32> to vector<16x128xf32>
    %140 = tpu.iota {dimensions = array<i32: 0>} : vector<16x128xi32>
    %c0_i32_66 = arith.constant 0 : i32
    %141 = vector.broadcast %c0_i32_66 : i32 to vector<16x128xi32>
    %142 = arith.cmpi eq, %140, %141 : vector<16x128xi32>
    %c1_i32_67 = arith.constant 1 : i32
    %143 = tpu.dynamic_rotate %137 by %c1_i32_67 dim 0 : vector<16x128xf32>, i32 -> vector<16x128xf32>
    %cst_68 = arith.constant 0.000000e+00 : f32
    %144 = vector.broadcast %cst_68 : f32 to vector<16x128xf32>
    %145 = arith.select %142, %144, %143 : vector<16x128xi1>, vector<16x128xf32>
    %146 = arith.addf %145, %138 : vector<16x128xf32>
    %147 = tpu.iota {dimensions = array<i32: 0>} : vector<16x128xi32>
    %c15_i32_69 = arith.constant 15 : i32
    %148 = vector.broadcast %c15_i32_69 : i32 to vector<16x128xi32>
    %149 = arith.cmpi eq, %147, %148 : vector<16x128xi32>
    %c15_i32_70 = arith.constant 15 : i32
    %150 = tpu.dynamic_rotate %139 by %c15_i32_70 dim 0 : vector<16x128xf32>, i32 -> vector<16x128xf32>
    %cst_71 = arith.constant 0.000000e+00 : f32
    %151 = vector.broadcast %cst_71 : f32 to vector<16x128xf32>
    %152 = arith.select %149, %151, %150 : vector<16x128xi1>, vector<16x128xf32>
    %153 = arith.addf %146, %152 : vector<16x128xf32>
    %154 = vector.broadcast %134 : vector<1x128xf32> to vector<16x128xf32>
    %155 = arith.addf %153, %154 : vector<16x128xf32>
    %156 = arith.addf %155, %24 : vector<16x128xf32>
    %c0_72 = arith.constant 0 : index
    %c0_73 = arith.constant 0 : index
    %157 = vector.load %arg6[%c0_72, %c0_73] : memref<128x1536xbf16, #tpu.memory_space<vmem>>, vector<128x1536xbf16>
    %c0_74 = arith.constant 0 : index
    %c0_75 = arith.constant 0 : index
    %158 = vector.load %arg7[%c0_74, %c0_75] : memref<1x512xf32, #tpu.memory_space<vmem>>, vector<1x512xf32>
    %159 = arith.truncf %156 : vector<16x128xf32> to vector<16x128xbf16>
    %cst_76 = arith.constant dense<0.000000e+00> : vector<16x1536xf32>
    %160 = tpu.matmul %159, %157, %cst_76 {dimension_numbers = #tpu.dot_dimension_numbers<[1], [0], [0], [1], [0, 0, 1, 1], [], []>} : vector<16x128xbf16>, vector<128x1536xbf16>, vector<16x1536xf32> -> vector<16x1536xf32>
    %161 = vector.extract_strided_slice %160 {offsets = [0, 0], sizes = [16, 512], strides = [1, 1]} : vector<16x1536xf32> to vector<16x512xf32>
    %162 = vector.extract_strided_slice %160 {offsets = [0, 512], sizes = [16, 512], strides = [1, 1]} : vector<16x1536xf32> to vector<16x512xf32>
    %163 = vector.extract_strided_slice %160 {offsets = [0, 1024], sizes = [16, 512], strides = [1, 1]} : vector<16x1536xf32> to vector<16x512xf32>
    %164 = tpu.iota {dimensions = array<i32: 0>} : vector<16x512xi32>
    %c0_i32_77 = arith.constant 0 : i32
    %165 = vector.broadcast %c0_i32_77 : i32 to vector<16x512xi32>
    %166 = arith.cmpi eq, %164, %165 : vector<16x512xi32>
    %c1_i32_78 = arith.constant 1 : i32
    %167 = tpu.dynamic_rotate %161 by %c1_i32_78 dim 0 : vector<16x512xf32>, i32 -> vector<16x512xf32>
    %cst_79 = arith.constant 0.000000e+00 : f32
    %168 = vector.broadcast %cst_79 : f32 to vector<16x512xf32>
    %169 = arith.select %166, %168, %167 : vector<16x512xi1>, vector<16x512xf32>
    %170 = arith.addf %169, %162 : vector<16x512xf32>
    %171 = tpu.iota {dimensions = array<i32: 0>} : vector<16x512xi32>
    %c15_i32_80 = arith.constant 15 : i32
    %172 = vector.broadcast %c15_i32_80 : i32 to vector<16x512xi32>
    %173 = arith.cmpi eq, %171, %172 : vector<16x512xi32>
    %c15_i32_81 = arith.constant 15 : i32
    %174 = tpu.dynamic_rotate %163 by %c15_i32_81 dim 0 : vector<16x512xf32>, i32 -> vector<16x512xf32>
    %cst_82 = arith.constant 0.000000e+00 : f32
    %175 = vector.broadcast %cst_82 : f32 to vector<16x512xf32>
    %176 = arith.select %173, %175, %174 : vector<16x512xi1>, vector<16x512xf32>
    %177 = arith.addf %170, %176 : vector<16x512xf32>
    %178 = vector.broadcast %158 : vector<1x512xf32> to vector<16x512xf32>
    %179 = arith.addf %177, %178 : vector<16x512xf32>
    %180 = vector.extract_strided_slice %179 {offsets = [0, 0], sizes = [16, 256], strides = [1, 1]} : vector<16x512xf32> to vector<16x256xf32>
    %181 = vector.extract_strided_slice %179 {offsets = [0, 256], sizes = [16, 256], strides = [1, 1]} : vector<16x512xf32> to vector<16x256xf32>
    %c0_83 = arith.constant 0 : index
    %c0_84 = arith.constant 0 : index
    %182 = vector.load %arg8[%c0_83, %c0_84] : memref<256x384xbf16, #tpu.memory_space<vmem>>, vector<256x384xbf16>
    %183 = arith.truncf %180 : vector<16x256xf32> to vector<16x256xbf16>
    %cst_85 = arith.constant dense<0.000000e+00> : vector<16x384xf32>
    %184 = tpu.matmul %183, %182, %cst_85 {dimension_numbers = #tpu.dot_dimension_numbers<[1], [0], [0], [1], [0, 0, 1, 1], [], []>} : vector<16x256xbf16>, vector<256x384xbf16>, vector<16x384xf32> -> vector<16x384xf32>
    %185 = vector.extract_strided_slice %184 {offsets = [0, 0], sizes = [16, 128], strides = [1, 1]} : vector<16x384xf32> to vector<16x128xf32>
    %186 = vector.extract_strided_slice %184 {offsets = [0, 128], sizes = [16, 128], strides = [1, 1]} : vector<16x384xf32> to vector<16x128xf32>
    %187 = vector.extract_strided_slice %184 {offsets = [0, 256], sizes = [16, 128], strides = [1, 1]} : vector<16x384xf32> to vector<16x128xf32>
    %188 = arith.truncf %181 : vector<16x256xf32> to vector<16x256xbf16>
    %cst_86 = arith.constant dense<0.000000e+00> : vector<16x384xf32>
    %189 = tpu.matmul %188, %182, %cst_86 {dimension_numbers = #tpu.dot_dimension_numbers<[1], [0], [0], [1], [0, 0, 1, 1], [], []>} : vector<16x256xbf16>, vector<256x384xbf16>, vector<16x384xf32> -> vector<16x384xf32>
    %190 = vector.extract_strided_slice %189 {offsets = [0, 0], sizes = [16, 128], strides = [1, 1]} : vector<16x384xf32> to vector<16x128xf32>
    %191 = vector.extract_strided_slice %189 {offsets = [0, 128], sizes = [16, 128], strides = [1, 1]} : vector<16x384xf32> to vector<16x128xf32>
    %192 = vector.extract_strided_slice %189 {offsets = [0, 256], sizes = [16, 128], strides = [1, 1]} : vector<16x384xf32> to vector<16x128xf32>
    %193 = tpu.iota {dimensions = array<i32: 0>} : vector<16x128xi32>
    %c0_i32_87 = arith.constant 0 : i32
    %194 = vector.broadcast %c0_i32_87 : i32 to vector<16x128xi32>
    %195 = arith.cmpi eq, %193, %194 : vector<16x128xi32>
    %c1_i32_88 = arith.constant 1 : i32
    %196 = tpu.dynamic_rotate %190 by %c1_i32_88 dim 0 : vector<16x128xf32>, i32 -> vector<16x128xf32>
    %cst_89 = arith.constant 0.000000e+00 : f32
    %197 = vector.broadcast %cst_89 : f32 to vector<16x128xf32>
    %198 = arith.select %195, %197, %196 : vector<16x128xi1>, vector<16x128xf32>
    %199 = arith.addf %198, %186 : vector<16x128xf32>
    %200 = arith.addf %199, %192 : vector<16x128xf32>
    %c0_90 = arith.constant 0 : index
    %c0_91 = arith.constant 0 : index
    %201 = vector.load %arg9[%c0_90, %c0_91] : memref<1x128xf32, #tpu.memory_space<vmem>>, vector<1x128xf32>
    %202 = vector.broadcast %201 : vector<1x128xf32> to vector<16x128xf32>
    %203 = arith.addf %200, %202 : vector<16x128xf32>
    %c0_92 = arith.constant 0 : index
    %c0_93 = arith.constant 0 : index
    %c0_94 = arith.constant 0 : index
    %c0_95 = arith.constant 0 : index
    %204 = vector.load %arg10[%c0_92, %c0_93, %c0_94, %c0_95] : memref<1x2x16x128xf32, #tpu.memory_space<vmem>>, vector<1x1x16x128xf32>
    %205 = vector.shape_cast %204 : vector<1x1x16x128xf32> to vector<16x128xf32>
    %206 = vector.shape_cast %203 : vector<16x128xf32> to vector<1x1x16x128xf32>
    tpu.vector_store %arg10[%c0_92, %c0_93, %c0_94, %c0_95], %206 {strides = array<i32>} : memref<1x2x16x128xf32, #tpu.memory_space<vmem>>, vector<1x1x16x128xf32>,
    %207 = arith.addf %185, %191 : vector<16x128xf32>
    %208 = tpu.iota {dimensions = array<i32: 0>} : vector<16x128xi32>
    %c15_i32_96 = arith.constant 15 : i32
    %209 = vector.broadcast %c15_i32_96 : i32 to vector<16x128xi32>
    %210 = arith.cmpi eq, %208, %209 : vector<16x128xi32>
    %c15_i32_97 = arith.constant 15 : i32
    %211 = tpu.dynamic_rotate %187 by %c15_i32_97 dim 0 : vector<16x128xf32>, i32 -> vector<16x128xf32>
    %cst_98 = arith.constant 0.000000e+00 : f32
    %212 = vector.broadcast %cst_98 : f32 to vector<16x128xf32>
    %213 = arith.select %210, %212, %211 : vector<16x128xi1>, vector<16x128xf32>
    %214 = arith.addf %207, %213 : vector<16x128xf32>
    %c0_99 = arith.constant 0 : index
    %c0_100 = arith.constant 0 : index
    %215 = vector.load %arg9[%c0_99, %c0_100] : memref<1x128xf32, #tpu.memory_space<vmem>>, vector<1x128xf32>
    %216 = vector.broadcast %215 : vector<1x128xf32> to vector<16x128xf32>
    %217 = arith.addf %214, %216 : vector<16x128xf32>
    %c0_101 = arith.constant 0 : index
    %c1_102 = arith.constant 1 : index
    %c0_103 = arith.constant 0 : index
    %c0_104 = arith.constant 0 : index
    %218 = vector.load %arg10[%c0_101, %c1_102, %c0_103, %c0_104] : memref<1x2x16x128xf32, #tpu.memory_space<vmem>>, vector<1x1x16x128xf32>
    %219 = vector.shape_cast %218 : vector<1x1x16x128xf32> to vector<16x128xf32>
    %220 = vector.shape_cast %217 : vector<16x128xf32> to vector<1x1x16x128xf32>
    tpu.vector_store %arg10[%c0_101, %c1_102, %c0_103, %c0_104], %220 {strides = array<i32>} : memref<1x2x16x128xf32, #tpu.memory_space<vmem>>, vector<1x1x16x128xf32>,
    return
  }
  func.func @transform_0(%arg0: i32) -> (i32, i32, i32) {
    %c0_i32 = arith.constant 0 : i32
    %c0_i32_0 = arith.constant 0 : i32
    %c0_i32_1 = arith.constant 0 : i32
    return %arg0, %c0_i32, %c0_i32_0 : i32, i32, i32
  }
  func.func @transform_1(%arg0: i32) -> (i32, i32) {
    %c0_i32 = arith.constant 0 : i32
    %c0_i32_0 = arith.constant 0 : i32
    %c0_i32_1 = arith.constant 0 : i32
    return %c0_i32, %c0_i32_0 : i32, i32
  }
  func.func @transform_2(%arg0: i32) -> (i32, i32) {
    %c0_i32 = arith.constant 0 : i32
    %c0_i32_0 = arith.constant 0 : i32
    %c0_i32_1 = arith.constant 0 : i32
    return %c0_i32, %c0_i32_0 : i32, i32
  }
  func.func @transform_3(%arg0: i32) -> (i32, i32, i32) {
    %c0_i32 = arith.constant 0 : i32
    %c0_i32_0 = arith.constant 0 : i32
    %c0_i32_1 = arith.constant 0 : i32
    %c0_i32_2 = arith.constant 0 : i32
    return %c0_i32, %c0_i32_0, %c0_i32_1 : i32, i32, i32
  }
  func.func @transform_4(%arg0: i32) -> (i32, i32, i32) {
    %c0_i32 = arith.constant 0 : i32
    %c0_i32_0 = arith.constant 0 : i32
    %c0_i32_1 = arith.constant 0 : i32
    %c0_i32_2 = arith.constant 0 : i32
    return %c0_i32, %c0_i32_0, %c0_i32_1 : i32, i32, i32
  }
  func.func @transform_5(%arg0: i32) -> (i32, i32) {
    %c0_i32 = arith.constant 0 : i32
    %c0_i32_0 = arith.constant 0 : i32
    %c0_i32_1 = arith.constant 0 : i32
    return %c0_i32, %c0_i32_0 : i32, i32
  }
  func.func @transform_6(%arg0: i32) -> (i32, i32) {
    %c0_i32 = arith.constant 0 : i32
    %c0_i32_0 = arith.constant 0 : i32
    %c0_i32_1 = arith.constant 0 : i32
    return %c0_i32, %c0_i32_0 : i32, i32
  }
  func.func @transform_7(%arg0: i32) -> (i32, i32) {
    %c0_i32 = arith.constant 0 : i32
    %c0_i32_0 = arith.constant 0 : i32
    %c0_i32_1 = arith.constant 0 : i32
    return %c0_i32, %c0_i32_0 : i32, i32
  }
  func.func @transform_8(%arg0: i32) -> (i32, i32) {
    %c0_i32 = arith.constant 0 : i32
    %c0_i32_0 = arith.constant 0 : i32
    %c0_i32_1 = arith.constant 0 : i32
    return %c0_i32, %c0_i32_0 : i32, i32
  }
  func.func @transform_9(%arg0: i32) -> (i32, i32, i32, i32) {
    %c0_i32 = arith.constant 0 : i32
    %c0_i32_0 = arith.constant 0 : i32
    %c0_i32_1 = arith.constant 0 : i32
    %c0_i32_2 = arith.constant 0 : i32
    return %arg0, %c0_i32, %c0_i32_0, %c0_i32_1 : i32, i32, i32, i32
  }
}

</mosaic_0001>

<llo_original>
// kernel: tile.43
$region0: #{tile.43}
  #allocation2 [shape = 's32[1]{0}', space=sflag, size = 0x4, scoped, tag = 'scoped memory for tile.43']
  %s0 = inlined_call_operand.hbm [shape: f32[8], index: 0, kind: input, shape index: {}]
  %s1 = inlined_call_operand.vmem [shape: f32[16,8], index: 1, kind: output, shape index: {}]
  $region1: #{tile.43} parent=0
    #allocation0 [shape = 'u8[512]{0}', space=vmem, size = 0x400, scoped, tag = 'operand span for operand 0']
    #allocation1 [shape = 's32[1]{0}', space=sflag, size = 0x4, scoped, tag = 'scoped memory for tile.43']
    %2 = vsyncpa [#allocation1], 0
    // Predicated region
    $region2: #{tile.43} parent=1 // pred_check
      _
    $region3: #{tile.43} parent=1 // pred_check_branch
      %4 = sbr.rel (0) target = $region5
    $region4: #{tile.43} parent=1 // pred_region
      %6 = vsyncadd [#allocation1], 0
      %s8 = sshll.u32 %s0, 4
      %s9 = int_to_ptr.hbm [resolvable:$true] %s8
      %s10 = sshll.u32 [#allocation0], 4
      %s11 = int_to_ptr.vmem [resolvable:$true] %s10
      %13 = dma.hbm_to_vmem [thread:$0]  %s9, 16, %s11, [#allocation1]
    $region5: #{tile.43} parent=1 // pred_fallthru
      _
    // Predicated region
    $region6: #{tile.43} parent=1 // pred_check
      _
    $region7: #{tile.43} parent=1 // pred_check_branch
      %15 = sbr.rel (0) target = $region9
    $region8: #{tile.43} parent=1 // pred_region
      %17 = dma.done [#allocation1], 16
    $region9: #{tile.43} parent=1 // pred_fallthru
      _
    %v18 = vld [vmem:[#allocation0] ss:$0 sm:$0xff]
    %19 = vst [vmem:[%s1] sm:$0xff] %v18
    %s20 = scalar_lea.vmem %s1, 8
    %21 = vst [vmem:[%s20] sm:$0xff] %v18
    %22 = vsyncpa [#allocation1], 1

// kernel: tile.60
$region0: #{tile.60}
  %s0 = inlined_call_operand.vmem [shape: f32[16,8], index: 0, kind: input, shape index: {}]
  %s1 = inlined_call_operand.vmem [shape: f32[1,128], index: 1, kind: output, shape index: {}]
  $region1: #{tile.60} parent=0
    #allocation0 [shape = 'u8[4096]{0}', space=vmem, size = 0x1000, scoped, tag = 'scoped mem for output reshape']
    %v2 = vld [vmem:[%s0] sm:$0x1]
    %vm3 = vcmask 64512
    %4 = vst.msk [vmem:[#allocation0] sm:$0x1] %vm3, %v2
    %s5 = scalar_lea.vmem %s0, 15
    %v6 = vld [vmem:[%s5] sm:$0x1]
    %7 = vrot.lane.b32.xlu0 %v6, 120
    %v8 = vpop.permute.xlu0 %7
    %vm9 = vcmask 1048512
    %10 = vst.msk [vmem:[#allocation0] sm:$0x1] %vm9, %v8
    %s11 = scalar_lea.vmem %s0, 14
    %v12 = vld [vmem:[%s11] sm:$0x1]
    %13 = vrot.lane.b32.xlu0 %v12, 112
    %v14 = vpop.permute.xlu0 %13
    %vm15 = vcmask 982912
    %16 = vst.msk [vmem:[#allocation0] sm:$0x1] %vm15, %v14
    %s17 = scalar_lea.vmem %s0, 13
    %v18 = vld [vmem:[%s17] sm:$0x1]
    %19 = vrot.lane.b32.xlu0 %v18, 104
    %v20 = vpop.permute.xlu0 %19
    %vm21 = vcmask 917312
    %22 = vst.msk [vmem:[#allocation0] sm:$0x1] %vm21, %v20
    %s23 = scalar_lea.vmem %s0, 12
    %v24 = vld [vmem:[%s23] sm:$0x1]
    %25 = vrot.lane.b32.xlu0 %v24, 96
    %v26 = vpop.permute.xlu0 %25
    %vm27 = vcmask 851712
    %28 = vst.msk [vmem:[#allocation0] sm:$0x1] %vm27, %v26
    %s29 = scalar_lea.vmem %s0, 11
    %v30 = vld [vmem:[%s29] sm:$0x1]
    %31 = vrot.lane.b32.xlu0 %v30, 88
    %v32 = vpop.permute.xlu0 %31
    %vm33 = vcmask 786112
    %34 = vst.msk [vmem:[#allocation0] sm:$0x1] %vm33, %v32
    %s35 = scalar_lea.vmem %s0, 10
    %v36 = vld [vmem:[%s35] sm:$0x1]
    %37 = vrot.lane.b32.xlu0 %v36, 80
    %v38 = vpop.permute.xlu0 %37
    %vm39 = vcmask 720512
    %40 = vst.msk [vmem:[#allocation0] sm:$0x1] %vm39, %v38
    %s41 = scalar_lea.vmem %s0, 9
    %v42 = vld [vmem:[%s41] sm:$0x1]
    %43 = vrot.lane.b32.xlu0 %v42, 72
    %v44 = vpop.permute.xlu0 %43
    %vm45 = vcmask 654912
    %46 = vst.msk [vmem:[#allocation0] sm:$0x1] %vm45, %v44
    %s47 = scalar_lea.vmem %s0, 8
    %v48 = vld [vmem:[%s47] sm:$0x1]
    %49 = vrot.lane.b32.xlu0 %v48, 64
    %v50 = vpop.permute.xlu0 %49
    %vm51 = vcmask 589312
    %52 = vst.msk [vmem:[#allocation0] sm:$0x1] %vm51, %v50
    %s53 = scalar_lea.vmem %s0, 7
    %v54 = vld [vmem:[%s53] sm:$0x1]
    %55 = vrot.lane.b32.xlu0 %v54, 56
    %v56 = vpop.permute.xlu0 %55
    %vm57 = vcmask 523712
    %58 = vst.msk [vmem:[#allocation0] sm:$0x1] %vm57, %v56
    %s59 = scalar_lea.vmem %s0, 6
    %v60 = vld [vmem:[%s59] sm:$0x1]
    %61 = vrot.lane.b32.xlu0 %v60, 48
    %v62 = vpop.permute.xlu0 %61
    %vm63 = vcmask 458112
    %64 = vst.msk [vmem:[#allocation0] sm:$0x1] %vm63, %v62
    %s65 = scalar_lea.vmem %s0, 5
    %v66 = vld [vmem:[%s65] sm:$0x1]
    %67 = vrot.lane.b32.xlu0 %v66, 40
    %v68 = vpop.permute.xlu0 %67
    %vm69 = vcmask 392512
    %70 = vst.msk [vmem:[#allocation0] sm:$0x1] %vm69, %v68
    %s71 = scalar_lea.vmem %s0, 4
    %v72 = vld [vmem:[%s71] sm:$0x1]
    %73 = vrot.lane.b32.xlu0 %v72, 32
    %v74 = vpop.permute.xlu0 %73
    %vm75 = vcmask 326912
    %76 = vst.msk [vmem:[#allocation0] sm:$0x1] %vm75, %v74
    %s77 = scalar_lea.vmem %s0, 3
    %v78 = vld [vmem:[%s77] sm:$0x1]
    %79 = vrot.lane.b32.xlu0 %v78, 24
    %v80 = vpop.permute.xlu0 %79
    %vm81 = vcmask 261312
    %82 = vst.msk [vmem:[#allocation0] sm:$0x1] %vm81, %v80
    %s83 = scalar_lea.vmem %s0, 2
    %v84 = vld [vmem:[%s83] sm:$0x1]
    %85 = vrot.lane.b32.xlu0 %v84, 16
    %v86 = vpop.permute.xlu0 %85
    %vm87 = vcmask 195712
    %88 = vst.msk [vmem:[#allocation0] sm:$0x1] %vm87, %v86
    %s89 = scalar_lea.vmem %s0, 1
    %v90 = vld [vmem:[%s89] sm:$0x1]
    %91 = vrot.lane.b32.xlu0 %v90, 8
    %v92 = vpop.permute.xlu0 %91
    %vm93 = vcmask 130112
    %94 = vst.msk [vmem:[#allocation0] sm:$0x1] %vm93, %v92
    %s96 = ssub.s32 2, 1
    %v97 = vld [vmem:[#allocation0] sm:%s96]
    %s99 = ssub.s32 2, 1
    %100 = vst [vmem:[%s1] sm:%s99] %v97

// kernel: tile.68
$region0: #{tile.68}
  #allocation2 [shape = 's32[1]{0}', space=sflag, size = 0x4, scoped, tag = 'scoped memory for tile.68']
  %s0 = inlined_call_operand.hbm [shape: f32[3], index: 0, kind: input, shape index: {}]
  %s1 = inlined_call_operand.vmem [shape: f32[32,3], index: 1, kind: output, shape index: {}]
  $region1: #{tile.68} parent=0
    #allocation0 [shape = 'u8[512]{0}', space=vmem, size = 0x400, scoped, tag = 'operand span for operand 0']
    #allocation1 [shape = 's32[1]{0}', space=sflag, size = 0x4, scoped, tag = 'scoped memory for tile.68']
    %2 = vsyncpa [#allocation1], 0
    // Predicated region
    $region2: #{tile.68} parent=1 // pred_check
      _
    $region3: #{tile.68} parent=1 // pred_check_branch
      %4 = sbr.rel (0) target = $region5
    $region4: #{tile.68} parent=1 // pred_region
      %6 = vsyncadd [#allocation1], 0
      %s8 = sshll.u32 %s0, 4
      %s9 = int_to_ptr.hbm [resolvable:$true] %s8
      %s10 = sshll.u32 [#allocation0], 4
      %s11 = int_to_ptr.vmem [resolvable:$true] %s10
      %13 = dma.hbm_to_vmem [thread:$0]  %s9, 16, %s11, [#allocation1]
    $region5: #{tile.68} parent=1 // pred_fallthru
      _
    // Predicated region
    $region6: #{tile.68} parent=1 // pred_check
      _
    $region7: #{tile.68} parent=1 // pred_check_branch
      %15 = sbr.rel (0) target = $region9
    $region8: #{tile.68} parent=1 // pred_region
      %17 = dma.done [#allocation1], 16
    $region9: #{tile.68} parent=1 // pred_fallthru
      _
    %v18 = vld [vmem:[#allocation0] ss:$0 sm:$0xff]
    %19 = vst [vmem:[%s1] sm:$0xff] %v18
    %s20 = scalar_lea.vmem %s1, 8
    %21 = vst [vmem:[%s20] sm:$0xff] %v18
    %s22 = scalar_lea.vmem %s1, 16
    %23 = vst [vmem:[%s22] sm:$0xff] %v18
    %s24 = scalar_lea.vmem %s1, 24
    %25 = vst [vmem:[%s24] sm:$0xff] %v18
    %26 = vsyncpa [#allocation1], 1

// kernel: tile.69
$region0: #{tile.69}
  %s0 = inlined_call_operand.vmem [shape: f32[32,3], index: 0, kind: input, shape index: {}]
  %s1 = inlined_call_operand.vmem [shape: f32[96], index: 1, kind: output, shape index: {}]
  $region1: #{tile.69} parent=0
    #allocation0 [shape = 'u8[4096]{0}', space=vmem, size = 0x1000, scoped, tag = 'scoped mem for output reshape']
    %v2 = vld [vmem:[%s0] sm:$0x1]
    %vm3 = vcmask 23552
    %4 = vst.msk [vmem:[#allocation0] sm:$0x1] %vm3, %v2
    %s5 = scalar_lea.vmem %s0, 31
    %v6 = vld [vmem:[%s5] sm:$0x1]
    %7 = vrot.lane.b32.xlu0 %v6, 93
    %v8 = vpop.permute.xlu0 %7
    %vm9 = vcmask 786152
    %10 = vst.msk [vmem:[#allocation0] sm:$0x1] %vm9, %v8
    %s11 = scalar_lea.vmem %s0, 30
    %v12 = vld [vmem:[%s11] sm:$0x1]
    %13 = vrot.lane.b32.xlu0 %v12, 90
    %v14 = vpop.permute.xlu0 %13
    %vm15 = vcmask 761552
    %16 = vst.msk [vmem:[#allocation0] sm:$0x1] %vm15, %v14
    %s17 = scalar_lea.vmem %s0, 29
    %v18 = vld [vmem:[%s17] sm:$0x1]
    %19 = vrot.lane.b32.xlu0 %v18, 87
    %v20 = vpop.permute.xlu0 %19
    %vm21 = vcmask 736952
    %22 = vst.msk [vmem:[#allocation0] sm:$0x1] %vm21, %v20
    %s23 = scalar_lea.vmem %s0, 28
    %v24 = vld [vmem:[%s23] sm:$0x1]
    %25 = vrot.lane.b32.xlu0 %v24, 84
    %v26 = vpop.permute.xlu0 %25
    %vm27 = vcmask 712352
    %28 = vst.msk [vmem:[#allocation0] sm:$0x1] %vm27, %v26
    %s29 = scalar_lea.vmem %s0, 27
    %v30 = vld [vmem:[%s29] sm:$0x1]
    %31 = vrot.lane.b32.xlu0 %v30, 81
    %v32 = vpop.permute.xlu0 %31
    %vm33 = vcmask 687752
    %34 = vst.msk [vmem:[#allocation0] sm:$0x1] %vm33, %v32
    %s35 = scalar_lea.vmem %s0, 26
    %v36 = vld [vmem:[%s35] sm:$0x1]
    %37 = vrot.lane.b32.xlu0 %v36, 78
    %v38 = vpop.permute.xlu0 %37
    %vm39 = vcmask 663152
    %40 = vst.msk [vmem:[#allocation0] sm:$0x1] %vm39, %v38
    %s41 = scalar_lea.vmem %s0, 25
    %v42 = vld [vmem:[%s41] sm:$0x1]
    %43 = vrot.lane.b32.xlu0 %v42, 75
    %v44 = vpop.permute.xlu0 %43
    %vm45 = vcmask 638552
    %46 = vst.msk [vmem:[#allocation0] sm:$0x1] %vm45, %v44
    %s47 = scalar_lea.vmem %s0, 24
    %v48 = vld [vmem:[%s47] sm:$0x1]
    %49 = vrot.lane.b32.xlu0 %v48, 72
    %v50 = vpop.permute.xlu0 %49
    %vm51 = vcmask 613952
    %52 = vst.msk [vmem:[#allocation0] sm:$0x1] %vm51, %v50
    %s53 = scalar_lea.vmem %s0, 23
    %v54 = vld [vmem:[%s53] sm:$0x1]
    %55 = vrot.lane.b32.xlu0 %v54, 69
    %v56 = vpop.permute.xlu0 %55
    %vm57 = vcmask 589352
    %58 = vst.msk [vmem:[#allocation0] sm:$0x1] %vm57, %v56
    %s59 = scalar_lea.vmem %s0, 22
    %v60 = vld [vmem:[%s59] sm:$0x1]
    %61 = vrot.lane.b32.xlu0 %v60, 66
    %v62 = vpop.permute.xlu0 %61
    %vm63 = vcmask 564752
    %64 = vst.msk [vmem:[#allocation0] sm:$0x1] %vm63, %v62
    %s65 = scalar_lea.vmem %s0, 21
    %v66 = vld [vmem:[%s65] sm:$0x1]
    %67 = vrot.lane.b32.xlu0 %v66, 63
    %v68 = vpop.permute.xlu0 %67
    %vm69 = vcmask 540152
    %70 = vst.msk [vmem:[#allocation0] sm:$0x1] %vm69, %v68
    %s71 = scalar_lea.vmem %s0, 20
    %v72 = vld [vmem:[%s71] sm:$0x1]
    %73 = vrot.lane.b32.xlu0 %v72, 60
    %v74 = vpop.permute.xlu0 %73
    %vm75 = vcmask 515552
    %76 = vst.msk [vmem:[#allocation0] sm:$0x1] %vm75, %v74
    %s77 = scalar_lea.vmem %s0, 19
    %v78 = vld [vmem:[%s77] sm:$0x1]
    %79 = vrot.lane.b32.xlu0 %v78, 57
    %v80 = vpop.permute.xlu0 %79
    %vm81 = vcmask 490952
    %82 = vst.msk [vmem:[#allocation0] sm:$0x1] %vm81, %v80
    %s83 = scalar_lea.vmem %s0, 18
    %v84 = vld [vmem:[%s83] sm:$0x1]
    %85 = vrot.lane.b32.xlu0 %v84, 54
    %v86 = vpop.permute.xlu0 %85
    %vm87 = vcmask 466352
    %88 = vst.msk [vmem:[#allocation0] sm:$0x1] %vm87, %v86
    %s89 = scalar_lea.vmem %s0, 17
    %v90 = vld [vmem:[%s89] sm:$0x1]
    %91 = vrot.lane.b32.xlu0 %v90, 51
    %v92 = vpop.permute.xlu0 %91
    %vm93 = vcmask 441752
    %94 = vst.msk [vmem:[#allocation0] sm:$0x1] %vm93, %v92
    %s95 = scalar_lea.vmem %s0, 16
    %v96 = vld [vmem:[%s95] sm:$0x1]
    %97 = vrot.lane.b32.xlu0 %v96, 48
    %v98 = vpop.permute.xlu0 %97
    %vm99 = vcmask 417152
    %100 = vst.msk [vmem:[#allocation0] sm:$0x1] %vm99, %v98
    %s101 = scalar_lea.vmem %s0, 15
    %v102 = vld [vmem:[%s101] sm:$0x1]
    %103 = vrot.lane.b32.xlu0 %v102, 45
    %v104 = vpop.permute.xlu0 %103
    %vm105 = vcmask 392552
    %106 = vst.msk [vmem:[#allocation0] sm:$0x1] %vm105, %v104
    %s107 = scalar_lea.vmem %s0, 14
    %v108 = vld [vmem:[%s107] sm:$0x1]
    %109 = vrot.lane.b32.xlu0 %v108, 42
    %v110 = vpop.permute.xlu0 %109
    %vm111 = vcmask 367952
    %112 = vst.msk [vmem:[#allocation0] sm:$0x1] %vm111, %v110
    %s113 = scalar_lea.vmem %s0, 13
    %v114 = vld [vmem:[%s113] sm:$0x1]
    %115 = vrot.lane.b32.xlu0 %v114, 39
    %v116 = vpop.permute.xlu0 %115
    %vm117 = vcmask 343352
    %118 = vst.msk [vmem:[#allocation0] sm:$0x1] %vm117, %v116
    %s119 = scalar_lea.vmem %s0, 12
    %v120 = vld [vmem:[%s119] sm:$0x1]
    %121 = vrot.lane.b32.xlu0 %v120, 36
    %v122 = vpop.permute.xlu0 %121
    %vm123 = vcmask 318752
    %124 = vst.msk [vmem:[#allocation0] sm:$0x1] %vm123, %v122
    %s125 = scalar_lea.vmem %s0, 11
    %v126 = vld [vmem:[%s125] sm:$0x1]
    %127 = vrot.lane.b32.xlu0 %v126, 33
    %v128 = vpop.permute.xlu0 %127
    %vm129 = vcmask 294152
    %130 = vst.msk [vmem:[#allocation0] sm:$0x1] %vm129, %v128
    %s131 = scalar_lea.vmem %s0, 10
    %v132 = vld [vmem:[%s131] sm:$0x1]
    %133 = vrot.lane.b32.xlu0 %v132, 30
    %v134 = vpop.permute.xlu0 %133
    %vm135 = vcmask 269552
    %136 = vst.msk [vmem:[#allocation0] sm:$0x1] %vm135, %v134
    %s137 = scalar_lea.vmem %s0, 9
    %v138 = vld [vmem:[%s137] sm:$0x1]
    %139 = vrot.lane.b32.xlu0 %v138, 27
    %v140 = vpop.permute.xlu0 %139
    %vm141 = vcmask 244952
    %142 = vst.msk [vmem:[#allocation0] sm:$0x1] %vm141, %v140
    %s143 = scalar_lea.vmem %s0, 8
    %v144 = vld [vmem:[%s143] sm:$0x1]
    %145 = vrot.lane.b32.xlu0 %v144, 24
    %v146 = vpop.permute.xlu0 %145
    %vm147 = vcmask 220352
    %148 = vst.msk [vmem:[#allocation0] sm:$0x1] %vm147, %v146
    %s149 = scalar_lea.vmem %s0, 7
    %v150 = vld [vmem:[%s149] sm:$0x1]
    %151 = vrot.lane.b32.xlu0 %v150, 21
    %v152 = vpop.permute.xlu0 %151
    %vm153 = vcmask 195752
    %154 = vst.msk [vmem:[#allocation0] sm:$0x1] %vm153, %v152
    %s155 = scalar_lea.vmem %s0, 6
    %v156 = vld [vmem:[%s155] sm:$0x1]
    %157 = vrot.lane.b32.xlu0 %v156, 18
    %v158 = vpop.permute.xlu0 %157
    %vm159 = vcmask 171152
    %160 = vst.msk [vmem:[#allocation0] sm:$0x1] %vm159, %v158
    %s161 = scalar_lea.vmem %s0, 5
    %v162 = vld [vmem:[%s161] sm:$0x1]
    %163 = vrot.lane.b32.xlu0 %v162, 15
    %v164 = vpop.permute.xlu0 %163
    %vm165 = vcmask 146552
    %166 = vst.msk [vmem:[#allocation0] sm:$0x1] %vm165, %v164
    %s167 = scalar_lea.vmem %s0, 4
    %v168 = vld [vmem:[%s167] sm:$0x1]
    %169 = vrot.lane.b32.xlu0 %v168, 12
    %v170 = vpop.permute.xlu0 %169
    %vm171 = vcmask 121952
    %172 = vst.msk [vmem:[#allocation0] sm:$0x1] %vm171, %v170
    %s173 = scalar_lea.vmem %s0, 3
    %v174 = vld [vmem:[%s173] sm:$0x1]
    %175 = vrot.lane.b32.xlu0 %v174, 9
    %v176 = vpop.permute.xlu0 %175
    %vm177 = vcmask 97352
    %178 = vst.msk [vmem:[#allocation0] sm:$0x1] %vm177, %v176
    %s179 = scalar_lea.vmem %s0, 2
    %v180 = vld [vmem:[%s179] sm:$0x1]
    %181 = vrot.lane.b32.xlu0 %v180, 6
    %v182 = vpop.permute.xlu0 %181
    %vm183 = vcmask 72752
    %184 = vst.msk [vmem:[#allocation0] sm:$0x1] %vm183, %v182
    %s185 = scalar_lea.vmem %s0, 1
    %v186 = vld [vmem:[%s185] sm:$0x1]
    %187 = vrot.lane.b32.xlu0 %v186, 3
    %v188 = vpop.permute.xlu0 %187
    %vm189 = vcmask 48152
    %190 = vst.msk [vmem:[#allocation0] sm:$0x1] %vm189, %v188
    %s192 = ssub.s32 2, 1
    %v193 = vld [vmem:[#allocation0] sm:%s192]
    %s195 = ssub.s32 2, 1
    %196 = vst [vmem:[%s1] sm:%s195] %v193

// kernel: single_network_forward.1
$region0: #{single_network_forward.1}
  #allocation0 [shape = 'u32[]', space=smem, size = 0x4, offset = 0x4, fixed_abs, tag = 'smem constant byte address 0x4 - core index']
  #allocation1 [shape = 'u32[72,128]{1,0:T(1,128)}', space=vmem, size = 0x9000, scoped, tag = 'internal scratch']
  %s0 = inlined_call_operand.vmem [shape: f32[2,16,48], index: 0, kind: input, shape index: {}]
  %s1 = inlined_call_operand.vmem [shape: bf16[48,384], index: 1, kind: input, shape index: {}]
  %s2 = inlined_call_operand.vmem [shape: f32[1,128], index: 2, kind: input, shape index: {}]
  %s3 = inlined_call_operand.vmem [shape: bf16[5,128,384], index: 3, kind: input, shape index: {}]
  %s4 = inlined_call_operand.vmem [shape: f32[5,1,128], index: 4, kind: input, shape index: {}]
  %s5 = inlined_call_operand.vmem [shape: bf16[128,1536], index: 5, kind: input, shape index: {}]
  %s6 = inlined_call_operand.vmem [shape: f32[1,512], index: 6, kind: input, shape index: {}]
  %s7 = inlined_call_operand.vmem [shape: bf16[256,384], index: 7, kind: input, shape index: {}]
  %s8 = inlined_call_operand.vmem [shape: f32[1,128], index: 8, kind: input, shape index: {}]
  %s9 = inlined_call_operand.vmem [shape: f32[2,2,16,128], index: 9, kind: output, shape index: {}]
  %s10 = sld [smem:[#allocation0]]
  $region69: #{single_network_forward.1} parent=0
    _
  %s12 = ssub.s32 1, %s10
  %s13 = scalar_select 0, %s12, %s10
  loop: start=0, step=1, limit=4
  $region2: #{single_network_forward.1} parent=0 // loop_pre_header
    _
  $region3: #{single_network_forward.1} parent=0 // loop_header
    %s15 = sphi 0, %s19
    %p16 = scmp.ge.s32.totalorder %s15, 4
    %s25 = sphi 0, %s27
    %s28 = sphi 0, %s25
    %s29 = sphi 0, %s28
    %s45 = sphi 0, %s29
    %s49 = sphi 0, %s49
    %s51 = sphi 0, %s49
    %s52 = sphi 0, %s51
    %s66 = sphi 0, %s52
    %s70 = sphi 0, %s70
    %s72 = sphi 0, %s70
    %s73 = sphi 0, %s72
    %s87 = sphi 0, %s73
    %s91 = sphi 0, %s91
    %s93 = sphi 0, %s91
    %s94 = sphi 0, %s93
    %s108 = sphi 0, %s94
    %s112 = sphi 0, %s112
    %s114 = sphi 0, %s112
    %s115 = sphi 0, %s114
    %s129 = sphi 0, %s115
    %s133 = sphi 0, %s133
    %s135 = sphi 0, %s133
    %s136 = sphi 0, %s135
    %s150 = sphi 0, %s136
    %s154 = sphi 0, %s154
    %s156 = sphi 0, %s154
    %s157 = sphi 0, %s156
    %s171 = sphi 0, %s157
    %s175 = sphi 0, %s175
    %s177 = sphi 0, %s175
    %s178 = sphi 0, %s177
    %s192 = sphi 0, %s178
    %s196 = sphi 0, %s196
    %s198 = sphi 0, %s196
    %s199 = sphi 0, %s198
    %s213 = sphi 0, %s199
    %s219 = sphi 0, %s221
    %s222 = sphi 0, %s219
    %s223 = sphi 0, %s222
    %s239 = sphi 0, %s223
  $region4: #{single_network_forward.1} parent=0 // loop_header_branch
    %18 = sbr.rel (%p16) target = $region8
  $region5: #{single_network_forward.1} parent=0 // loop_body
    %s20 = ssub.s32 %s15, 1
    %s21 = ssub.s32 %s15, 2
    %s22 = sadd.s32 %s15, 1
    %s23 = ssub.s32 %s15, %s22
    %p24 = scmp.eq.s32.totalorder %s23, 0
    %s26 = sadd.s32 %s25, 1
    %s27 = scalar_select %p24, %s25, %s26
    %p30 = pneg %p24
    %p31 = scmp.eq.s32.totalorder %s15, 1
    %p32 = por %p30, %p31
    %p33 = scmp.ne.s32.totalorder %s25, %s28
    %p34 = scmp.eq.s32.totalorder %s15, 0
    %p35 = por %p33, %p34
    %p36 = scmp.ne.s32.totalorder %s25, %s28
    %p37 = scmp.eq.s32.totalorder %s20, 1
    %p38 = por %p36, %p37
    %p39 = scmp.ne.s32.totalorder %s28, %s29
    %p40 = scmp.eq.s32.totalorder %s20, 0
    %p41 = por %p39, %p40
    %p42 = scmp.ne.s32.totalorder %s28, %s29
    %p43 = scmp.eq.s32.totalorder %s21, 1
    %p44 = por %p42, %p43
    %p46 = scmp.ne.s32.totalorder %s29, %s45
    %p47 = scmp.eq.s32.totalorder %s21, 0
    %p48 = por %p46, %p47
    %s50 = sadd.s32 %s49, 1
    %p53 = scmp.eq.s32.totalorder %s15, 1
    %p54 = scmp.ne.s32.totalorder %s49, %s51
    %p55 = scmp.eq.s32.totalorder %s15, 0
    %p56 = por %p54, %p55
    %p57 = scmp.ne.s32.totalorder %s49, %s51
    %p58 = scmp.eq.s32.totalorder %s20, 1
    %p59 = por %p57, %p58
    %p60 = scmp.ne.s32.totalorder %s51, %s52
    %p61 = scmp.eq.s32.totalorder %s20, 0
    %p62 = por %p60, %p61
    %p63 = scmp.ne.s32.totalorder %s51, %s52
    %p64 = scmp.eq.s32.totalorder %s21, 1
    %p65 = por %p63, %p64
    %p67 = scmp.ne.s32.totalorder %s52, %s66
    %p68 = scmp.eq.s32.totalorder %s21, 0
    %p69 = por %p67, %p68
    %s71 = sadd.s32 %s70, 1
    %p74 = scmp.eq.s32.totalorder %s15, 1
    %p75 = scmp.ne.s32.totalorder %s70, %s72
    %p76 = scmp.eq.s32.totalorder %s15, 0
    %p77 = por %p75, %p76
    %p78 = scmp.ne.s32.totalorder %s70, %s72
    %p79 = scmp.eq.s32.totalorder %s20, 1
    %p80 = por %p78, %p79
    %p81 = scmp.ne.s32.totalorder %s72, %s73
    %p82 = scmp.eq.s32.totalorder %s20, 0
    %p83 = por %p81, %p82
    %p84 = scmp.ne.s32.totalorder %s72, %s73
    %p85 = scmp.eq.s32.totalorder %s21, 1
    %p86 = por %p84, %p85
    %p88 = scmp.ne.s32.totalorder %s73, %s87
    %p89 = scmp.eq.s32.totalorder %s21, 0
    %p90 = por %p88, %p89
    %s92 = sadd.s32 %s91, 1
    %p95 = scmp.eq.s32.totalorder %s15, 1
    %p96 = scmp.ne.s32.totalorder %s91, %s93
    %p97 = scmp.eq.s32.totalorder %s15, 0
    %p98 = por %p96, %p97
    %p99 = scmp.ne.s32.totalorder %s91, %s93
    %p100 = scmp.eq.s32.totalorder %s20, 1
    %p101 = por %p99, %p100
    %p102 = scmp.ne.s32.totalorder %s93, %s94
    %p103 = scmp.eq.s32.totalorder %s20, 0
    %p104 = por %p102, %p103
    %p105 = scmp.ne.s32.totalorder %s93, %s94
    %p106 = scmp.eq.s32.totalorder %s21, 1
    %p107 = por %p105, %p106
    %p109 = scmp.ne.s32.totalorder %s94, %s108
    %p110 = scmp.eq.s32.totalorder %s21, 0
    %p111 = por %p109, %p110
    %s113 = sadd.s32 %s112, 1
    %p116 = scmp.eq.s32.totalorder %s15, 1
    %p117 = scmp.ne.s32.totalorder %s112, %s114
    %p118 = scmp.eq.s32.totalorder %s15, 0
    %p119 = por %p117, %p118
    %p120 = scmp.ne.s32.totalorder %s112, %s114
    %p121 = scmp.eq.s32.totalorder %s20, 1
    %p122 = por %p120, %p121
    %p123 = scmp.ne.s32.totalorder %s114, %s115
    %p124 = scmp.eq.s32.totalorder %s20, 0
    %p125 = por %p123, %p124
    %p126 = scmp.ne.s32.totalorder %s114, %s115
    %p127 = scmp.eq.s32.totalorder %s21, 1
    %p128 = por %p126, %p127
    %p130 = scmp.ne.s32.totalorder %s115, %s129
    %p131 = scmp.eq.s32.totalorder %s21, 0
    %p132 = por %p130, %p131
    %s134 = sadd.s32 %s133, 1
    %p137 = scmp.eq.s32.totalorder %s15, 1
    %p138 = scmp.ne.s32.totalorder %s133, %s135
    %p139 = scmp.eq.s32.totalorder %s15, 0
    %p140 = por %p138, %p139
    %p141 = scmp.ne.s32.totalorder %s133, %s135
    %p142 = scmp.eq.s32.totalorder %s20, 1
    %p143 = por %p141, %p142
    %p144 = scmp.ne.s32.totalorder %s135, %s136
    %p145 = scmp.eq.s32.totalorder %s20, 0
    %p146 = por %p144, %p145
    %p147 = scmp.ne.s32.totalorder %s135, %s136
    %p148 = scmp.eq.s32.totalorder %s21, 1
    %p149 = por %p147, %p148
    %p151 = scmp.ne.s32.totalorder %s136, %s150
    %p152 = scmp.eq.s32.totalorder %s21, 0
    %p153 = por %p151, %p152
    %s155 = sadd.s32 %s154, 1
    %p158 = scmp.eq.s32.totalorder %s15, 1
    %p159 = scmp.ne.s32.totalorder %s154, %s156
    %p160 = scmp.eq.s32.totalorder %s15, 0
    %p161 = por %p159, %p160
    %p162 = scmp.ne.s32.totalorder %s154, %s156
    %p163 = scmp.eq.s32.totalorder %s20, 1
    %p164 = por %p162, %p163
    %p165 = scmp.ne.s32.totalorder %s156, %s157
    %p166 = scmp.eq.s32.totalorder %s20, 0
    %p167 = por %p165, %p166
    %p168 = scmp.ne.s32.totalorder %s156, %s157
    %p169 = scmp.eq.s32.totalorder %s21, 1
    %p170 = por %p168, %p169
    %p172 = scmp.ne.s32.totalorder %s157, %s171
    %p173 = scmp.eq.s32.totalorder %s21, 0
    %p174 = por %p172, %p173
    %s176 = sadd.s32 %s175, 1
    %p179 = scmp.eq.s32.totalorder %s15, 1
    %p180 = scmp.ne.s32.totalorder %s175, %s177
    %p181 = scmp.eq.s32.totalorder %s15, 0
    %p182 = por %p180, %p181
    %p183 = scmp.ne.s32.totalorder %s175, %s177
    %p184 = scmp.eq.s32.totalorder %s20, 1
    %p185 = por %p183, %p184
    %p186 = scmp.ne.s32.totalorder %s177, %s178
    %p187 = scmp.eq.s32.totalorder %s20, 0
    %p188 = por %p186, %p187
    %p189 = scmp.ne.s32.totalorder %s177, %s178
    %p190 = scmp.eq.s32.totalorder %s21, 1
    %p191 = por %p189, %p190
    %p193 = scmp.ne.s32.totalorder %s178, %s192
    %p194 = scmp.eq.s32.totalorder %s21, 0
    %p195 = por %p193, %p194
    %s197 = sadd.s32 %s196, 1
    %p200 = scmp.eq.s32.totalorder %s15, 1
    %p201 = scmp.ne.s32.totalorder %s196, %s198
    %p202 = scmp.eq.s32.totalorder %s15, 0
    %p203 = por %p201, %p202
    %p204 = scmp.ne.s32.totalorder %s196, %s198
    %p205 = scmp.eq.s32.totalorder %s20, 1
    %p206 = por %p204, %p205
    %p207 = scmp.ne.s32.totalorder %s198, %s199
    %p208 = scmp.eq.s32.totalorder %s20, 0
    %p209 = por %p207, %p208
    %p210 = scmp.ne.s32.totalorder %s198, %s199
    %p211 = scmp.eq.s32.totalorder %s21, 1
    %p212 = por %p210, %p211
    %p214 = scmp.ne.s32.totalorder %s199, %s213
    %p215 = scmp.eq.s32.totalorder %s21, 0
    %p216 = por %p214, %p215
    %s217 = ssub.s32 %s15, %s22
    %p218 = scmp.eq.s32.totalorder %s217, 0
    %s220 = sadd.s32 %s219, 1
    %s221 = scalar_select %p218, %s219, %s220
    %p224 = pneg %p218
    %p225 = scmp.eq.s32.totalorder %s15, 1
    %p226 = por %p224, %p225
    %p227 = scmp.ne.s32.totalorder %s219, %s222
    %p228 = scmp.eq.s32.totalorder %s15, 0
    %p229 = por %p227, %p228
    %p230 = scmp.ne.s32.totalorder %s219, %s222
    %p231 = scmp.eq.s32.totalorder %s20, 1
    %p232 = por %p230, %p231
    %p233 = scmp.ne.s32.totalorder %s222, %s223
    %p234 = scmp.eq.s32.totalorder %s20, 0
    %p235 = por %p233, %p234
    %p236 = scmp.ne.s32.totalorder %s222, %s223
    %p237 = scmp.eq.s32.totalorder %s21, 1
    %p238 = por %p236, %p237
    %p240 = scmp.ne.s32.totalorder %s223, %s239
    %p241 = scmp.eq.s32.totalorder %s21, 0
    %p242 = por %p240, %p241
    %p243 = scmp.le.s32.totalorder 1, %s15
    %p244 = scmp.lt.s32.totalorder %s15, 3
    %p245 = pnand %p243, %p244
    %p246 = pneg %p245
    // Predicated region
    $region9: #{single_network_forward.1} parent=5 // pred_check
      _
    $region10: #{single_network_forward.1} parent=5 // pred_check_branch
      %248 = sbr.rel (%p245) target = $region12
    $region11: #{single_network_forward.1} parent=5 // pred_region
      %s249 = ssub.s32 %s15, 1
      // Predicated region
      $region13: #{single_network_forward.1} parent=11 // pred_check
        %p250 = pneg %p62
      $region14: #{single_network_forward.1} parent=11 // pred_check_branch
        %252 = sbr.rel (%p250) target = $region16
      $region15: #{single_network_forward.1} parent=11 // pred_region
        _
      $region16: #{single_network_forward.1} parent=11 // pred_fallthru
        _
      // Predicated region
      $region17: #{single_network_forward.1} parent=11 // pred_check
        %p253 = pneg %p83
      $region18: #{single_network_forward.1} parent=11 // pred_check_branch
        %255 = sbr.rel (%p253) target = $region20
      $region19: #{single_network_forward.1} parent=11 // pred_region
        _
      $region20: #{single_network_forward.1} parent=11 // pred_fallthru
        _
      // Predicated region
      $region21: #{single_network_forward.1} parent=11 // pred_check
        %p256 = pneg %p104
      $region22: #{single_network_forward.1} parent=11 // pred_check_branch
        %258 = sbr.rel (%p256) target = $region24
      $region23: #{single_network_forward.1} parent=11 // pred_region
        _
      $region24: #{single_network_forward.1} parent=11 // pred_fallthru
        _
      // Predicated region
      $region25: #{single_network_forward.1} parent=11 // pred_check
        %p259 = pneg %p125
      $region26: #{single_network_forward.1} parent=11 // pred_check_branch
        %261 = sbr.rel (%p259) target = $region28
      $region27: #{single_network_forward.1} parent=11 // pred_region
        _
      $region28: #{single_network_forward.1} parent=11 // pred_fallthru
        _
      // Predicated region
      $region29: #{single_network_forward.1} parent=11 // pred_check
        %p262 = pneg %p146
      $region30: #{single_network_forward.1} parent=11 // pred_check_branch
        %264 = sbr.rel (%p262) target = $region32
      $region31: #{single_network_forward.1} parent=11 // pred_region
        _
      $region32: #{single_network_forward.1} parent=11 // pred_fallthru
        _
      // Predicated region
      $region33: #{single_network_forward.1} parent=11 // pred_check
        %p265 = pneg %p167
      $region34: #{single_network_forward.1} parent=11 // pred_check_branch
        %267 = sbr.rel (%p265) target = $region36
      $region35: #{single_network_forward.1} parent=11 // pred_region
        _
      $region36: #{single_network_forward.1} parent=11 // pred_fallthru
        _
      // Predicated region
      $region37: #{single_network_forward.1} parent=11 // pred_check
        %p268 = pneg %p188
      $region38: #{single_network_forward.1} parent=11 // pred_check_branch
        %270 = sbr.rel (%p268) target = $region40
      $region39: #{single_network_forward.1} parent=11 // pred_region
        _
      $region40: #{single_network_forward.1} parent=11 // pred_fallthru
        _
      // Predicated region
      $region41: #{single_network_forward.1} parent=11 // pred_check
        %p271 = pneg %p209
      $region42: #{single_network_forward.1} parent=11 // pred_check_branch
        %273 = sbr.rel (%p271) target = $region44
      $region43: #{single_network_forward.1} parent=11 // pred_region
        _
      $region44: #{single_network_forward.1} parent=11 // pred_fallthru
        _
    $region12: #{single_network_forward.1} parent=5 // pred_fallthru
      _
    %p274 = scmp.lt.s32.totalorder %s15, 2
    // Predicated region
    $region45: #{single_network_forward.1} parent=5 // pred_check
      %p275 = pneg %p274
    $region46: #{single_network_forward.1} parent=5 // pred_check_branch
      %277 = sbr.rel (%p275) target = $region48
    $region47: #{single_network_forward.1} parent=5 // pred_region
      // Predicated region
      $region49: #{single_network_forward.1} parent=47 // pred_check
        %p278 = pneg %p35
      $region50: #{single_network_forward.1} parent=47 // pred_check_branch
        %280 = sbr.rel (%p278) target = $region52
      $region51: #{single_network_forward.1} parent=47 // pred_region
        %p281 = scmp.lt.s32.totalorder %s15, 1
        %s282 = scalar_select %p281, %s15, 1
        %s283 = smul.addr %s282, 2
        %s284 = smul.addr %s283, 8
        %s285 = scalar_lea.vmem %s0, %s284
      $region52: #{single_network_forward.1} parent=47 // pred_fallthru
        _
    $region48: #{single_network_forward.1} parent=5 // pred_fallthru
      _
    %p286 = scmp.le.s32.totalorder 1, %s15
    %p287 = scmp.lt.s32.totalorder %s15, 3
    %p288 = pnand %p286, %p287
    %p289 = pneg %p288
    // Predicated region
    $region53: #{single_network_forward.1} parent=5 // pred_check
      _
    $region54: #{single_network_forward.1} parent=5 // pred_check_branch
      %291 = sbr.rel (%p288) target = $region56
    $region55: #{single_network_forward.1} parent=5 // pred_region
      %s292 = ssub.s32 %s15, 1
      %p293 = scmp.lt.s32.totalorder %s20, 1
      %s294 = scalar_select %p293, %s20, 1
      %s295 = smul.addr %s294, 2
      %s296 = smul.addr %s295, 8
      %s297 = scalar_lea.vmem %s0, %s296
      %p298 = pneg %p41
      %p299 = pneg %p38
      %p300 = pneg %p62
      %p301 = pneg %p59
      %p302 = pneg %p83
      %p303 = pneg %p80
      %p304 = pneg %p104
      %p305 = pneg %p101
      %p306 = pneg %p125
      %p307 = pneg %p122
      %p308 = pneg %p146
      %p309 = pneg %p143
      %p310 = pneg %p167
      %p311 = pneg %p164
      %p312 = pneg %p188
      %p313 = pneg %p185
      %p314 = pneg %p209
      %p315 = pneg %p206
      %p316 = pneg %p235
      %p317 = pneg %p232
      %p318 = scmp.lt.s32.totalorder %s20, 1
      %s319 = scalar_select %p318, %s20, 1
      %s320 = smul.addr %s319, 4
      %s321 = smul.addr %s320, 8
      %s322 = scalar_lea.vmem %s9, %s321
      %p323 = scmp.lt.s32.totalorder %s20, 1
      %s324 = scalar_select %p323, %s20, 1
      %s325 = smul.addr %s324, 2
      %s326 = smul.addr %s325, 8
      %s327 = scalar_lea.vmem %s0, %s326
      %p328 = scmp.lt.s32.totalorder %s20, 1
      %s329 = scalar_select %p328, %s20, 1
      %s330 = smul.addr %s329, 4
      %s331 = smul.addr %s330, 8
      %s332 = scalar_lea.vmem %s9, %s331
      %v334 = vld [vmem:[%s327] sm:$0xff]
      %v335 = vld [vmem:[%s327 + $0x8] sm:$0xff]
      %v336 = vld [vmem:[%s1] sm:$0xff]
      %v337 = vld [vmem:[%s1 + $0x8] sm:$0xf]
      %v338 = vld [vmem:[%s1 + $0xc] sm:$0xff]
      %v339 = vld [vmem:[%s1 + $0x14] sm:$0xf]
      %v340 = vld [vmem:[%s1 + $0x18] sm:$0xff]
      %v341 = vld [vmem:[%s1 + $0x20] sm:$0xf]
      %v342 = vld [vmem:[%s1 + $0x24] sm:$0xff]
      %v343 = vld [vmem:[%s1 + $0x2c] sm:$0xf]
      %v344 = vld [vmem:[%s1 + $0x30] sm:$0xff]
      %v345 = vld [vmem:[%s1 + $0x38] sm:$0xf]
      %v346 = vld [vmem:[%s1 + $0x3c] sm:$0xff]
      %v347 = vld [vmem:[%s1 + $0x44] sm:$0xf]
      %v348 = vld [vmem:[%s2] sm:$0x1]
      %v349 = vpack.c.bf16 %v335, %v334
      %v362 = vunpack.c.l.b16 %v336
      %v363 = vunpack.c.h.b16 %v336
      %v364 = vunpack.c.l.b16 %v337
      %v365 = vunpack.c.l.b16 %v338
      %v366 = vunpack.c.h.b16 %v338
      %v367 = vunpack.c.l.b16 %v339
      %v368 = vunpack.c.l.b16 %v340
      %v369 = vunpack.c.h.b16 %v340
      %v370 = vunpack.c.l.b16 %v341
      %v371 = vunpack.c.l.b16 %v342
      %v372 = vunpack.c.h.b16 %v342
      %v373 = vunpack.c.l.b16 %v343
      %v374 = vunpack.c.l.b16 %v344
      %v375 = vunpack.c.h.b16 %v344
      %v376 = vunpack.c.l.b16 %v345
      %v377 = vunpack.c.l.b16 %v346
      %v378 = vunpack.c.h.b16 %v346
      %v379 = vunpack.c.l.b16 %v347
      %v380 = vpack.c.b16 %v365, %v362
      %v381 = vpack.c.b16 %v366, %v363
      %v382 = vpack.c.b16 %v367, %v364
      %v383 = vpack.c.b16 %v371, %v368
      %v384 = vpack.c.b16 %v372, %v369
      %v385 = vpack.c.b16 %v373, %v370
      %v386 = vpack.c.b16 %v377, %v374
      %v387 = vpack.c.b16 %v378, %v375
      %v388 = vpack.c.b16 %v379, %v376
      %vm398 = vcmask 392192
      %v400 = vsel %vm398, %v349, 0
      %402 = vmatpush.bf16.msra.mxu0 0
      %403 = vmatpush.bf16.msra.mxu0 0
      %404 = vmatpush.bf16.msra.mxu0 0
      %405 = vmatpush.bf16.msra.mxu0 0
      %406 = vmatpush.bf16.msra.mxu0 0
      %407 = vmatpush.bf16.msra.mxu0 %v386
      %408 = vmatpush.bf16.msra.mxu0 %v383
      %409 = vmatpush.bf16.msra.mxu0 %v380
      %410 = vmatmul.bf16.gmra.mxu0 %v400
      %v411 = vpop.f32.mrf.mxu0
      %v412 = vadd.f32 0.0, %v411
      %v413 = vpop.f32.mrf.mxu0
      %v414 = vadd.f32 0.0, %v413
      %415 = vdwg.mxu0
      %416 = vmatpush.bf16.msra.mxu0 0
      %417 = vmatpush.bf16.msra.mxu0 0
      %418 = vmatpush.bf16.msra.mxu0 0
      %419 = vmatpush.bf16.msra.mxu0 0
      %420 = vmatpush.bf16.msra.mxu0 0
      %421 = vmatpush.bf16.msra.mxu0 %v387
      %422 = vmatpush.bf16.msra.mxu0 %v384
      %423 = vmatpush.bf16.msra.mxu0 %v381
      %424 = vmatmul.bf16.gmra.mxu0 %v400
      %v425 = vpop.f32.mrf.mxu0
      %v426 = vadd.f32 0.0, %v425
      %v427 = vpop.f32.mrf.mxu0
      %v428 = vadd.f32 0.0, %v427
      %429 = vdwg.mxu0
      %430 = vmatpush.bf16.msra.mxu0 0
      %431 = vmatpush.bf16.msra.mxu0 0
      %432 = vmatpush.bf16.msra.mxu0 0
      %433 = vmatpush.bf16.msra.mxu0 0
      %434 = vmatpush.bf16.msra.mxu0 0
      %435 = vmatpush.bf16.msra.mxu0 %v388
      %436 = vmatpush.bf16.msra.mxu0 %v385
      %437 = vmatpush.bf16.msra.mxu0 %v382
      %438 = vmatmul.bf16.gmra.mxu0 %v400
      %v439 = vpop.f32.mrf.mxu0
      %v440 = vadd.f32 0.0, %v439
      %v441 = vpop.f32.mrf.mxu0
      %v442 = vadd.f32 0.0, %v441
      %443 = vdwg.mxu0
      %v444 = vlaneseq
      %v445 = vshrl.u32 %v444, 7
      %v446 = vadd.s32 %v445, 8
      %vm447 = vcmp.eq.s32.totalorder %v445, 0
      %vm448 = vcmp.eq.s32.totalorder %v446, 0
      %v449 = vrot.slane %v412, 7
      %v450 = vrot.slane %v414, 7
      %vm451 = vcmp.lt.s32.totalorder %v445, 1
      %v452 = vsel %vm451, %v449, %v450
      %v453 = vsel %vm451, %v450, %v449
      %v454 = vsel %vm447, 0.0, %v453
      %v455 = vsel %vm448, 0.0, %v452
      %v456 = vadd.f32 %v454, %v426
      %v457 = vadd.f32 %v455, %v428
      %vm458 = vcmp.eq.s32.totalorder %v445, 15
      %vm459 = vcmp.eq.s32.totalorder %v446, 15
      %v460 = vrot.slane %v440, 1
      %v461 = vrot.slane %v442, 1
      %vm462 = vcmp.lt.s32.totalorder %v445, 7
      %v463 = vsel %vm462, %v460, %v461
      %v464 = vsel %vm462, %v461, %v460
      %v465 = vsel %vm458, 0.0, %v463
      %v466 = vsel %vm459, 0.0, %v464
      %v467 = vadd.f32 %v456, %v465
      %v468 = vadd.f32 %v457, %v466
      %v470 = vperm.slane %v348, 0
      %v472 = vadd.f32 %v467, %v470
      %v473 = vadd.f32 %v468, %v470
      %v474 = vld [vmem:[%s3] sm:$0xff]
      %v475 = vld [vmem:[%s3 + $0x8] sm:$0xf]
      %v476 = vld [vmem:[%s3 + $0xc] sm:$0xff]
      %v477 = vld [vmem:[%s3 + $0x14] sm:$0xf]
      %v478 = vld [vmem:[%s3 + $0x18] sm:$0xff]
      %v479 = vld [vmem:[%s3 + $0x20] sm:$0xf]
      %v480 = vld [vmem:[%s3 + $0x24] sm:$0xff]
      %v481 = vld [vmem:[%s3 + $0x2c] sm:$0xf]
      %v482 = vld [vmem:[%s3 + $0x30] sm:$0xff]
      %v483 = vld [vmem:[%s3 + $0x38] sm:$0xf]
      %v484 = vld [vmem:[%s3 + $0x3c] sm:$0xff]
      %v485 = vld [vmem:[%s3 + $0x44] sm:$0xf]
      %v486 = vld [vmem:[%s3 + $0x48] sm:$0xff]
      %v487 = vld [vmem:[%s3 + $0x50] sm:$0xf]
      %v488 = vld [vmem:[%s3 + $0x54] sm:$0xff]
      %v489 = vld [vmem:[%s3 + $0x5c] sm:$0xf]
      %v490 = vld [vmem:[%s3 + $0x60] sm:$0xff]
      %v491 = vld [vmem:[%s3 + $0x68] sm:$0xf]
      %v492 = vld [vmem:[%s3 + $0x6c] sm:$0xff]
      %v493 = vld [vmem:[%s3 + $0x74] sm:$0xf]
      %v494 = vld [vmem:[%s3 + $0x78] sm:$0xff]
      %v495 = vld [vmem:[%s3 + $0x80] sm:$0xf]
      %v496 = vld [vmem:[%s3 + $0x84] sm:$0xff]
      %v497 = vld [vmem:[%s3 + $0x8c] sm:$0xf]
      %v498 = vld [vmem:[%s3 + $0x90] sm:$0xff]
      %v499 = vld [vmem:[%s3 + $0x98] sm:$0xf]
      %v500 = vld [vmem:[%s3 + $0x9c] sm:$0xff]
      %v501 = vld [vmem:[%s3 + $0xa4] sm:$0xf]
      %v502 = vld [vmem:[%s3 + $0xa8] sm:$0xff]
      %v503 = vld [vmem:[%s3 + $0xb0] sm:$0xf]
      %v504 = vld [vmem:[%s3 + $0xb4] sm:$0xff]
      %v505 = vld [vmem:[%s3 + $0xbc] sm:$0xf]
      %v506 = vld [vmem:[%s4] sm:$0x1]
      %v507 = vpack.c.bf16 %v473, %v472
      %v540 = vunpack.c.l.b16 %v474
      %v541 = vunpack.c.h.b16 %v474
      %v542 = vunpack.c.l.b16 %v475
      %v543 = vunpack.c.l.b16 %v476
      %v544 = vunpack.c.h.b16 %v476
      %v545 = vunpack.c.l.b16 %v477
      %v546 = vunpack.c.l.b16 %v478
      %v547 = vunpack.c.h.b16 %v478
      %v548 = vunpack.c.l.b16 %v479
      %v549 = vunpack.c.l.b16 %v480
      %v550 = vunpack.c.h.b16 %v480
      %v551 = vunpack.c.l.b16 %v481
      %v552 = vunpack.c.l.b16 %v482
      %v553 = vunpack.c.h.b16 %v482
      %v554 = vunpack.c.l.b16 %v483
      %v555 = vunpack.c.l.b16 %v484
      %v556 = vunpack.c.h.b16 %v484
      %v557 = vunpack.c.l.b16 %v485
      %v558 = vunpack.c.l.b16 %v486
      %v559 = vunpack.c.h.b16 %v486
      %v560 = vunpack.c.l.b16 %v487
      %v561 = vunpack.c.l.b16 %v488
      %v562 = vunpack.c.h.b16 %v488
      %v563 = vunpack.c.l.b16 %v489
      %v564 = vunpack.c.l.b16 %v490
      %v565 = vunpack.c.h.b16 %v490
      %v566 = vunpack.c.l.b16 %v491
      %v567 = vunpack.c.l.b16 %v492
      %v568 = vunpack.c.h.b16 %v492
      %v569 = vunpack.c.l.b16 %v493
      %v570 = vunpack.c.l.b16 %v494
      %v571 = vunpack.c.h.b16 %v494
      %v572 = vunpack.c.l.b16 %v495
      %v573 = vunpack.c.l.b16 %v496
      %v574 = vunpack.c.h.b16 %v496
      %v575 = vunpack.c.l.b16 %v497
      %v576 = vunpack.c.l.b16 %v498
      %v577 = vunpack.c.h.b16 %v498
      %v578 = vunpack.c.l.b16 %v499
      %v579 = vunpack.c.l.b16 %v500
      %v580 = vunpack.c.h.b16 %v500
      %v581 = vunpack.c.l.b16 %v501
      %v582 = vunpack.c.l.b16 %v502
      %v583 = vunpack.c.h.b16 %v502
      %v584 = vunpack.c.l.b16 %v503
      %v585 = vunpack.c.l.b16 %v504
      %v586 = vunpack.c.h.b16 %v504
      %v587 = vunpack.c.l.b16 %v505
      %v588 = vpack.c.b16 %v543, %v540
      %v589 = vpack.c.b16 %v544, %v541
      %v590 = vpack.c.b16 %v545, %v542
      %v591 = vpack.c.b16 %v549, %v546
      %v592 = vpack.c.b16 %v550, %v547
      %v593 = vpack.c.b16 %v551, %v548
      %v594 = vpack.c.b16 %v555, %v552
      %v595 = vpack.c.b16 %v556, %v553
      %v596 = vpack.c.b16 %v557, %v554
      %v597 = vpack.c.b16 %v561, %v558
      %v598 = vpack.c.b16 %v562, %v559
      %v599 = vpack.c.b16 %v563, %v560
      %v600 = vpack.c.b16 %v567, %v564
      %v601 = vpack.c.b16 %v568, %v565
      %v602 = vpack.c.b16 %v569, %v566
      %v603 = vpack.c.b16 %v573, %v570
      %v604 = vpack.c.b16 %v574, %v571
      %v605 = vpack.c.b16 %v575, %v572
      %v606 = vpack.c.b16 %v579, %v576
      %v607 = vpack.c.b16 %v580, %v577
      %v608 = vpack.c.b16 %v581, %v578
      %v609 = vpack.c.b16 %v585, %v582
      %v610 = vpack.c.b16 %v586, %v583
      %v611 = vpack.c.b16 %v587, %v584
      %636 = vmatpush.bf16.msra.mxu0 %v609
      %637 = vmatpush.bf16.msra.mxu0 %v606
      %638 = vmatpush.bf16.msra.mxu0 %v603
      %639 = vmatpush.bf16.msra.mxu0 %v600
      %640 = vmatpush.bf16.msra.mxu0 %v597
      %641 = vmatpush.bf16.msra.mxu0 %v594
      %642 = vmatpush.bf16.msra.mxu0 %v591
      %643 = vmatpush.bf16.msra.mxu0 %v588
      %644 = vmatmul.bf16.gmra.mxu0 %v507
      %v645 = vpop.f32.mrf.mxu0
      %v646 = vadd.f32 0.0, %v645
      %v647 = vpop.f32.mrf.mxu0
      %v648 = vadd.f32 0.0, %v647
      %649 = vdwg.mxu0
      %650 = vmatpush.bf16.msra.mxu0 %v610
      %651 = vmatpush.bf16.msra.mxu0 %v607
      %652 = vmatpush.bf16.msra.mxu0 %v604
      %653 = vmatpush.bf16.msra.mxu0 %v601
      %654 = vmatpush.bf16.msra.mxu0 %v598
      %655 = vmatpush.bf16.msra.mxu0 %v595
      %656 = vmatpush.bf16.msra.mxu0 %v592
      %657 = vmatpush.bf16.msra.mxu0 %v589
      %658 = vmatmul.bf16.gmra.mxu0 %v507
      %v659 = vpop.f32.mrf.mxu0
      %v660 = vadd.f32 0.0, %v659
      %v661 = vpop.f32.mrf.mxu0
      %v662 = vadd.f32 0.0, %v661
      %663 = vdwg.mxu0
      %664 = vmatpush.bf16.msra.mxu0 %v611
      %665 = vmatpush.bf16.msra.mxu0 %v608
      %666 = vmatpush.bf16.msra.mxu0 %v605
      %667 = vmatpush.bf16.msra.mxu0 %v602
      %668 = vmatpush.bf16.msra.mxu0 %v599
      %669 = vmatpush.bf16.msra.mxu0 %v596
      %670 = vmatpush.bf16.msra.mxu0 %v593
      %671 = vmatpush.bf16.msra.mxu0 %v590
      %672 = vmatmul.bf16.gmra.mxu0 %v507
      %v673 = vpop.f32.mrf.mxu0
      %v674 = vadd.f32 0.0, %v673
      %v675 = vpop.f32.mrf.mxu0
      %v676 = vadd.f32 0.0, %v675
      %677 = vdwg.mxu0
      %v678 = vrot.slane %v646, 7
      %v679 = vrot.slane %v648, 7
      %v680 = vsel %vm451, %v678, %v679
      %v681 = vsel %vm451, %v679, %v678
      %v682 = vsel %vm447, 0.0, %v681
      %v683 = vsel %vm448, 0.0, %v680
      %v684 = vadd.f32 %v682, %v660
      %v685 = vadd.f32 %v683, %v662
      %v686 = vrot.slane %v674, 1
      %v687 = vrot.slane %v676, 1
      %v688 = vsel %vm462, %v686, %v687
      %v689 = vsel %vm462, %v687, %v686
      %v690 = vsel %vm458, 0.0, %v688
      %v691 = vsel %vm459, 0.0, %v689
      %v692 = vadd.f32 %v684, %v690
      %v693 = vadd.f32 %v685, %v691
      %v695 = vperm.slane %v506, 0
      %v697 = vadd.f32 %v692, %v695
      %v698 = vadd.f32 %v693, %v695
      %v699 = vmax.f32 %v697, 0.0
      %v700 = vmax.f32 %v698, 0.0
      %s701 = scalar_lea.vmem %s3, 192
      %v702 = vld [vmem:[%s701] sm:$0xff]
      %v703 = vld [vmem:[%s701 + $0x8] sm:$0xf]
      %v704 = vld [vmem:[%s701 + $0xc] sm:$0xff]
      %v705 = vld [vmem:[%s701 + $0x14] sm:$0xf]
      %v706 = vld [vmem:[%s701 + $0x18] sm:$0xff]
      %v707 = vld [vmem:[%s701 + $0x20] sm:$0xf]
      %v708 = vld [vmem:[%s701 + $0x24] sm:$0xff]
      %v709 = vld [vmem:[%s701 + $0x2c] sm:$0xf]
      %v710 = vld [vmem:[%s701 + $0x30] sm:$0xff]
      %v711 = vld [vmem:[%s701 + $0x38] sm:$0xf]
      %v712 = vld [vmem:[%s701 + $0x3c] sm:$0xff]
      %v713 = vld [vmem:[%s701 + $0x44] sm:$0xf]
      %v714 = vld [vmem:[%s701 + $0x48] sm:$0xff]
      %v715 = vld [vmem:[%s701 + $0x50] sm:$0xf]
      %v716 = vld [vmem:[%s701 + $0x54] sm:$0xff]
      %v717 = vld [vmem:[%s701 + $0x5c] sm:$0xf]
      %v718 = vld [vmem:[%s701 + $0x60] sm:$0xff]
      %v719 = vld [vmem:[%s701 + $0x68] sm:$0xf]
      %v720 = vld [vmem:[%s701 + $0x6c] sm:$0xff]
      %v721 = vld [vmem:[%s701 + $0x74] sm:$0xf]
      %v722 = vld [vmem:[%s701 + $0x78] sm:$0xff]
      %v723 = vld [vmem:[%s701 + $0x80] sm:$0xf]
      %v724 = vld [vmem:[%s701 + $0x84] sm:$0xff]
      %v725 = vld [vmem:[%s701 + $0x8c] sm:$0xf]
      %v726 = vld [vmem:[%s701 + $0x90] sm:$0xff]
      %v727 = vld [vmem:[%s701 + $0x98] sm:$0xf]
      %v728 = vld [vmem:[%s701 + $0x9c] sm:$0xff]
      %v729 = vld [vmem:[%s701 + $0xa4] sm:$0xf]
      %v730 = vld [vmem:[%s701 + $0xa8] sm:$0xff]
      %v731 = vld [vmem:[%s701 + $0xb0] sm:$0xf]
      %v732 = vld [vmem:[%s701 + $0xb4] sm:$0xff]
      %v733 = vld [vmem:[%s701 + $0xbc] sm:$0xf]
      %s734 = scalar_lea.vmem %s4, 1
      %v735 = vld [vmem:[%s734] sm:$0x1]
      %v736 = vpack.c.bf16 %v700, %v699
      %v769 = vunpack.c.l.b16 %v702
      %v770 = vunpack.c.h.b16 %v702
      %v771 = vunpack.c.l.b16 %v703
      %v772 = vunpack.c.l.b16 %v704
      %v773 = vunpack.c.h.b16 %v704
      %v774 = vunpack.c.l.b16 %v705
      %v775 = vunpack.c.l.b16 %v706
      %v776 = vunpack.c.h.b16 %v706
      %v777 = vunpack.c.l.b16 %v707
      %v778 = vunpack.c.l.b16 %v708
      %v779 = vunpack.c.h.b16 %v708
      %v780 = vunpack.c.l.b16 %v709
      %v781 = vunpack.c.l.b16 %v710
      %v782 = vunpack.c.h.b16 %v710
      %v783 = vunpack.c.l.b16 %v711
      %v784 = vunpack.c.l.b16 %v712
      %v785 = vunpack.c.h.b16 %v712
      %v786 = vunpack.c.l.b16 %v713
      %v787 = vunpack.c.l.b16 %v714
      %v788 = vunpack.c.h.b16 %v714
      %v789 = vunpack.c.l.b16 %v715
      %v790 = vunpack.c.l.b16 %v716
      %v791 = vunpack.c.h.b16 %v716
      %v792 = vunpack.c.l.b16 %v717
      %v793 = vunpack.c.l.b16 %v718
      %v794 = vunpack.c.h.b16 %v718
      %v795 = vunpack.c.l.b16 %v719
      %v796 = vunpack.c.l.b16 %v720
      %v797 = vunpack.c.h.b16 %v720
      %v798 = vunpack.c.l.b16 %v721
      %v799 = vunpack.c.l.b16 %v722
      %v800 = vunpack.c.h.b16 %v722
      %v801 = vunpack.c.l.b16 %v723
      %v802 = vunpack.c.l.b16 %v724
      %v803 = vunpack.c.h.b16 %v724
      %v804 = vunpack.c.l.b16 %v725
      %v805 = vunpack.c.l.b16 %v726
      %v806 = vunpack.c.h.b16 %v726
      %v807 = vunpack.c.l.b16 %v727
      %v808 = vunpack.c.l.b16 %v728
      %v809 = vunpack.c.h.b16 %v728
      %v810 = vunpack.c.l.b16 %v729
      %v811 = vunpack.c.l.b16 %v730
      %v812 = vunpack.c.h.b16 %v730
      %v813 = vunpack.c.l.b16 %v731
      %v814 = vunpack.c.l.b16 %v732
      %v815 = vunpack.c.h.b16 %v732
      %v816 = vunpack.c.l.b16 %v733
      %v817 = vpack.c.b16 %v772, %v769
      %v818 = vpack.c.b16 %v773, %v770
      %v819 = vpack.c.b16 %v774, %v771
      %v820 = vpack.c.b16 %v778, %v775
      %v821 = vpack.c.b16 %v779, %v776
      %v822 = vpack.c.b16 %v780, %v777
      %v823 = vpack.c.b16 %v784, %v781
      %v824 = vpack.c.b16 %v785, %v782
      %v825 = vpack.c.b16 %v786, %v783
      %v826 = vpack.c.b16 %v790, %v787
      %v827 = vpack.c.b16 %v791, %v788
      %v828 = vpack.c.b16 %v792, %v789
      %v829 = vpack.c.b16 %v796, %v793
      %v830 = vpack.c.b16 %v797, %v794
      %v831 = vpack.c.b16 %v798, %v795
      %v832 = vpack.c.b16 %v802, %v799
      %v833 = vpack.c.b16 %v803, %v800
      %v834 = vpack.c.b16 %v804, %v801
      %v835 = vpack.c.b16 %v808, %v805
      %v836 = vpack.c.b16 %v809, %v806
      %v837 = vpack.c.b16 %v810, %v807
      %v838 = vpack.c.b16 %v814, %v811
      %v839 = vpack.c.b16 %v815, %v812
      %v840 = vpack.c.b16 %v816, %v813
      %865 = vmatpush.bf16.msra.mxu0 %v838
      %866 = vmatpush.bf16.msra.mxu0 %v835
      %867 = vmatpush.bf16.msra.mxu0 %v832
      %868 = vmatpush.bf16.msra.mxu0 %v829
      %869 = vmatpush.bf16.msra.mxu0 %v826
      %870 = vmatpush.bf16.msra.mxu0 %v823
      %871 = vmatpush.bf16.msra.mxu0 %v820
      %872 = vmatpush.bf16.msra.mxu0 %v817
      %873 = vmatmul.bf16.gmra.mxu0 %v736
      %v874 = vpop.f32.mrf.mxu0
      %v875 = vadd.f32 0.0, %v874
      %v876 = vpop.f32.mrf.mxu0
      %v877 = vadd.f32 0.0, %v876
      %878 = vdwg.mxu0
      %879 = vmatpush.bf16.msra.mxu0 %v839
      %880 = vmatpush.bf16.msra.mxu0 %v836
      %881 = vmatpush.bf16.msra.mxu0 %v833
      %882 = vmatpush.bf16.msra.mxu0 %v830
      %883 = vmatpush.bf16.msra.mxu0 %v827
      %884 = vmatpush.bf16.msra.mxu0 %v824
      %885 = vmatpush.bf16.msra.mxu0 %v821
      %886 = vmatpush.bf16.msra.mxu0 %v818
      %887 = vmatmul.bf16.gmra.mxu0 %v736
      %v888 = vpop.f32.mrf.mxu0
      %v889 = vadd.f32 0.0, %v888
      %v890 = vpop.f32.mrf.mxu0
      %v891 = vadd.f32 0.0, %v890
      %892 = vdwg.mxu0
      %893 = vmatpush.bf16.msra.mxu0 %v840
      %894 = vmatpush.bf16.msra.mxu0 %v837
      %895 = vmatpush.bf16.msra.mxu0 %v834
      %896 = vmatpush.bf16.msra.mxu0 %v831
      %897 = vmatpush.bf16.msra.mxu0 %v828
      %898 = vmatpush.bf16.msra.mxu0 %v825
      %899 = vmatpush.bf16.msra.mxu0 %v822
      %900 = vmatpush.bf16.msra.mxu0 %v819
      %901 = vmatmul.bf16.gmra.mxu0 %v736
      %v902 = vpop.f32.mrf.mxu0
      %v903 = vadd.f32 0.0, %v902
      %v904 = vpop.f32.mrf.mxu0
      %v905 = vadd.f32 0.0, %v904
      %906 = vdwg.mxu0
      %v907 = vrot.slane %v875, 7
      %v908 = vrot.slane %v877, 7
      %v909 = vsel %vm451, %v907, %v908
      %v910 = vsel %vm451, %v908, %v907
      %v911 = vsel %vm447, 0.0, %v910
      %v912 = vsel %vm448, 0.0, %v909
      %v913 = vadd.f32 %v911, %v889
      %v914 = vadd.f32 %v912, %v891
      %v915 = vrot.slane %v903, 1
      %v916 = vrot.slane %v905, 1
      %v917 = vsel %vm462, %v915, %v916
      %v918 = vsel %vm462, %v916, %v915
      %v919 = vsel %vm458, 0.0, %v917
      %v920 = vsel %vm459, 0.0, %v918
      %v921 = vadd.f32 %v913, %v919
      %v922 = vadd.f32 %v914, %v920
      %v924 = vperm.slane %v735, 0
      %v926 = vadd.f32 %v921, %v924
      %v927 = vadd.f32 %v922, %v924
      %v928 = vadd.f32 %v926, %v472
      %v929 = vadd.f32 %v927, %v473
      %s930 = scalar_lea.vmem %s3, 384
      %v931 = vld [vmem:[%s930] sm:$0xff]
      %v932 = vld [vmem:[%s930 + $0x8] sm:$0xf]
      %v933 = vld [vmem:[%s930 + $0xc] sm:$0xff]
      %v934 = vld [vmem:[%s930 + $0x14] sm:$0xf]
      %v935 = vld [vmem:[%s930 + $0x18] sm:$0xff]
      %v936 = vld [vmem:[%s930 + $0x20] sm:$0xf]
      %v937 = vld [vmem:[%s930 + $0x24] sm:$0xff]
      %v938 = vld [vmem:[%s930 + $0x2c] sm:$0xf]
      %v939 = vld [vmem:[%s930 + $0x30] sm:$0xff]
      %v940 = vld [vmem:[%s930 + $0x38] sm:$0xf]
      %v941 = vld [vmem:[%s930 + $0x3c] sm:$0xff]
      %v942 = vld [vmem:[%s930 + $0x44] sm:$0xf]
      %v943 = vld [vmem:[%s930 + $0x48] sm:$0xff]
      %v944 = vld [vmem:[%s930 + $0x50] sm:$0xf]
      %v945 = vld [vmem:[%s930 + $0x54] sm:$0xff]
      %v946 = vld [vmem:[%s930 + $0x5c] sm:$0xf]
      %v947 = vld [vmem:[%s930 + $0x60] sm:$0xff]
      %v948 = vld [vmem:[%s930 + $0x68] sm:$0xf]
      %v949 = vld [vmem:[%s930 + $0x6c] sm:$0xff]
      %v950 = vld [vmem:[%s930 + $0x74] sm:$0xf]
      %v951 = vld [vmem:[%s930 + $0x78] sm:$0xff]
      %v952 = vld [vmem:[%s930 + $0x80] sm:$0xf]
      %v953 = vld [vmem:[%s930 + $0x84] sm:$0xff]
      %v954 = vld [vmem:[%s930 + $0x8c] sm:$0xf]
      %v955 = vld [vmem:[%s930 + $0x90] sm:$0xff]
      %v956 = vld [vmem:[%s930 + $0x98] sm:$0xf]
      %v957 = vld [vmem:[%s930 + $0x9c] sm:$0xff]
      %v958 = vld [vmem:[%s930 + $0xa4] sm:$0xf]
      %v959 = vld [vmem:[%s930 + $0xa8] sm:$0xff]
      %v960 = vld [vmem:[%s930 + $0xb0] sm:$0xf]
      %v961 = vld [vmem:[%s930 + $0xb4] sm:$0xff]
      %v962 = vld [vmem:[%s930 + $0xbc] sm:$0xf]
      %s963 = scalar_lea.vmem %s4, 2
      %v964 = vld [vmem:[%s963] sm:$0x1]
      %v965 = vpack.c.bf16 %v929, %v928
      %v998 = vunpack.c.l.b16 %v931
      %v999 = vunpack.c.h.b16 %v931
      %v1000 = vunpack.c.l.b16 %v932
      %v1001 = vunpack.c.l.b16 %v933
      %v1002 = vunpack.c.h.b16 %v933
      %v1003 = vunpack.c.l.b16 %v934
      %v1004 = vunpack.c.l.b16 %v935
      %v1005 = vunpack.c.h.b16 %v935
      %v1006 = vunpack.c.l.b16 %v936
      %v1007 = vunpack.c.l.b16 %v937
      %v1008 = vunpack.c.h.b16 %v937
      %v1009 = vunpack.c.l.b16 %v938
      %v1010 = vunpack.c.l.b16 %v939
      %v1011 = vunpack.c.h.b16 %v939
      %v1012 = vunpack.c.l.b16 %v940
      %v1013 = vunpack.c.l.b16 %v941
      %v1014 = vunpack.c.h.b16 %v941
      %v1015 = vunpack.c.l.b16 %v942
      %v1016 = vunpack.c.l.b16 %v943
      %v1017 = vunpack.c.h.b16 %v943
      %v1018 = vunpack.c.l.b16 %v944
      %v1019 = vunpack.c.l.b16 %v945
      %v1020 = vunpack.c.h.b16 %v945
      %v1021 = vunpack.c.l.b16 %v946
      %v1022 = vunpack.c.l.b16 %v947
      %v1023 = vunpack.c.h.b16 %v947
      %v1024 = vunpack.c.l.b16 %v948
      %v1025 = vunpack.c.l.b16 %v949
      %v1026 = vunpack.c.h.b16 %v949
      %v1027 = vunpack.c.l.b16 %v950
      %v1028 = vunpack.c.l.b16 %v951
      %v1029 = vunpack.c.h.b16 %v951
      %v1030 = vunpack.c.l.b16 %v952
      %v1031 = vunpack.c.l.b16 %v953
      %v1032 = vunpack.c.h.b16 %v953
      %v1033 = vunpack.c.l.b16 %v954
      %v1034 = vunpack.c.l.b16 %v955
      %v1035 = vunpack.c.h.b16 %v955
      %v1036 = vunpack.c.l.b16 %v956
      %v1037 = vunpack.c.l.b16 %v957
      %v1038 = vunpack.c.h.b16 %v957
      %v1039 = vunpack.c.l.b16 %v958
      %v1040 = vunpack.c.l.b16 %v959
      %v1041 = vunpack.c.h.b16 %v959
      %v1042 = vunpack.c.l.b16 %v960
      %v1043 = vunpack.c.l.b16 %v961
      %v1044 = vunpack.c.h.b16 %v961
      %v1045 = vunpack.c.l.b16 %v962
      %v1046 = vpack.c.b16 %v1001, %v998
      %v1047 = vpack.c.b16 %v1002, %v999
      %v1048 = vpack.c.b16 %v1003, %v1000
      %v1049 = vpack.c.b16 %v1007, %v1004
      %v1050 = vpack.c.b16 %v1008, %v1005
      %v1051 = vpack.c.b16 %v1009, %v1006
      %v1052 = vpack.c.b16 %v1013, %v1010
      %v1053 = vpack.c.b16 %v1014, %v1011
      %v1054 = vpack.c.b16 %v1015, %v1012
      %v1055 = vpack.c.b16 %v1019, %v1016
      %v1056 = vpack.c.b16 %v1020, %v1017
      %v1057 = vpack.c.b16 %v1021, %v1018
      %v1058 = vpack.c.b16 %v1025, %v1022
      %v1059 = vpack.c.b16 %v1026, %v1023
      %v1060 = vpack.c.b16 %v1027, %v1024
      %v1061 = vpack.c.b16 %v1031, %v1028
      %v1062 = vpack.c.b16 %v1032, %v1029
      %v1063 = vpack.c.b16 %v1033, %v1030
      %v1064 = vpack.c.b16 %v1037, %v1034
      %v1065 = vpack.c.b16 %v1038, %v1035
      %v1066 = vpack.c.b16 %v1039, %v1036
      %v1067 = vpack.c.b16 %v1043, %v1040
      %v1068 = vpack.c.b16 %v1044, %v1041
      %v1069 = vpack.c.b16 %v1045, %v1042
      %1094 = vmatpush.bf16.msra.mxu0 %v1067
      %1095 = vmatpush.bf16.msra.mxu0 %v1064
      %1096 = vmatpush.bf16.msra.mxu0 %v1061
      %1097 = vmatpush.bf16.msra.mxu0 %v1058
      %1098 = vmatpush.bf16.msra.mxu0 %v1055
      %1099 = vmatpush.bf16.msra.mxu0 %v1052
      %1100 = vmatpush.bf16.msra.mxu0 %v1049
      %1101 = vmatpush.bf16.msra.mxu0 %v1046
      %1102 = vmatmul.bf16.gmra.mxu0 %v965
      %v1103 = vpop.f32.mrf.mxu0
      %v1104 = vadd.f32 0.0, %v1103
      %v1105 = vpop.f32.mrf.mxu0
      %v1106 = vadd.f32 0.0, %v1105
      %1107 = vdwg.mxu0
      %1108 = vmatpush.bf16.msra.mxu0 %v1068
      %1109 = vmatpush.bf16.msra.mxu0 %v1065
      %1110 = vmatpush.bf16.msra.mxu0 %v1062
      %1111 = vmatpush.bf16.msra.mxu0 %v1059
      %1112 = vmatpush.bf16.msra.mxu0 %v1056
      %1113 = vmatpush.bf16.msra.mxu0 %v1053
      %1114 = vmatpush.bf16.msra.mxu0 %v1050
      %1115 = vmatpush.bf16.msra.mxu0 %v1047
      %1116 = vmatmul.bf16.gmra.mxu0 %v965
      %v1117 = vpop.f32.mrf.mxu0
      %v1118 = vadd.f32 0.0, %v1117
      %v1119 = vpop.f32.mrf.mxu0
      %v1120 = vadd.f32 0.0, %v1119
      %1121 = vdwg.mxu0
      %1122 = vmatpush.bf16.msra.mxu0 %v1069
      %1123 = vmatpush.bf16.msra.mxu0 %v1066
      %1124 = vmatpush.bf16.msra.mxu0 %v1063
      %1125 = vmatpush.bf16.msra.mxu0 %v1060
      %1126 = vmatpush.bf16.msra.mxu0 %v1057
      %1127 = vmatpush.bf16.msra.mxu0 %v1054
      %1128 = vmatpush.bf16.msra.mxu0 %v1051
      %1129 = vmatpush.bf16.msra.mxu0 %v1048
      %1130 = vmatmul.bf16.gmra.mxu0 %v965
      %v1131 = vpop.f32.mrf.mxu0
      %v1132 = vadd.f32 0.0, %v1131
      %v1133 = vpop.f32.mrf.mxu0
      %v1134 = vadd.f32 0.0, %v1133
      %1135 = vdwg.mxu0
      %v1136 = vrot.slane %v1104, 7
      %v1137 = vrot.slane %v1106, 7
      %v1138 = vsel %vm451, %v1136, %v1137
      %v1139 = vsel %vm451, %v1137, %v1136
      %v1140 = vsel %vm447, 0.0, %v1139
      %v1141 = vsel %vm448, 0.0, %v1138
      %v1142 = vadd.f32 %v1140, %v1118
      %v1143 = vadd.f32 %v1141, %v1120
      %v1144 = vrot.slane %v1132, 1
      %v1145 = vrot.slane %v1134, 1
      %v1146 = vsel %vm462, %v1144, %v1145
      %v1147 = vsel %vm462, %v1145, %v1144
      %v1148 = vsel %vm458, 0.0, %v1146
      %v1149 = vsel %vm459, 0.0, %v1147
      %v1150 = vadd.f32 %v1142, %v1148
      %v1151 = vadd.f32 %v1143, %v1149
      %v1153 = vperm.slane %v964, 0
      %v1155 = vadd.f32 %v1150, %v1153
      %v1156 = vadd.f32 %v1151, %v1153
      %v1157 = vmax.f32 %v1155, 0.0
      %v1158 = vmax.f32 %v1156, 0.0
      %s1159 = scalar_lea.vmem %s3, 576
      %v1160 = vld [vmem:[%s1159] sm:$0xff]
      %v1161 = vld [vmem:[%s1159 + $0x8] sm:$0xf]
      %v1162 = vld [vmem:[%s1159 + $0xc] sm:$0xff]
      %v1163 = vld [vmem:[%s1159 + $0x14] sm:$0xf]
      %v1164 = vld [vmem:[%s1159 + $0x18] sm:$0xff]
      %v1165 = vld [vmem:[%s1159 + $0x20] sm:$0xf]
      %v1166 = vld [vmem:[%s1159 + $0x24] sm:$0xff]
      %v1167 = vld [vmem:[%s1159 + $0x2c] sm:$0xf]
      %v1168 = vld [vmem:[%s1159 + $0x30] sm:$0xff]
      %v1169 = vld [vmem:[%s1159 + $0x38] sm:$0xf]
      %v1170 = vld [vmem:[%s1159 + $0x3c] sm:$0xff]
      %v1171 = vld [vmem:[%s1159 + $0x44] sm:$0xf]
      %v1172 = vld [vmem:[%s1159 + $0x48] sm:$0xff]
      %v1173 = vld [vmem:[%s1159 + $0x50] sm:$0xf]
      %v1174 = vld [vmem:[%s1159 + $0x54] sm:$0xff]
      %v1175 = vld [vmem:[%s1159 + $0x5c] sm:$0xf]
      %v1176 = vld [vmem:[%s1159 + $0x60] sm:$0xff]
      %v1177 = vld [vmem:[%s1159 + $0x68] sm:$0xf]
      %v1178 = vld [vmem:[%s1159 + $0x6c] sm:$0xff]
      %v1179 = vld [vmem:[%s1159 + $0x74] sm:$0xf]
      %v1180 = vld [vmem:[%s1159 + $0x78] sm:$0xff]
      %v1181 = vld [vmem:[%s1159 + $0x80] sm:$0xf]
      %v1182 = vld [vmem:[%s1159 + $0x84] sm:$0xff]
      %v1183 = vld [vmem:[%s1159 + $0x8c] sm:$0xf]
      %v1184 = vld [vmem:[%s1159 + $0x90] sm:$0xff]
      %v1185 = vld [vmem:[%s1159 + $0x98] sm:$0xf]
      %v1186 = vld [vmem:[%s1159 + $0x9c] sm:$0xff]
      %v1187 = vld [vmem:[%s1159 + $0xa4] sm:$0xf]
      %v1188 = vld [vmem:[%s1159 + $0xa8] sm:$0xff]
      %v1189 = vld [vmem:[%s1159 + $0xb0] sm:$0xf]
      %v1190 = vld [vmem:[%s1159 + $0xb4] sm:$0xff]
      %v1191 = vld [vmem:[%s1159 + $0xbc] sm:$0xf]
      %s1192 = scalar_lea.vmem %s4, 3
      %v1193 = vld [vmem:[%s1192] sm:$0x1]
      %v1194 = vpack.c.bf16 %v1158, %v1157
      %v1227 = vunpack.c.l.b16 %v1160
      %v1228 = vunpack.c.h.b16 %v1160
      %v1229 = vunpack.c.l.b16 %v1161
      %v1230 = vunpack.c.l.b16 %v1162
      %v1231 = vunpack.c.h.b16 %v1162
      %v1232 = vunpack.c.l.b16 %v1163
      %v1233 = vunpack.c.l.b16 %v1164
      %v1234 = vunpack.c.h.b16 %v1164
      %v1235 = vunpack.c.l.b16 %v1165
      %v1236 = vunpack.c.l.b16 %v1166
      %v1237 = vunpack.c.h.b16 %v1166
      %v1238 = vunpack.c.l.b16 %v1167
      %v1239 = vunpack.c.l.b16 %v1168
      %v1240 = vunpack.c.h.b16 %v1168
      %v1241 = vunpack.c.l.b16 %v1169
      %v1242 = vunpack.c.l.b16 %v1170
      %v1243 = vunpack.c.h.b16 %v1170
      %v1244 = vunpack.c.l.b16 %v1171
      %v1245 = vunpack.c.l.b16 %v1172
      %v1246 = vunpack.c.h.b16 %v1172
      %v1247 = vunpack.c.l.b16 %v1173
      %v1248 = vunpack.c.l.b16 %v1174
      %v1249 = vunpack.c.h.b16 %v1174
      %v1250 = vunpack.c.l.b16 %v1175
      %v1251 = vunpack.c.l.b16 %v1176
      %v1252 = vunpack.c.h.b16 %v1176
      %v1253 = vunpack.c.l.b16 %v1177
      %v1254 = vunpack.c.l.b16 %v1178
      %v1255 = vunpack.c.h.b16 %v1178
      %v1256 = vunpack.c.l.b16 %v1179
      %v1257 = vunpack.c.l.b16 %v1180
      %v1258 = vunpack.c.h.b16 %v1180
      %v1259 = vunpack.c.l.b16 %v1181
      %v1260 = vunpack.c.l.b16 %v1182
      %v1261 = vunpack.c.h.b16 %v1182
      %v1262 = vunpack.c.l.b16 %v1183
      %v1263 = vunpack.c.l.b16 %v1184
      %v1264 = vunpack.c.h.b16 %v1184
      %v1265 = vunpack.c.l.b16 %v1185
      %v1266 = vunpack.c.l.b16 %v1186
      %v1267 = vunpack.c.h.b16 %v1186
      %v1268 = vunpack.c.l.b16 %v1187
      %v1269 = vunpack.c.l.b16 %v1188
      %v1270 = vunpack.c.h.b16 %v1188
      %v1271 = vunpack.c.l.b16 %v1189
      %v1272 = vunpack.c.l.b16 %v1190
      %v1273 = vunpack.c.h.b16 %v1190
      %v1274 = vunpack.c.l.b16 %v1191
      %v1275 = vpack.c.b16 %v1230, %v1227
      %v1276 = vpack.c.b16 %v1231, %v1228
      %v1277 = vpack.c.b16 %v1232, %v1229
      %v1278 = vpack.c.b16 %v1236, %v1233
      %v1279 = vpack.c.b16 %v1237, %v1234
      %v1280 = vpack.c.b16 %v1238, %v1235
      %v1281 = vpack.c.b16 %v1242, %v1239
      %v1282 = vpack.c.b16 %v1243, %v1240
      %v1283 = vpack.c.b16 %v1244, %v1241
      %v1284 = vpack.c.b16 %v1248, %v1245
      %v1285 = vpack.c.b16 %v1249, %v1246
      %v1286 = vpack.c.b16 %v1250, %v1247
      %v1287 = vpack.c.b16 %v1254, %v1251
      %v1288 = vpack.c.b16 %v1255, %v1252
      %v1289 = vpack.c.b16 %v1256, %v1253
      %v1290 = vpack.c.b16 %v1260, %v1257
      %v1291 = vpack.c.b16 %v1261, %v1258
      %v1292 = vpack.c.b16 %v1262, %v1259
      %v1293 = vpack.c.b16 %v1266, %v1263
      %v1294 = vpack.c.b16 %v1267, %v1264
      %v1295 = vpack.c.b16 %v1268, %v1265
      %v1296 = vpack.c.b16 %v1272, %v1269
      %v1297 = vpack.c.b16 %v1273, %v1270
      %v1298 = vpack.c.b16 %v1274, %v1271
      %1323 = vmatpush.bf16.msra.mxu0 %v1296
      %1324 = vmatpush.bf16.msra.mxu0 %v1293
      %1325 = vmatpush.bf16.msra.mxu0 %v1290
      %1326 = vmatpush.bf16.msra.mxu0 %v1287
      %1327 = vmatpush.bf16.msra.mxu0 %v1284
      %1328 = vmatpush.bf16.msra.mxu0 %v1281
      %1329 = vmatpush.bf16.msra.mxu0 %v1278
      %1330 = vmatpush.bf16.msra.mxu0 %v1275
      %1331 = vmatmul.bf16.gmra.mxu0 %v1194
      %v1332 = vpop.f32.mrf.mxu0
      %v1333 = vadd.f32 0.0, %v1332
      %v1334 = vpop.f32.mrf.mxu0
      %v1335 = vadd.f32 0.0, %v1334
      %1336 = vdwg.mxu0
      %1337 = vmatpush.bf16.msra.mxu0 %v1297
      %1338 = vmatpush.bf16.msra.mxu0 %v1294
      %1339 = vmatpush.bf16.msra.mxu0 %v1291
      %1340 = vmatpush.bf16.msra.mxu0 %v1288
      %1341 = vmatpush.bf16.msra.mxu0 %v1285
      %1342 = vmatpush.bf16.msra.mxu0 %v1282
      %1343 = vmatpush.bf16.msra.mxu0 %v1279
      %1344 = vmatpush.bf16.msra.mxu0 %v1276
      %1345 = vmatmul.bf16.gmra.mxu0 %v1194
      %v1346 = vpop.f32.mrf.mxu0
      %v1347 = vadd.f32 0.0, %v1346
      %v1348 = vpop.f32.mrf.mxu0
      %v1349 = vadd.f32 0.0, %v1348
      %1350 = vdwg.mxu0
      %1351 = vmatpush.bf16.msra.mxu0 %v1298
      %1352 = vmatpush.bf16.msra.mxu0 %v1295
      %1353 = vmatpush.bf16.msra.mxu0 %v1292
      %1354 = vmatpush.bf16.msra.mxu0 %v1289
      %1355 = vmatpush.bf16.msra.mxu0 %v1286
      %1356 = vmatpush.bf16.msra.mxu0 %v1283
      %1357 = vmatpush.bf16.msra.mxu0 %v1280
      %1358 = vmatpush.bf16.msra.mxu0 %v1277
      %1359 = vmatmul.bf16.gmra.mxu0 %v1194
      %v1360 = vpop.f32.mrf.mxu0
      %v1361 = vadd.f32 0.0, %v1360
      %v1362 = vpop.f32.mrf.mxu0
      %v1363 = vadd.f32 0.0, %v1362
      %1364 = vdwg.mxu0
      %v1365 = vrot.slane %v1333, 7
      %v1366 = vrot.slane %v1335, 7
      %v1367 = vsel %vm451, %v1365, %v1366
      %v1368 = vsel %vm451, %v1366, %v1365
      %v1369 = vsel %vm447, 0.0, %v1368
      %v1370 = vsel %vm448, 0.0, %v1367
      %v1371 = vadd.f32 %v1369, %v1347
      %v1372 = vadd.f32 %v1370, %v1349
      %v1373 = vrot.slane %v1361, 1
      %v1374 = vrot.slane %v1363, 1
      %v1375 = vsel %vm462, %v1373, %v1374
      %v1376 = vsel %vm462, %v1374, %v1373
      %v1377 = vsel %vm458, 0.0, %v1375
      %v1378 = vsel %vm459, 0.0, %v1376
      %v1379 = vadd.f32 %v1371, %v1377
      %v1380 = vadd.f32 %v1372, %v1378
      %v1382 = vperm.slane %v1193, 0
      %v1384 = vadd.f32 %v1379, %v1382
      %v1385 = vadd.f32 %v1380, %v1382
      %v1386 = vadd.f32 %v1384, %v928
      %v1387 = vadd.f32 %v1385, %v929
      %s1388 = scalar_lea.vmem %s3, 768
      %v1389 = vld [vmem:[%s1388] sm:$0xff]
      %v1390 = vld [vmem:[%s1388 + $0x8] sm:$0xf]
      %v1391 = vld [vmem:[%s1388 + $0xc] sm:$0xff]
      %v1392 = vld [vmem:[%s1388 + $0x14] sm:$0xf]
      %v1393 = vld [vmem:[%s1388 + $0x18] sm:$0xff]
      %v1394 = vld [vmem:[%s1388 + $0x20] sm:$0xf]
      %v1395 = vld [vmem:[%s1388 + $0x24] sm:$0xff]
      %v1396 = vld [vmem:[%s1388 + $0x2c] sm:$0xf]
      %v1397 = vld [vmem:[%s1388 + $0x30] sm:$0xff]
      %v1398 = vld [vmem:[%s1388 + $0x38] sm:$0xf]
      %v1399 = vld [vmem:[%s1388 + $0x3c] sm:$0xff]
      %v1400 = vld [vmem:[%s1388 + $0x44] sm:$0xf]
      %v1401 = vld [vmem:[%s1388 + $0x48] sm:$0xff]
      %v1402 = vld [vmem:[%s1388 + $0x50] sm:$0xf]
      %v1403 = vld [vmem:[%s1388 + $0x54] sm:$0xff]
      %v1404 = vld [vmem:[%s1388 + $0x5c] sm:$0xf]
      %v1405 = vld [vmem:[%s1388 + $0x60] sm:$0xff]
      %v1406 = vld [vmem:[%s1388 + $0x68] sm:$0xf]
      %v1407 = vld [vmem:[%s1388 + $0x6c] sm:$0xff]
      %v1408 = vld [vmem:[%s1388 + $0x74] sm:$0xf]
      %v1409 = vld [vmem:[%s1388 + $0x78] sm:$0xff]
      %v1410 = vld [vmem:[%s1388 + $0x80] sm:$0xf]
      %v1411 = vld [vmem:[%s1388 + $0x84] sm:$0xff]
      %v1412 = vld [vmem:[%s1388 + $0x8c] sm:$0xf]
      %v1413 = vld [vmem:[%s1388 + $0x90] sm:$0xff]
      %v1414 = vld [vmem:[%s1388 + $0x98] sm:$0xf]
      %v1415 = vld [vmem:[%s1388 + $0x9c] sm:$0xff]
      %v1416 = vld [vmem:[%s1388 + $0xa4] sm:$0xf]
      %v1417 = vld [vmem:[%s1388 + $0xa8] sm:$0xff]
      %v1418 = vld [vmem:[%s1388 + $0xb0] sm:$0xf]
      %v1419 = vld [vmem:[%s1388 + $0xb4] sm:$0xff]
      %v1420 = vld [vmem:[%s1388 + $0xbc] sm:$0xf]
      %s1421 = scalar_lea.vmem %s4, 4
      %v1422 = vld [vmem:[%s1421] sm:$0x1]
      %v1423 = vpack.c.bf16 %v1387, %v1386
      %v1456 = vunpack.c.l.b16 %v1389
      %v1457 = vunpack.c.h.b16 %v1389
      %v1458 = vunpack.c.l.b16 %v1390
      %v1459 = vunpack.c.l.b16 %v1391
      %v1460 = vunpack.c.h.b16 %v1391
      %v1461 = vunpack.c.l.b16 %v1392
      %v1462 = vunpack.c.l.b16 %v1393
      %v1463 = vunpack.c.h.b16 %v1393
      %v1464 = vunpack.c.l.b16 %v1394
      %v1465 = vunpack.c.l.b16 %v1395
      %v1466 = vunpack.c.h.b16 %v1395
      %v1467 = vunpack.c.l.b16 %v1396
      %v1468 = vunpack.c.l.b16 %v1397
      %v1469 = vunpack.c.h.b16 %v1397
      %v1470 = vunpack.c.l.b16 %v1398
      %v1471 = vunpack.c.l.b16 %v1399
      %v1472 = vunpack.c.h.b16 %v1399
      %v1473 = vunpack.c.l.b16 %v1400
      %v1474 = vunpack.c.l.b16 %v1401
      %v1475 = vunpack.c.h.b16 %v1401
      %v1476 = vunpack.c.l.b16 %v1402
      %v1477 = vunpack.c.l.b16 %v1403
      %v1478 = vunpack.c.h.b16 %v1403
      %v1479 = vunpack.c.l.b16 %v1404
      %v1480 = vunpack.c.l.b16 %v1405
      %v1481 = vunpack.c.h.b16 %v1405
      %v1482 = vunpack.c.l.b16 %v1406
      %v1483 = vunpack.c.l.b16 %v1407
      %v1484 = vunpack.c.h.b16 %v1407
      %v1485 = vunpack.c.l.b16 %v1408
      %v1486 = vunpack.c.l.b16 %v1409
      %v1487 = vunpack.c.h.b16 %v1409
      %v1488 = vunpack.c.l.b16 %v1410
      %v1489 = vunpack.c.l.b16 %v1411
      %v1490 = vunpack.c.h.b16 %v1411
      %v1491 = vunpack.c.l.b16 %v1412
      %v1492 = vunpack.c.l.b16 %v1413
      %v1493 = vunpack.c.h.b16 %v1413
      %v1494 = vunpack.c.l.b16 %v1414
      %v1495 = vunpack.c.l.b16 %v1415
      %v1496 = vunpack.c.h.b16 %v1415
      %v1497 = vunpack.c.l.b16 %v1416
      %v1498 = vunpack.c.l.b16 %v1417
      %v1499 = vunpack.c.h.b16 %v1417
      %v1500 = vunpack.c.l.b16 %v1418
      %v1501 = vunpack.c.l.b16 %v1419
      %v1502 = vunpack.c.h.b16 %v1419
      %v1503 = vunpack.c.l.b16 %v1420
      %v1504 = vpack.c.b16 %v1459, %v1456
      %v1505 = vpack.c.b16 %v1460, %v1457
      %v1506 = vpack.c.b16 %v1461, %v1458
      %v1507 = vpack.c.b16 %v1465, %v1462
      %v1508 = vpack.c.b16 %v1466, %v1463
      %v1509 = vpack.c.b16 %v1467, %v1464
      %v1510 = vpack.c.b16 %v1471, %v1468
      %v1511 = vpack.c.b16 %v1472, %v1469
      %v1512 = vpack.c.b16 %v1473, %v1470
      %v1513 = vpack.c.b16 %v1477, %v1474
      %v1514 = vpack.c.b16 %v1478, %v1475
      %v1515 = vpack.c.b16 %v1479, %v1476
      %v1516 = vpack.c.b16 %v1483, %v1480
      %v1517 = vpack.c.b16 %v1484, %v1481
      %v1518 = vpack.c.b16 %v1485, %v1482
      %v1519 = vpack.c.b16 %v1489, %v1486
      %v1520 = vpack.c.b16 %v1490, %v1487
      %v1521 = vpack.c.b16 %v1491, %v1488
      %v1522 = vpack.c.b16 %v1495, %v1492
      %v1523 = vpack.c.b16 %v1496, %v1493
      %v1524 = vpack.c.b16 %v1497, %v1494
      %v1525 = vpack.c.b16 %v1501, %v1498
      %v1526 = vpack.c.b16 %v1502, %v1499
      %v1527 = vpack.c.b16 %v1503, %v1500
      %1552 = vmatpush.bf16.msra.mxu0 %v1525
      %1553 = vmatpush.bf16.msra.mxu0 %v1522
      %1554 = vmatpush.bf16.msra.mxu0 %v1519
      %1555 = vmatpush.bf16.msra.mxu0 %v1516
      %1556 = vmatpush.bf16.msra.mxu0 %v1513
      %1557 = vmatpush.bf16.msra.mxu0 %v1510
      %1558 = vmatpush.bf16.msra.mxu0 %v1507
      %1559 = vmatpush.bf16.msra.mxu0 %v1504
      %1560 = vmatmul.bf16.gmra.mxu0 %v1423
      %v1561 = vpop.f32.mrf.mxu0
      %v1562 = vadd.f32 0.0, %v1561
      %v1563 = vpop.f32.mrf.mxu0
      %v1564 = vadd.f32 0.0, %v1563
      %1565 = vdwg.mxu0
      %1566 = vmatpush.bf16.msra.mxu0 %v1526
      %1567 = vmatpush.bf16.msra.mxu0 %v1523
      %1568 = vmatpush.bf16.msra.mxu0 %v1520
      %1569 = vmatpush.bf16.msra.mxu0 %v1517
      %1570 = vmatpush.bf16.msra.mxu0 %v1514
      %1571 = vmatpush.bf16.msra.mxu0 %v1511
      %1572 = vmatpush.bf16.msra.mxu0 %v1508
      %1573 = vmatpush.bf16.msra.mxu0 %v1505
      %1574 = vmatmul.bf16.gmra.mxu0 %v1423
      %v1575 = vpop.f32.mrf.mxu0
      %v1576 = vadd.f32 0.0, %v1575
      %v1577 = vpop.f32.mrf.mxu0
      %v1578 = vadd.f32 0.0, %v1577
      %1579 = vdwg.mxu0
      %1580 = vmatpush.bf16.msra.mxu0 %v1527
      %1581 = vmatpush.bf16.msra.mxu0 %v1524
      %1582 = vmatpush.bf16.msra.mxu0 %v1521
      %1583 = vmatpush.bf16.msra.mxu0 %v1518
      %1584 = vmatpush.bf16.msra.mxu0 %v1515
      %1585 = vmatpush.bf16.msra.mxu0 %v1512
      %1586 = vmatpush.bf16.msra.mxu0 %v1509
      %1587 = vmatpush.bf16.msra.mxu0 %v1506
      %1588 = vmatmul.bf16.gmra.mxu0 %v1423
      %v1589 = vpop.f32.mrf.mxu0
      %v1590 = vadd.f32 0.0, %v1589
      %v1591 = vpop.f32.mrf.mxu0
      %v1592 = vadd.f32 0.0, %v1591
      %1593 = vdwg.mxu0
      %v1594 = vrot.slane %v1562, 7
      %v1595 = vrot.slane %v1564, 7
      %v1596 = vsel %vm451, %v1594, %v1595
      %v1597 = vsel %vm451, %v1595, %v1594
      %v1598 = vsel %vm447, 0.0, %v1597
      %v1599 = vsel %vm448, 0.0, %v1596
      %v1600 = vadd.f32 %v1598, %v1576
      %v1601 = vadd.f32 %v1599, %v1578
      %v1602 = vrot.slane %v1590, 1
      %v1603 = vrot.slane %v1592, 1
      %v1604 = vsel %vm462, %v1602, %v1603
      %v1605 = vsel %vm462, %v1603, %v1602
      %v1606 = vsel %vm458, 0.0, %v1604
      %v1607 = vsel %vm459, 0.0, %v1605
      %v1608 = vadd.f32 %v1600, %v1606
      %v1609 = vadd.f32 %v1601, %v1607
      %v1611 = vperm.slane %v1422, 0
      %v1613 = vadd.f32 %v1608, %v1611
      %v1614 = vadd.f32 %v1609, %v1611
      %v1615 = vadd.f32 %v1613, %v472
      %v1616 = vadd.f32 %v1614, %v473
      %v1617 = vld [vmem:[%s5] sm:$0xff]
      %v1618 = vld [vmem:[%s5 + $0x8] sm:$0xff]
      %v1619 = vld [vmem:[%s5 + $0x10] sm:$0xff]
      %v1620 = vld [vmem:[%s5 + $0x18] sm:$0xff]
      %v1621 = vld [vmem:[%s5 + $0x20] sm:$0xff]
      %v1622 = vld [vmem:[%s5 + $0x28] sm:$0xff]
      %v1623 = vld [vmem:[%s5 + $0x30] sm:$0xff]
      %v1624 = vld [vmem:[%s5 + $0x38] sm:$0xff]
      %v1625 = vld [vmem:[%s5 + $0x40] sm:$0xff]
      %v1626 = vld [vmem:[%s5 + $0x48] sm:$0xff]
      %v1627 = vld [vmem:[%s5 + $0x50] sm:$0xff]
      %v1628 = vld [vmem:[%s5 + $0x58] sm:$0xff]
      %v1629 = vld [vmem:[%s5 + $0x60] sm:$0xff]
      %v1630 = vld [vmem:[%s5 + $0x68] sm:$0xff]
      %v1631 = vld [vmem:[%s5 + $0x70] sm:$0xff]
      %v1632 = vld [vmem:[%s5 + $0x78] sm:$0xff]
      %v1633 = vld [vmem:[%s5 + $0x80] sm:$0xff]
      %v1634 = vld [vmem:[%s5 + $0x88] sm:$0xff]
      %v1635 = vld [vmem:[%s5 + $0x90] sm:$0xff]
      %v1636 = vld [vmem:[%s5 + $0x98] sm:$0xff]
      %v1637 = vld [vmem:[%s5 + $0xa0] sm:$0xff]
      %v1638 = vld [vmem:[%s5 + $0xa8] sm:$0xff]
      %v1639 = vld [vmem:[%s5 + $0xb0] sm:$0xff]
      %v1640 = vld [vmem:[%s5 + $0xb8] sm:$0xff]
      %v1641 = vld [vmem:[%s5 + $0xc0] sm:$0xff]
      %v1642 = vld [vmem:[%s5 + $0xc8] sm:$0xff]
      %v1643 = vld [vmem:[%s5 + $0xd0] sm:$0xff]
      %v1644 = vld [vmem:[%s5 + $0xd8] sm:$0xff]
      %v1645 = vld [vmem:[%s5 + $0xe0] sm:$0xff]
      %v1646 = vld [vmem:[%s5 + $0xe8] sm:$0xff]
      %v1647 = vld [vmem:[%s5 + $0xf0] sm:$0xff]
      %v1648 = vld [vmem:[%s5 + $0xf8] sm:$0xff]
      %v1649 = vld [vmem:[%s5 + $0x100] sm:$0xff]
      %v1650 = vld [vmem:[%s5 + $0x108] sm:$0xff]
      %v1651 = vld [vmem:[%s5 + $0x110] sm:$0xff]
      %v1652 = vld [vmem:[%s5 + $0x118] sm:$0xff]
      %v1653 = vld [vmem:[%s5 + $0x120] sm:$0xff]
      %v1654 = vld [vmem:[%s5 + $0x128] sm:$0xff]
      %v1655 = vld [vmem:[%s5 + $0x130] sm:$0xff]
      %v1656 = vld [vmem:[%s5 + $0x138] sm:$0xff]
      %v1657 = vld [vmem:[%s5 + $0x140] sm:$0xff]
      %v1658 = vld [vmem:[%s5 + $0x148] sm:$0xff]
      %v1659 = vld [vmem:[%s5 + $0x150] sm:$0xff]
      %v1660 = vld [vmem:[%s5 + $0x158] sm:$0xff]
      %v1661 = vld [vmem:[%s5 + $0x160] sm:$0xff]
      %v1662 = vld [vmem:[%s5 + $0x168] sm:$0xff]
      %v1663 = vld [vmem:[%s5 + $0x170] sm:$0xff]
      %v1664 = vld [vmem:[%s5 + $0x178] sm:$0xff]
      %v1665 = vld [vmem:[%s5 + $0x180] sm:$0xff]
      %v1666 = vld [vmem:[%s5 + $0x188] sm:$0xff]
      %v1667 = vld [vmem:[%s5 + $0x190] sm:$0xff]
      %v1668 = vld [vmem:[%s5 + $0x198] sm:$0xff]
      %v1669 = vld [vmem:[%s5 + $0x1a0] sm:$0xff]
      %v1670 = vld [vmem:[%s5 + $0x1a8] sm:$0xff]
      %v1671 = vld [vmem:[%s5 + $0x1b0] sm:$0xff]
      %v1672 = vld [vmem:[%s5 + $0x1b8] sm:$0xff]
      %v1673 = vld [vmem:[%s5 + $0x1c0] sm:$0xff]
      %v1674 = vld [vmem:[%s5 + $0x1c8] sm:$0xff]
      %v1675 = vld [vmem:[%s5 + $0x1d0] sm:$0xff]
      %v1676 = vld [vmem:[%s5 + $0x1d8] sm:$0xff]
      %v1677 = vld [vmem:[%s5 + $0x1e0] sm:$0xff]
      %v1678 = vld [vmem:[%s5 + $0x1e8] sm:$0xff]
      %v1679 = vld [vmem:[%s5 + $0x1f0] sm:$0xff]
      %v1680 = vld [vmem:[%s5 + $0x1f8] sm:$0xff]
      %v1681 = vld [vmem:[%s5 + $0x200] sm:$0xff]
      %v1682 = vld [vmem:[%s5 + $0x208] sm:$0xff]
      %v1683 = vld [vmem:[%s5 + $0x210] sm:$0xff]
      %v1684 = vld [vmem:[%s5 + $0x218] sm:$0xff]
      %v1685 = vld [vmem:[%s5 + $0x220] sm:$0xff]
      %v1686 = vld [vmem:[%s5 + $0x228] sm:$0xff]
      %v1687 = vld [vmem:[%s5 + $0x230] sm:$0xff]
      %v1688 = vld [vmem:[%s5 + $0x238] sm:$0xff]
      %v1689 = vld [vmem:[%s5 + $0x240] sm:$0xff]
      %v1690 = vld [vmem:[%s5 + $0x248] sm:$0xff]
      %v1691 = vld [vmem:[%s5 + $0x250] sm:$0xff]
      %v1692 = vld [vmem:[%s5 + $0x258] sm:$0xff]
      %v1693 = vld [vmem:[%s5 + $0x260] sm:$0xff]
      %v1694 = vld [vmem:[%s5 + $0x268] sm:$0xff]
      %v1695 = vld [vmem:[%s5 + $0x270] sm:$0xff]
      %v1696 = vld [vmem:[%s5 + $0x278] sm:$0xff]
      %v1697 = vld [vmem:[%s5 + $0x280] sm:$0xff]
      %v1698 = vld [vmem:[%s5 + $0x288] sm:$0xff]
      %v1699 = vld [vmem:[%s5 + $0x290] sm:$0xff]
      %v1700 = vld [vmem:[%s5 + $0x298] sm:$0xff]
      %v1701 = vld [vmem:[%s5 + $0x2a0] sm:$0xff]
      %v1702 = vld [vmem:[%s5 + $0x2a8] sm:$0xff]
      %v1703 = vld [vmem:[%s5 + $0x2b0] sm:$0xff]
      %v1704 = vld [vmem:[%s5 + $0x2b8] sm:$0xff]
      %v1705 = vld [vmem:[%s5 + $0x2c0] sm:$0xff]
      %v1706 = vld [vmem:[%s5 + $0x2c8] sm:$0xff]
      %v1707 = vld [vmem:[%s5 + $0x2d0] sm:$0xff]
      %v1708 = vld [vmem:[%s5 + $0x2d8] sm:$0xff]
      %v1709 = vld [vmem:[%s5 + $0x2e0] sm:$0xff]
      %v1710 = vld [vmem:[%s5 + $0x2e8] sm:$0xff]
      %v1711 = vld [vmem:[%s5 + $0x2f0] sm:$0xff]
      %v1712 = vld [vmem:[%s5 + $0x2f8] sm:$0xff]
      %v1713 = vld [vmem:[%s6] sm:$0xf]
      %v1714 = vpack.c.bf16 %v1616, %v1615
      %v1811 = vunpack.c.l.b16 %v1617
      %v1812 = vunpack.c.h.b16 %v1617
      %v1813 = vunpack.c.l.b16 %v1618
      %v1814 = vunpack.c.h.b16 %v1618
      %v1815 = vunpack.c.l.b16 %v1619
      %v1816 = vunpack.c.h.b16 %v1619
      %v1817 = vunpack.c.l.b16 %v1620
      %v1818 = vunpack.c.h.b16 %v1620
      %v1819 = vunpack.c.l.b16 %v1621
      %v1820 = vunpack.c.h.b16 %v1621
      %v1821 = vunpack.c.l.b16 %v1622
      %v1822 = vunpack.c.h.b16 %v1622
      %v1823 = vunpack.c.l.b16 %v1623
      %v1824 = vunpack.c.h.b16 %v1623
      %v1825 = vunpack.c.l.b16 %v1624
      %v1826 = vunpack.c.h.b16 %v1624
      %v1827 = vunpack.c.l.b16 %v1625
      %v1828 = vunpack.c.h.b16 %v1625
      %v1829 = vunpack.c.l.b16 %v1626
      %v1830 = vunpack.c.h.b16 %v1626
      %v1831 = vunpack.c.l.b16 %v1627
      %v1832 = vunpack.c.h.b16 %v1627
      %v1833 = vunpack.c.l.b16 %v1628
      %v1834 = vunpack.c.h.b16 %v1628
      %v1835 = vunpack.c.l.b16 %v1629
      %v1836 = vunpack.c.h.b16 %v1629
      %v1837 = vunpack.c.l.b16 %v1630
      %v1838 = vunpack.c.h.b16 %v1630
      %v1839 = vunpack.c.l.b16 %v1631
      %v1840 = vunpack.c.h.b16 %v1631
      %v1841 = vunpack.c.l.b16 %v1632
      %v1842 = vunpack.c.h.b16 %v1632
      %v1843 = vunpack.c.l.b16 %v1633
      %v1844 = vunpack.c.h.b16 %v1633
      %v1845 = vunpack.c.l.b16 %v1634
      %v1846 = vunpack.c.h.b16 %v1634
      %v1847 = vunpack.c.l.b16 %v1635
      %v1848 = vunpack.c.h.b16 %v1635
      %v1849 = vunpack.c.l.b16 %v1636
      %v1850 = vunpack.c.h.b16 %v1636
      %v1851 = vunpack.c.l.b16 %v1637
      %v1852 = vunpack.c.h.b16 %v1637
      %v1853 = vunpack.c.l.b16 %v1638
      %v1854 = vunpack.c.h.b16 %v1638
      %v1855 = vunpack.c.l.b16 %v1639
      %v1856 = vunpack.c.h.b16 %v1639
      %v1857 = vunpack.c.l.b16 %v1640
      %v1858 = vunpack.c.h.b16 %v1640
      %v1859 = vunpack.c.l.b16 %v1641
      %v1860 = vunpack.c.h.b16 %v1641
      %v1861 = vunpack.c.l.b16 %v1642
      %v1862 = vunpack.c.h.b16 %v1642
      %v1863 = vunpack.c.l.b16 %v1643
      %v1864 = vunpack.c.h.b16 %v1643
      %v1865 = vunpack.c.l.b16 %v1644
      %v1866 = vunpack.c.h.b16 %v1644
      %v1867 = vunpack.c.l.b16 %v1645
      %v1868 = vunpack.c.h.b16 %v1645
      %v1869 = vunpack.c.l.b16 %v1646
      %v1870 = vunpack.c.h.b16 %v1646
      %v1871 = vunpack.c.l.b16 %v1647
      %v1872 = vunpack.c.h.b16 %v1647
      %v1873 = vunpack.c.l.b16 %v1648
      %v1874 = vunpack.c.h.b16 %v1648
      %v1875 = vunpack.c.l.b16 %v1649
      %v1876 = vunpack.c.h.b16 %v1649
      %v1877 = vunpack.c.l.b16 %v1650
      %v1878 = vunpack.c.h.b16 %v1650
      %v1879 = vunpack.c.l.b16 %v1651
      %v1880 = vunpack.c.h.b16 %v1651
      %v1881 = vunpack.c.l.b16 %v1652
      %v1882 = vunpack.c.h.b16 %v1652
      %v1883 = vunpack.c.l.b16 %v1653
      %v1884 = vunpack.c.h.b16 %v1653
      %v1885 = vunpack.c.l.b16 %v1654
      %v1886 = vunpack.c.h.b16 %v1654
      %v1887 = vunpack.c.l.b16 %v1655
      %v1888 = vunpack.c.h.b16 %v1655
      %v1889 = vunpack.c.l.b16 %v1656
      %v1890 = vunpack.c.h.b16 %v1656
      %v1891 = vunpack.c.l.b16 %v1657
      %v1892 = vunpack.c.h.b16 %v1657
      %v1893 = vunpack.c.l.b16 %v1658
      %v1894 = vunpack.c.h.b16 %v1658
      %v1895 = vunpack.c.l.b16 %v1659
      %v1896 = vunpack.c.h.b16 %v1659
      %v1897 = vunpack.c.l.b16 %v1660
      %v1898 = vunpack.c.h.b16 %v1660
      %v1899 = vunpack.c.l.b16 %v1661
      %v1900 = vunpack.c.h.b16 %v1661
      %v1901 = vunpack.c.l.b16 %v1662
      %v1902 = vunpack.c.h.b16 %v1662
      %v1903 = vunpack.c.l.b16 %v1663
      %v1904 = vunpack.c.h.b16 %v1663
      %v1905 = vunpack.c.l.b16 %v1664
      %v1906 = vunpack.c.h.b16 %v1664
      %v1907 = vunpack.c.l.b16 %v1665
      %v1908 = vunpack.c.h.b16 %v1665
      %v1909 = vunpack.c.l.b16 %v1666
      %v1910 = vunpack.c.h.b16 %v1666
      %v1911 = vunpack.c.l.b16 %v1667
      %v1912 = vunpack.c.h.b16 %v1667
      %v1913 = vunpack.c.l.b16 %v1668
      %v1914 = vunpack.c.h.b16 %v1668
      %v1915 = vunpack.c.l.b16 %v1669
      %v1916 = vunpack.c.h.b16 %v1669
      %v1917 = vunpack.c.l.b16 %v1670
      %v1918 = vunpack.c.h.b16 %v1670
      %v1919 = vunpack.c.l.b16 %v1671
      %v1920 = vunpack.c.h.b16 %v1671
      %v1921 = vunpack.c.l.b16 %v1672
      %v1922 = vunpack.c.h.b16 %v1672
      %v1923 = vunpack.c.l.b16 %v1673
      %v1924 = vunpack.c.h.b16 %v1673
      %v1925 = vunpack.c.l.b16 %v1674
      %v1926 = vunpack.c.h.b16 %v1674
      %v1927 = vunpack.c.l.b16 %v1675
      %v1928 = vunpack.c.h.b16 %v1675
      %v1929 = vunpack.c.l.b16 %v1676
      %v1930 = vunpack.c.h.b16 %v1676
      %v1931 = vunpack.c.l.b16 %v1677
      %v1932 = vunpack.c.h.b16 %v1677
      %v1933 = vunpack.c.l.b16 %v1678
      %v1934 = vunpack.c.h.b16 %v1678
      %v1935 = vunpack.c.l.b16 %v1679
      %v1936 = vunpack.c.h.b16 %v1679
      %v1937 = vunpack.c.l.b16 %v1680
      %v1938 = vunpack.c.h.b16 %v1680
      %v1939 = vunpack.c.l.b16 %v1681
      %v1940 = vunpack.c.h.b16 %v1681
      %v1941 = vunpack.c.l.b16 %v1682
      %v1942 = vunpack.c.h.b16 %v1682
      %v1943 = vunpack.c.l.b16 %v1683
      %v1944 = vunpack.c.h.b16 %v1683
      %v1945 = vunpack.c.l.b16 %v1684
      %v1946 = vunpack.c.h.b16 %v1684
      %v1947 = vunpack.c.l.b16 %v1685
      %v1948 = vunpack.c.h.b16 %v1685
      %v1949 = vunpack.c.l.b16 %v1686
      %v1950 = vunpack.c.h.b16 %v1686
      %v1951 = vunpack.c.l.b16 %v1687
      %v1952 = vunpack.c.h.b16 %v1687
      %v1953 = vunpack.c.l.b16 %v1688
      %v1954 = vunpack.c.h.b16 %v1688
      %v1955 = vunpack.c.l.b16 %v1689
      %v1956 = vunpack.c.h.b16 %v1689
      %v1957 = vunpack.c.l.b16 %v1690
      %v1958 = vunpack.c.h.b16 %v1690
      %v1959 = vunpack.c.l.b16 %v1691
      %v1960 = vunpack.c.h.b16 %v1691
      %v1961 = vunpack.c.l.b16 %v1692
      %v1962 = vunpack.c.h.b16 %v1692
      %v1963 = vunpack.c.l.b16 %v1693
      %v1964 = vunpack.c.h.b16 %v1693
      %v1965 = vunpack.c.l.b16 %v1694
      %v1966 = vunpack.c.h.b16 %v1694
      %v1967 = vunpack.c.l.b16 %v1695
      %v1968 = vunpack.c.h.b16 %v1695
      %v1969 = vunpack.c.l.b16 %v1696
      %v1970 = vunpack.c.h.b16 %v1696
      %v1971 = vunpack.c.l.b16 %v1697
      %v1972 = vunpack.c.h.b16 %v1697
      %v1973 = vunpack.c.l.b16 %v1698
      %v1974 = vunpack.c.h.b16 %v1698
      %v1975 = vunpack.c.l.b16 %v1699
      %v1976 = vunpack.c.h.b16 %v1699
      %v1977 = vunpack.c.l.b16 %v1700
      %v1978 = vunpack.c.h.b16 %v1700
      %v1979 = vunpack.c.l.b16 %v1701
      %v1980 = vunpack.c.h.b16 %v1701
      %v1981 = vunpack.c.l.b16 %v1702
      %v1982 = vunpack.c.h.b16 %v1702
      %v1983 = vunpack.c.l.b16 %v1703
      %v1984 = vunpack.c.h.b16 %v1703
      %v1985 = vunpack.c.l.b16 %v1704
      %v1986 = vunpack.c.h.b16 %v1704
      %v1987 = vunpack.c.l.b16 %v1705
      %v1988 = vunpack.c.h.b16 %v1705
      %v1989 = vunpack.c.l.b16 %v1706
      %v1990 = vunpack.c.h.b16 %v1706
      %v1991 = vunpack.c.l.b16 %v1707
      %v1992 = vunpack.c.h.b16 %v1707
      %v1993 = vunpack.c.l.b16 %v1708
      %v1994 = vunpack.c.h.b16 %v1708
      %v1995 = vunpack.c.l.b16 %v1709
      %v1996 = vunpack.c.h.b16 %v1709
      %v1997 = vunpack.c.l.b16 %v1710
      %v1998 = vunpack.c.h.b16 %v1710
      %v1999 = vunpack.c.l.b16 %v1711
      %v2000 = vunpack.c.h.b16 %v1711
      %v2001 = vunpack.c.l.b16 %v1712
      %v2002 = vunpack.c.h.b16 %v1712
      %v2003 = vpack.c.b16 %v1823, %v1811
      %v2004 = vpack.c.b16 %v1824, %v1812
      %v2005 = vpack.c.b16 %v1825, %v1813
      %v2006 = vpack.c.b16 %v1826, %v1814
      %v2007 = vpack.c.b16 %v1827, %v1815
      %v2008 = vpack.c.b16 %v1828, %v1816
      %v2009 = vpack.c.b16 %v1829, %v1817
      %v2010 = vpack.c.b16 %v1830, %v1818
      %v2011 = vpack.c.b16 %v1831, %v1819
      %v2012 = vpack.c.b16 %v1832, %v1820
      %v2013 = vpack.c.b16 %v1833, %v1821
      %v2014 = vpack.c.b16 %v1834, %v1822
      %v2015 = vpack.c.b16 %v1847, %v1835
      %v2016 = vpack.c.b16 %v1848, %v1836
      %v2017 = vpack.c.b16 %v1849, %v1837
      %v2018 = vpack.c.b16 %v1850, %v1838
      %v2019 = vpack.c.b16 %v1851, %v1839
      %v2020 = vpack.c.b16 %v1852, %v1840
      %v2021 = vpack.c.b16 %v1853, %v1841
      %v2022 = vpack.c.b16 %v1854, %v1842
      %v2023 = vpack.c.b16 %v1855, %v1843
      %v2024 = vpack.c.b16 %v1856, %v1844
      %v2025 = vpack.c.b16 %v1857, %v1845
      %v2026 = vpack.c.b16 %v1858, %v1846
      %v2027 = vpack.c.b16 %v1871, %v1859
      %v2028 = vpack.c.b16 %v1872, %v1860
      %v2029 = vpack.c.b16 %v1873, %v1861
      %v2030 = vpack.c.b16 %v1874, %v1862
      %v2031 = vpack.c.b16 %v1875, %v1863
      %v2032 = vpack.c.b16 %v1876, %v1864
      %v2033 = vpack.c.b16 %v1877, %v1865
      %v2034 = vpack.c.b16 %v1878, %v1866
      %v2035 = vpack.c.b16 %v1879, %v1867
      %v2036 = vpack.c.b16 %v1880, %v1868
      %v2037 = vpack.c.b16 %v1881, %v1869
      %v2038 = vpack.c.b16 %v1882, %v1870
      %v2039 = vpack.c.b16 %v1895, %v1883
      %v2040 = vpack.c.b16 %v1896, %v1884
      %v2041 = vpack.c.b16 %v1897, %v1885
      %v2042 = vpack.c.b16 %v1898, %v1886
      %v2043 = vpack.c.b16 %v1899, %v1887
      %v2044 = vpack.c.b16 %v1900, %v1888
      %v2045 = vpack.c.b16 %v1901, %v1889
      %v2046 = vpack.c.b16 %v1902, %v1890
      %v2047 = vpack.c.b16 %v1903, %v1891
      %v2048 = vpack.c.b16 %v1904, %v1892
      %v2049 = vpack.c.b16 %v1905, %v1893
      %v2050 = vpack.c.b16 %v1906, %v1894
      %v2051 = vpack.c.b16 %v1919, %v1907
      %v2052 = vpack.c.b16 %v1920, %v1908
      %v2053 = vpack.c.b16 %v1921, %v1909
      %v2054 = vpack.c.b16 %v1922, %v1910
      %v2055 = vpack.c.b16 %v1923, %v1911
      %v2056 = vpack.c.b16 %v1924, %v1912
      %v2057 = vpack.c.b16 %v1925, %v1913
      %v2058 = vpack.c.b16 %v1926, %v1914
      %v2059 = vpack.c.b16 %v1927, %v1915
      %v2060 = vpack.c.b16 %v1928, %v1916
      %v2061 = vpack.c.b16 %v1929, %v1917
      %v2062 = vpack.c.b16 %v1930, %v1918
      %v2063 = vpack.c.b16 %v1943, %v1931
      %v2064 = vpack.c.b16 %v1944, %v1932
      %v2065 = vpack.c.b16 %v1945, %v1933
      %v2066 = vpack.c.b16 %v1946, %v1934
      %v2067 = vpack.c.b16 %v1947, %v1935
      %v2068 = vpack.c.b16 %v1948, %v1936
      %v2069 = vpack.c.b16 %v1949, %v1937
      %v2070 = vpack.c.b16 %v1950, %v1938
      %v2071 = vpack.c.b16 %v1951, %v1939
      %v2072 = vpack.c.b16 %v1952, %v1940
      %v2073 = vpack.c.b16 %v1953, %v1941
      %v2074 = vpack.c.b16 %v1954, %v1942
      %v2075 = vpack.c.b16 %v1967, %v1955
      %v2076 = vpack.c.b16 %v1968, %v1956
      %v2077 = vpack.c.b16 %v1969, %v1957
      %v2078 = vpack.c.b16 %v1970, %v1958
      %v2079 = vpack.c.b16 %v1971, %v1959
      %v2080 = vpack.c.b16 %v1972, %v1960
      %v2081 = vpack.c.b16 %v1973, %v1961
      %v2082 = vpack.c.b16 %v1974, %v1962
      %v2083 = vpack.c.b16 %v1975, %v1963
      %v2084 = vpack.c.b16 %v1976, %v1964
      %v2085 = vpack.c.b16 %v1977, %v1965
      %v2086 = vpack.c.b16 %v1978, %v1966
      %v2087 = vpack.c.b16 %v1991, %v1979
      %v2088 = vpack.c.b16 %v1992, %v1980
      %v2089 = vpack.c.b16 %v1993, %v1981
      %v2090 = vpack.c.b16 %v1994, %v1982
      %v2091 = vpack.c.b16 %v1995, %v1983
      %v2092 = vpack.c.b16 %v1996, %v1984
      %v2093 = vpack.c.b16 %v1997, %v1985
      %v2094 = vpack.c.b16 %v1998, %v1986
      %v2095 = vpack.c.b16 %v1999, %v1987
      %v2096 = vpack.c.b16 %v2000, %v1988
      %v2097 = vpack.c.b16 %v2001, %v1989
      %v2098 = vpack.c.b16 %v2002, %v1990
      %2195 = vmatpush.bf16.msra.mxu0 %v2087
      %2196 = vmatpush.bf16.msra.mxu0 %v2075
      %2197 = vmatpush.bf16.msra.mxu0 %v2063
      %2198 = vmatpush.bf16.msra.mxu0 %v2051
      %2199 = vmatpush.bf16.msra.mxu0 %v2039
      %2200 = vmatpush.bf16.msra.mxu0 %v2027
      %2201 = vmatpush.bf16.msra.mxu0 %v2015
      %2202 = vmatpush.bf16.msra.mxu0 %v2003
      %2203 = vmatmul.bf16.gmra.mxu0 %v1714
      %v2204 = vpop.f32.mrf.mxu0
      %v2205 = vadd.f32 0.0, %v2204
      %v2206 = vpop.f32.mrf.mxu0
      %v2207 = vadd.f32 0.0, %v2206
      %2208 = vdwg.mxu0
      %2209 = vmatpush.bf16.msra.mxu0 %v2088
      %2210 = vmatpush.bf16.msra.mxu0 %v2076
      %2211 = vmatpush.bf16.msra.mxu0 %v2064
      %2212 = vmatpush.bf16.msra.mxu0 %v2052
      %2213 = vmatpush.bf16.msra.mxu0 %v2040
      %2214 = vmatpush.bf16.msra.mxu0 %v2028
      %2215 = vmatpush.bf16.msra.mxu0 %v2016
      %2216 = vmatpush.bf16.msra.mxu0 %v2004
      %2217 = vmatmul.bf16.gmra.mxu0 %v1714
      %v2218 = vpop.f32.mrf.mxu0
      %v2219 = vadd.f32 0.0, %v2218
      %v2220 = vpop.f32.mrf.mxu0
      %v2221 = vadd.f32 0.0, %v2220
      %2222 = vdwg.mxu0
      %2223 = vmatpush.bf16.msra.mxu0 %v2089
      %2224 = vmatpush.bf16.msra.mxu0 %v2077
      %2225 = vmatpush.bf16.msra.mxu0 %v2065
      %2226 = vmatpush.bf16.msra.mxu0 %v2053
      %2227 = vmatpush.bf16.msra.mxu0 %v2041
      %2228 = vmatpush.bf16.msra.mxu0 %v2029
      %2229 = vmatpush.bf16.msra.mxu0 %v2017
      %2230 = vmatpush.bf16.msra.mxu0 %v2005
      %2231 = vmatmul.bf16.gmra.mxu0 %v1714
      %v2232 = vpop.f32.mrf.mxu0
      %v2233 = vadd.f32 0.0, %v2232
      %v2234 = vpop.f32.mrf.mxu0
      %v2235 = vadd.f32 0.0, %v2234
      %2236 = vdwg.mxu0
      %2237 = vmatpush.bf16.msra.mxu0 %v2090
      %2238 = vmatpush.bf16.msra.mxu0 %v2078
      %2239 = vmatpush.bf16.msra.mxu0 %v2066
      %2240 = vmatpush.bf16.msra.mxu0 %v2054
      %2241 = vmatpush.bf16.msra.mxu0 %v2042
      %2242 = vmatpush.bf16.msra.mxu0 %v2030
      %2243 = vmatpush.bf16.msra.mxu0 %v2018
      %2244 = vmatpush.bf16.msra.mxu0 %v2006
      %2245 = vmatmul.bf16.gmra.mxu0 %v1714
      %v2246 = vpop.f32.mrf.mxu0
      %v2247 = vadd.f32 0.0, %v2246
      %v2248 = vpop.f32.mrf.mxu0
      %v2249 = vadd.f32 0.0, %v2248
      %2250 = vdwg.mxu0
      %2251 = vmatpush.bf16.msra.mxu0 %v2091
      %2252 = vmatpush.bf16.msra.mxu0 %v2079
      %2253 = vmatpush.bf16.msra.mxu0 %v2067
      %2254 = vmatpush.bf16.msra.mxu0 %v2055
      %2255 = vmatpush.bf16.msra.mxu0 %v2043
      %2256 = vmatpush.bf16.msra.mxu0 %v2031
      %2257 = vmatpush.bf16.msra.mxu0 %v2019
      %2258 = vmatpush.bf16.msra.mxu0 %v2007
      %2259 = vmatmul.bf16.gmra.mxu0 %v1714
      %v2260 = vpop.f32.mrf.mxu0
      %v2261 = vadd.f32 0.0, %v2260
      %v2262 = vpop.f32.mrf.mxu0
      %v2263 = vadd.f32 0.0, %v2262
      %2264 = vdwg.mxu0
      %2265 = vmatpush.bf16.msra.mxu0 %v2092
      %2266 = vmatpush.bf16.msra.mxu0 %v2080
      %2267 = vmatpush.bf16.msra.mxu0 %v2068
      %2268 = vmatpush.bf16.msra.mxu0 %v2056
      %2269 = vmatpush.bf16.msra.mxu0 %v2044
      %2270 = vmatpush.bf16.msra.mxu0 %v2032
      %2271 = vmatpush.bf16.msra.mxu0 %v2020
      %2272 = vmatpush.bf16.msra.mxu0 %v2008
      %2273 = vmatmul.bf16.gmra.mxu0 %v1714
      %v2274 = vpop.f32.mrf.mxu0
      %v2275 = vadd.f32 0.0, %v2274
      %v2276 = vpop.f32.mrf.mxu0
      %v2277 = vadd.f32 0.0, %v2276
      %2278 = vdwg.mxu0
      %2279 = vmatpush.bf16.msra.mxu0 %v2093
      %2280 = vmatpush.bf16.msra.mxu0 %v2081
      %2281 = vmatpush.bf16.msra.mxu0 %v2069
      %2282 = vmatpush.bf16.msra.mxu0 %v2057
      %2283 = vmatpush.bf16.msra.mxu0 %v2045
      %2284 = vmatpush.bf16.msra.mxu0 %v2033
      %2285 = vmatpush.bf16.msra.mxu0 %v2021
      %2286 = vmatpush.bf16.msra.mxu0 %v2009
      %2287 = vmatmul.bf16.gmra.mxu0 %v1714
      %v2288 = vpop.f32.mrf.mxu0
      %v2289 = vadd.f32 0.0, %v2288
      %v2290 = vpop.f32.mrf.mxu0
      %v2291 = vadd.f32 0.0, %v2290
      %2292 = vdwg.mxu0
      %2293 = vmatpush.bf16.msra.mxu0 %v2094
      %2294 = vmatpush.bf16.msra.mxu0 %v2082
      %2295 = vmatpush.bf16.msra.mxu0 %v2070
      %2296 = vmatpush.bf16.msra.mxu0 %v2058
      %2297 = vmatpush.bf16.msra.mxu0 %v2046
      %2298 = vmatpush.bf16.msra.mxu0 %v2034
      %2299 = vmatpush.bf16.msra.mxu0 %v2022
      %2300 = vmatpush.bf16.msra.mxu0 %v2010
      %2301 = vmatmul.bf16.gmra.mxu0 %v1714
      %v2302 = vpop.f32.mrf.mxu0
      %v2303 = vadd.f32 0.0, %v2302
      %v2304 = vpop.f32.mrf.mxu0
      %v2305 = vadd.f32 0.0, %v2304
      %2306 = vdwg.mxu0
      %2307 = vmatpush.bf16.msra.mxu0 %v2095
      %2308 = vmatpush.bf16.msra.mxu0 %v2083
      %2309 = vmatpush.bf16.msra.mxu0 %v2071
      %2310 = vmatpush.bf16.msra.mxu0 %v2059
      %2311 = vmatpush.bf16.msra.mxu0 %v2047
      %2312 = vmatpush.bf16.msra.mxu0 %v2035
      %2313 = vmatpush.bf16.msra.mxu0 %v2023
      %2314 = vmatpush.bf16.msra.mxu0 %v2011
      %2315 = vmatmul.bf16.gmra.mxu0 %v1714
      %v2316 = vpop.f32.mrf.mxu0
      %v2317 = vadd.f32 0.0, %v2316
      %v2318 = vpop.f32.mrf.mxu0
      %v2319 = vadd.f32 0.0, %v2318
      %2320 = vdwg.mxu0
      %2321 = vmatpush.bf16.msra.mxu0 %v2096
      %2322 = vmatpush.bf16.msra.mxu0 %v2084
      %2323 = vmatpush.bf16.msra.mxu0 %v2072
      %2324 = vmatpush.bf16.msra.mxu0 %v2060
      %2325 = vmatpush.bf16.msra.mxu0 %v2048
      %2326 = vmatpush.bf16.msra.mxu0 %v2036
      %2327 = vmatpush.bf16.msra.mxu0 %v2024
      %2328 = vmatpush.bf16.msra.mxu0 %v2012
      %2329 = vmatmul.bf16.gmra.mxu0 %v1714
      %v2330 = vpop.f32.mrf.mxu0
      %v2331 = vadd.f32 0.0, %v2330
      %v2332 = vpop.f32.mrf.mxu0
      %v2333 = vadd.f32 0.0, %v2332
      %2334 = vdwg.mxu0
      %2335 = vmatpush.bf16.msra.mxu0 %v2097
      %2336 = vmatpush.bf16.msra.mxu0 %v2085
      %2337 = vmatpush.bf16.msra.mxu0 %v2073
      %2338 = vmatpush.bf16.msra.mxu0 %v2061
      %2339 = vmatpush.bf16.msra.mxu0 %v2049
      %2340 = vmatpush.bf16.msra.mxu0 %v2037
      %2341 = vmatpush.bf16.msra.mxu0 %v2025
      %2342 = vmatpush.bf16.msra.mxu0 %v2013
      %2343 = vmatmul.bf16.gmra.mxu0 %v1714
      %v2344 = vpop.f32.mrf.mxu0
      %v2345 = vadd.f32 0.0, %v2344
      %v2346 = vpop.f32.mrf.mxu0
      %v2347 = vadd.f32 0.0, %v2346
      %2348 = vdwg.mxu0
      %2349 = vmatpush.bf16.msra.mxu0 %v2098
      %2350 = vmatpush.bf16.msra.mxu0 %v2086
      %2351 = vmatpush.bf16.msra.mxu0 %v2074
      %2352 = vmatpush.bf16.msra.mxu0 %v2062
      %2353 = vmatpush.bf16.msra.mxu0 %v2050
      %2354 = vmatpush.bf16.msra.mxu0 %v2038
      %2355 = vmatpush.bf16.msra.mxu0 %v2026
      %2356 = vmatpush.bf16.msra.mxu0 %v2014
      %2357 = vmatmul.bf16.gmra.mxu0 %v1714
      %v2358 = vpop.f32.mrf.mxu0
      %v2359 = vadd.f32 0.0, %v2358
      %v2360 = vpop.f32.mrf.mxu0
      %v2361 = vadd.f32 0.0, %v2360
      %2362 = vdwg.mxu0
      %v2363 = vrot.slane %v2205, 7
      %v2364 = vrot.slane %v2219, 7
      %v2365 = vrot.slane %v2233, 7
      %v2366 = vrot.slane %v2247, 7
      %v2367 = vrot.slane %v2207, 7
      %v2368 = vrot.slane %v2221, 7
      %v2369 = vrot.slane %v2235, 7
      %v2370 = vrot.slane %v2249, 7
      %v2371 = vsel %vm451, %v2363, %v2367
      %v2372 = vsel %vm451, %v2364, %v2368
      %v2373 = vsel %vm451, %v2365, %v2369
      %v2374 = vsel %vm451, %v2366, %v2370
      %v2375 = vsel %vm451, %v2367, %v2363
      %v2376 = vsel %vm451, %v2368, %v2364
      %v2377 = vsel %vm451, %v2369, %v2365
      %v2378 = vsel %vm451, %v2370, %v2366
      %v2379 = vsel %vm447, 0.0, %v2375
      %v2380 = vsel %vm447, 0.0, %v2376
      %v2381 = vsel %vm447, 0.0, %v2377
      %v2382 = vsel %vm447, 0.0, %v2378
      %v2383 = vsel %vm448, 0.0, %v2371
      %v2384 = vsel %vm448, 0.0, %v2372
      %v2385 = vsel %vm448, 0.0, %v2373
      %v2386 = vsel %vm448, 0.0, %v2374
      %v2387 = vadd.f32 %v2379, %v2261
      %v2388 = vadd.f32 %v2380, %v2275
      %v2389 = vadd.f32 %v2381, %v2289
      %v2390 = vadd.f32 %v2382, %v2303
      %v2391 = vadd.f32 %v2383, %v2263
      %v2392 = vadd.f32 %v2384, %v2277
      %v2393 = vadd.f32 %v2385, %v2291
      %v2394 = vadd.f32 %v2386, %v2305
      %v2395 = vrot.slane %v2317, 1
      %v2396 = vrot.slane %v2331, 1
      %v2397 = vrot.slane %v2345, 1
      %v2398 = vrot.slane %v2359, 1
      %v2399 = vrot.slane %v2319, 1
      %v2400 = vrot.slane %v2333, 1
      %v2401 = vrot.slane %v2347, 1
      %v2402 = vrot.slane %v2361, 1
      %v2403 = vsel %vm462, %v2395, %v2399
      %v2404 = vsel %vm462, %v2396, %v2400
      %v2405 = vsel %vm462, %v2397, %v2401
      %v2406 = vsel %vm462, %v2398, %v2402
      %v2407 = vsel %vm462, %v2399, %v2395
      %v2408 = vsel %vm462, %v2400, %v2396
      %v2409 = vsel %vm462, %v2401, %v2397
      %v2410 = vsel %vm462, %v2402, %v2398
      %v2411 = vsel %vm458, 0.0, %v2403
      %v2412 = vsel %vm458, 0.0, %v2404
      %v2413 = vsel %vm458, 0.0, %v2405
      %v2414 = vsel %vm458, 0.0, %v2406
      %v2415 = vsel %vm459, 0.0, %v2407
      %v2416 = vsel %vm459, 0.0, %v2408
      %v2417 = vsel %vm459, 0.0, %v2409
      %v2418 = vsel %vm459, 0.0, %v2410
      %v2419 = vadd.f32 %v2387, %v2411
      %v2420 = vadd.f32 %v2388, %v2412
      %v2421 = vadd.f32 %v2389, %v2413
      %v2422 = vadd.f32 %v2390, %v2414
      %v2423 = vadd.f32 %v2391, %v2415
      %v2424 = vadd.f32 %v2392, %v2416
      %v2425 = vadd.f32 %v2393, %v2417
      %v2426 = vadd.f32 %v2394, %v2418
      %v2428 = vperm.slane %v1713, 0
      %v2429 = vperm.slane %v1713, 1
      %v2430 = vperm.slane %v1713, 2
      %v2431 = vperm.slane %v1713, 3
      %v2436 = vadd.f32 %v2419, %v2428
      %v2437 = vadd.f32 %v2420, %v2429
      %v2438 = vadd.f32 %v2421, %v2430
      %v2439 = vadd.f32 %v2422, %v2431
      %v2440 = vadd.f32 %v2423, %v2428
      %v2441 = vadd.f32 %v2424, %v2429
      %v2442 = vadd.f32 %v2425, %v2430
      %v2443 = vadd.f32 %v2426, %v2431
      %v2444 = vld [vmem:[%s7] sm:$0xff]
      %v2445 = vld [vmem:[%s7 + $0x8] sm:$0xf]
      %v2446 = vld [vmem:[%s7 + $0xc] sm:$0xff]
      %v2447 = vld [vmem:[%s7 + $0x14] sm:$0xf]
      %v2448 = vld [vmem:[%s7 + $0x18] sm:$0xff]
      %v2449 = vld [vmem:[%s7 + $0x20] sm:$0xf]
      %v2450 = vld [vmem:[%s7 + $0x24] sm:$0xff]
      %v2451 = vld [vmem:[%s7 + $0x2c] sm:$0xf]
      %v2452 = vld [vmem:[%s7 + $0x30] sm:$0xff]
      %v2453 = vld [vmem:[%s7 + $0x38] sm:$0xf]
      %v2454 = vld [vmem:[%s7 + $0x3c] sm:$0xff]
      %v2455 = vld [vmem:[%s7 + $0x44] sm:$0xf]
      %v2456 = vld [vmem:[%s7 + $0x48] sm:$0xff]
      %v2457 = vld [vmem:[%s7 + $0x50] sm:$0xf]
      %v2458 = vld [vmem:[%s7 + $0x54] sm:$0xff]
      %v2459 = vld [vmem:[%s7 + $0x5c] sm:$0xf]
      %v2460 = vld [vmem:[%s7 + $0x60] sm:$0xff]
      %v2461 = vld [vmem:[%s7 + $0x68] sm:$0xf]
      %v2462 = vld [vmem:[%s7 + $0x6c] sm:$0xff]
      %v2463 = vld [vmem:[%s7 + $0x74] sm:$0xf]
      %v2464 = vld [vmem:[%s7 + $0x78] sm:$0xff]
      %v2465 = vld [vmem:[%s7 + $0x80] sm:$0xf]
      %v2466 = vld [vmem:[%s7 + $0x84] sm:$0xff]
      %v2467 = vld [vmem:[%s7 + $0x8c] sm:$0xf]
      %v2468 = vld [vmem:[%s7 + $0x90] sm:$0xff]
      %v2469 = vld [vmem:[%s7 + $0x98] sm:$0xf]
      %v2470 = vld [vmem:[%s7 + $0x9c] sm:$0xff]
      %v2471 = vld [vmem:[%s7 + $0xa4] sm:$0xf]
      %v2472 = vld [vmem:[%s7 + $0xa8] sm:$0xff]
      %v2473 = vld [vmem:[%s7 + $0xb0] sm:$0xf]
      %v2474 = vld [vmem:[%s7 + $0xb4] sm:$0xff]
      %v2475 = vld [vmem:[%s7 + $0xbc] sm:$0xf]
      %v2476 = vld [vmem:[%s7 + $0xc0] sm:$0xff]
      %v2477 = vld [vmem:[%s7 + $0xc8] sm:$0xf]
      %v2478 = vld [vmem:[%s7 + $0xcc] sm:$0xff]
      %v2479 = vld [vmem:[%s7 + $0xd4] sm:$0xf]
      %v2480 = vld [vmem:[%s7 + $0xd8] sm:$0xff]
      %v2481 = vld [vmem:[%s7 + $0xe0] sm:$0xf]
      %v2482 = vld [vmem:[%s7 + $0xe4] sm:$0xff]
      %v2483 = vld [vmem:[%s7 + $0xec] sm:$0xf]
      %v2484 = vld [vmem:[%s7 + $0xf0] sm:$0xff]
      %v2485 = vld [vmem:[%s7 + $0xf8] sm:$0xf]
      %v2486 = vld [vmem:[%s7 + $0xfc] sm:$0xff]
      %v2487 = vld [vmem:[%s7 + $0x104] sm:$0xf]
      %v2488 = vld [vmem:[%s7 + $0x108] sm:$0xff]
      %v2489 = vld [vmem:[%s7 + $0x110] sm:$0xf]
      %v2490 = vld [vmem:[%s7 + $0x114] sm:$0xff]
      %v2491 = vld [vmem:[%s7 + $0x11c] sm:$0xf]
      %v2492 = vld [vmem:[%s7 + $0x120] sm:$0xff]
      %v2493 = vld [vmem:[%s7 + $0x128] sm:$0xf]
      %v2494 = vld [vmem:[%s7 + $0x12c] sm:$0xff]
      %v2495 = vld [vmem:[%s7 + $0x134] sm:$0xf]
      %v2496 = vld [vmem:[%s7 + $0x138] sm:$0xff]
      %v2497 = vld [vmem:[%s7 + $0x140] sm:$0xf]
      %v2498 = vld [vmem:[%s7 + $0x144] sm:$0xff]
      %v2499 = vld [vmem:[%s7 + $0x14c] sm:$0xf]
      %v2500 = vld [vmem:[%s7 + $0x150] sm:$0xff]
      %v2501 = vld [vmem:[%s7 + $0x158] sm:$0xf]
      %v2502 = vld [vmem:[%s7 + $0x15c] sm:$0xff]
      %v2503 = vld [vmem:[%s7 + $0x164] sm:$0xf]
      %v2504 = vld [vmem:[%s7 + $0x168] sm:$0xff]
      %v2505 = vld [vmem:[%s7 + $0x170] sm:$0xf]
      %v2506 = vld [vmem:[%s7 + $0x174] sm:$0xff]
      %v2507 = vld [vmem:[%s7 + $0x17c] sm:$0xf]
      %v2508 = vpack.c.bf16 %v2440, %v2436
      %v2509 = vpack.c.bf16 %v2441, %v2437
      %v2574 = vunpack.c.l.b16 %v2444
      %v2575 = vunpack.c.h.b16 %v2444
      %v2576 = vunpack.c.l.b16 %v2445
      %v2577 = vunpack.c.l.b16 %v2446
      %v2578 = vunpack.c.h.b16 %v2446
      %v2579 = vunpack.c.l.b16 %v2447
      %v2580 = vunpack.c.l.b16 %v2448
      %v2581 = vunpack.c.h.b16 %v2448
      %v2582 = vunpack.c.l.b16 %v2449
      %v2583 = vunpack.c.l.b16 %v2450
      %v2584 = vunpack.c.h.b16 %v2450
      %v2585 = vunpack.c.l.b16 %v2451
      %v2586 = vunpack.c.l.b16 %v2452
      %v2587 = vunpack.c.h.b16 %v2452
      %v2588 = vunpack.c.l.b16 %v2453
      %v2589 = vunpack.c.l.b16 %v2454
      %v2590 = vunpack.c.h.b16 %v2454
      %v2591 = vunpack.c.l.b16 %v2455
      %v2592 = vunpack.c.l.b16 %v2456
      %v2593 = vunpack.c.h.b16 %v2456
      %v2594 = vunpack.c.l.b16 %v2457
      %v2595 = vunpack.c.l.b16 %v2458
      %v2596 = vunpack.c.h.b16 %v2458
      %v2597 = vunpack.c.l.b16 %v2459
      %v2598 = vunpack.c.l.b16 %v2460
      %v2599 = vunpack.c.h.b16 %v2460
      %v2600 = vunpack.c.l.b16 %v2461
      %v2601 = vunpack.c.l.b16 %v2462
      %v2602 = vunpack.c.h.b16 %v2462
      %v2603 = vunpack.c.l.b16 %v2463
      %v2604 = vunpack.c.l.b16 %v2464
      %v2605 = vunpack.c.h.b16 %v2464
      %v2606 = vunpack.c.l.b16 %v2465
      %v2607 = vunpack.c.l.b16 %v2466
      %v2608 = vunpack.c.h.b16 %v2466
      %v2609 = vunpack.c.l.b16 %v2467
      %v2610 = vunpack.c.l.b16 %v2468
      %v2611 = vunpack.c.h.b16 %v2468
      %v2612 = vunpack.c.l.b16 %v2469
      %v2613 = vunpack.c.l.b16 %v2470
      %v2614 = vunpack.c.h.b16 %v2470
      %v2615 = vunpack.c.l.b16 %v2471
      %v2616 = vunpack.c.l.b16 %v2472
      %v2617 = vunpack.c.h.b16 %v2472
      %v2618 = vunpack.c.l.b16 %v2473
      %v2619 = vunpack.c.l.b16 %v2474
      %v2620 = vunpack.c.h.b16 %v2474
      %v2621 = vunpack.c.l.b16 %v2475
      %v2622 = vunpack.c.l.b16 %v2476
      %v2623 = vunpack.c.h.b16 %v2476
      %v2624 = vunpack.c.l.b16 %v2477
      %v2625 = vunpack.c.l.b16 %v2478
      %v2626 = vunpack.c.h.b16 %v2478
      %v2627 = vunpack.c.l.b16 %v2479
      %v2628 = vunpack.c.l.b16 %v2480
      %v2629 = vunpack.c.h.b16 %v2480
      %v2630 = vunpack.c.l.b16 %v2481
      %v2631 = vunpack.c.l.b16 %v2482
      %v2632 = vunpack.c.h.b16 %v2482
      %v2633 = vunpack.c.l.b16 %v2483
      %v2634 = vunpack.c.l.b16 %v2484
      %v2635 = vunpack.c.h.b16 %v2484
      %v2636 = vunpack.c.l.b16 %v2485
      %v2637 = vunpack.c.l.b16 %v2486
      %v2638 = vunpack.c.h.b16 %v2486
      %v2639 = vunpack.c.l.b16 %v2487
      %v2640 = vunpack.c.l.b16 %v2488
      %v2641 = vunpack.c.h.b16 %v2488
      %v2642 = vunpack.c.l.b16 %v2489
      %v2643 = vunpack.c.l.b16 %v2490
      %v2644 = vunpack.c.h.b16 %v2490
      %v2645 = vunpack.c.l.b16 %v2491
      %v2646 = vunpack.c.l.b16 %v2492
      %v2647 = vunpack.c.h.b16 %v2492
      %v2648 = vunpack.c.l.b16 %v2493
      %v2649 = vunpack.c.l.b16 %v2494
      %v2650 = vunpack.c.h.b16 %v2494
      %v2651 = vunpack.c.l.b16 %v2495
      %v2652 = vunpack.c.l.b16 %v2496
      %v2653 = vunpack.c.h.b16 %v2496
      %v2654 = vunpack.c.l.b16 %v2497
      %v2655 = vunpack.c.l.b16 %v2498
      %v2656 = vunpack.c.h.b16 %v2498
      %v2657 = vunpack.c.l.b16 %v2499
      %v2658 = vunpack.c.l.b16 %v2500
      %v2659 = vunpack.c.h.b16 %v2500
      %v2660 = vunpack.c.l.b16 %v2501
      %v2661 = vunpack.c.l.b16 %v2502
      %v2662 = vunpack.c.h.b16 %v2502
      %v2663 = vunpack.c.l.b16 %v2503
      %v2664 = vunpack.c.l.b16 %v2504
      %v2665 = vunpack.c.h.b16 %v2504
      %v2666 = vunpack.c.l.b16 %v2505
      %v2667 = vunpack.c.l.b16 %v2506
      %v2668 = vunpack.c.h.b16 %v2506
      %v2669 = vunpack.c.l.b16 %v2507
      %v2670 = vpack.c.b16 %v2577, %v2574
      %v2671 = vpack.c.b16 %v2578, %v2575
      %v2672 = vpack.c.b16 %v2579, %v2576
      %v2673 = vpack.c.b16 %v2583, %v2580
      %v2674 = vpack.c.b16 %v2584, %v2581
      %v2675 = vpack.c.b16 %v2585, %v2582
      %v2676 = vpack.c.b16 %v2589, %v2586
      %v2677 = vpack.c.b16 %v2590, %v2587
      %v2678 = vpack.c.b16 %v2591, %v2588
      %v2679 = vpack.c.b16 %v2595, %v2592
      %v2680 = vpack.c.b16 %v2596, %v2593
      %v2681 = vpack.c.b16 %v2597, %v2594
      %v2682 = vpack.c.b16 %v2601, %v2598
      %v2683 = vpack.c.b16 %v2602, %v2599
      %v2684 = vpack.c.b16 %v2603, %v2600
      %v2685 = vpack.c.b16 %v2607, %v2604
      %v2686 = vpack.c.b16 %v2608, %v2605
      %v2687 = vpack.c.b16 %v2609, %v2606
      %v2688 = vpack.c.b16 %v2613, %v2610
      %v2689 = vpack.c.b16 %v2614, %v2611
      %v2690 = vpack.c.b16 %v2615, %v2612
      %v2691 = vpack.c.b16 %v2619, %v2616
      %v2692 = vpack.c.b16 %v2620, %v2617
      %v2693 = vpack.c.b16 %v2621, %v2618
      %v2694 = vpack.c.b16 %v2625, %v2622
      %v2695 = vpack.c.b16 %v2626, %v2623
      %v2696 = vpack.c.b16 %v2627, %v2624
      %v2697 = vpack.c.b16 %v2631, %v2628
      %v2698 = vpack.c.b16 %v2632, %v2629
      %v2699 = vpack.c.b16 %v2633, %v2630
      %v2700 = vpack.c.b16 %v2637, %v2634
      %v2701 = vpack.c.b16 %v2638, %v2635
      %v2702 = vpack.c.b16 %v2639, %v2636
      %v2703 = vpack.c.b16 %v2643, %v2640
      %v2704 = vpack.c.b16 %v2644, %v2641
      %v2705 = vpack.c.b16 %v2645, %v2642
      %v2706 = vpack.c.b16 %v2649, %v2646
      %v2707 = vpack.c.b16 %v2650, %v2647
      %v2708 = vpack.c.b16 %v2651, %v2648
      %v2709 = vpack.c.b16 %v2655, %v2652
      %v2710 = vpack.c.b16 %v2656, %v2653
      %v2711 = vpack.c.b16 %v2657, %v2654
      %v2712 = vpack.c.b16 %v2661, %v2658
      %v2713 = vpack.c.b16 %v2662, %v2659
      %v2714 = vpack.c.b16 %v2663, %v2660
      %v2715 = vpack.c.b16 %v2667, %v2664
      %v2716 = vpack.c.b16 %v2668, %v2665
      %v2717 = vpack.c.b16 %v2669, %v2666
      %2766 = vmatpush.bf16.msra.mxu0 %v2691
      %2767 = vmatpush.bf16.msra.mxu0 %v2688
      %2768 = vmatpush.bf16.msra.mxu0 %v2685
      %2769 = vmatpush.bf16.msra.mxu0 %v2682
      %2770 = vmatpush.bf16.msra.mxu0 %v2679
      %2771 = vmatpush.bf16.msra.mxu0 %v2676
      %2772 = vmatpush.bf16.msra.mxu0 %v2673
      %2773 = vmatpush.bf16.msra.mxu0 %v2670
      %2774 = vmatmul.bf16.gmra.mxu0 %v2508
      %v2775 = vpop.f32.mrf.mxu0
      %v2776 = vadd.f32 0.0, %v2775
      %v2777 = vpop.f32.mrf.mxu0
      %v2778 = vadd.f32 0.0, %v2777
      %2779 = vdwg.mxu0
      %2780 = vmatpush.bf16.msra.mxu0 %v2715
      %2781 = vmatpush.bf16.msra.mxu0 %v2712
      %2782 = vmatpush.bf16.msra.mxu0 %v2709
      %2783 = vmatpush.bf16.msra.mxu0 %v2706
      %2784 = vmatpush.bf16.msra.mxu0 %v2703
      %2785 = vmatpush.bf16.msra.mxu0 %v2700
      %2786 = vmatpush.bf16.msra.mxu0 %v2697
      %2787 = vmatpush.bf16.msra.mxu0 %v2694
      %2788 = vmatmul.bf16.gmra.mxu0 %v2509
      %v2789 = vpop.f32.mrf.mxu0
      %v2790 = vadd.f32 %v2776, %v2789
      %v2791 = vpop.f32.mrf.mxu0
      %v2792 = vadd.f32 %v2778, %v2791
      %2793 = vdwg.mxu0
      %2794 = vmatpush.bf16.msra.mxu0 %v2692
      %2795 = vmatpush.bf16.msra.mxu0 %v2689
      %2796 = vmatpush.bf16.msra.mxu0 %v2686
      %2797 = vmatpush.bf16.msra.mxu0 %v2683
      %2798 = vmatpush.bf16.msra.mxu0 %v2680
      %2799 = vmatpush.bf16.msra.mxu0 %v2677
      %2800 = vmatpush.bf16.msra.mxu0 %v2674
      %2801 = vmatpush.bf16.msra.mxu0 %v2671
      %2802 = vmatmul.bf16.gmra.mxu0 %v2508
      %v2803 = vpop.f32.mrf.mxu0
      %v2804 = vadd.f32 0.0, %v2803
      %v2805 = vpop.f32.mrf.mxu0
      %v2806 = vadd.f32 0.0, %v2805
      %2807 = vdwg.mxu0
      %2808 = vmatpush.bf16.msra.mxu0 %v2716
      %2809 = vmatpush.bf16.msra.mxu0 %v2713
      %2810 = vmatpush.bf16.msra.mxu0 %v2710
      %2811 = vmatpush.bf16.msra.mxu0 %v2707
      %2812 = vmatpush.bf16.msra.mxu0 %v2704
      %2813 = vmatpush.bf16.msra.mxu0 %v2701
      %2814 = vmatpush.bf16.msra.mxu0 %v2698
      %2815 = vmatpush.bf16.msra.mxu0 %v2695
      %2816 = vmatmul.bf16.gmra.mxu0 %v2509
      %v2817 = vpop.f32.mrf.mxu0
      %v2818 = vadd.f32 %v2804, %v2817
      %v2819 = vpop.f32.mrf.mxu0
      %v2820 = vadd.f32 %v2806, %v2819
      %2821 = vdwg.mxu0
      %2822 = vmatpush.bf16.msra.mxu0 %v2693
      %2823 = vmatpush.bf16.msra.mxu0 %v2690
      %2824 = vmatpush.bf16.msra.mxu0 %v2687
      %2825 = vmatpush.bf16.msra.mxu0 %v2684
      %2826 = vmatpush.bf16.msra.mxu0 %v2681
      %2827 = vmatpush.bf16.msra.mxu0 %v2678
      %2828 = vmatpush.bf16.msra.mxu0 %v2675
      %2829 = vmatpush.bf16.msra.mxu0 %v2672
      %2830 = vmatmul.bf16.gmra.mxu0 %v2508
      %v2831 = vpop.f32.mrf.mxu0
      %v2832 = vadd.f32 0.0, %v2831
      %v2833 = vpop.f32.mrf.mxu0
      %v2834 = vadd.f32 0.0, %v2833
      %2835 = vdwg.mxu0
      %2836 = vmatpush.bf16.msra.mxu0 %v2717
      %2837 = vmatpush.bf16.msra.mxu0 %v2714
      %2838 = vmatpush.bf16.msra.mxu0 %v2711
      %2839 = vmatpush.bf16.msra.mxu0 %v2708
      %2840 = vmatpush.bf16.msra.mxu0 %v2705
      %2841 = vmatpush.bf16.msra.mxu0 %v2702
      %2842 = vmatpush.bf16.msra.mxu0 %v2699
      %2843 = vmatpush.bf16.msra.mxu0 %v2696
      %2844 = vmatmul.bf16.gmra.mxu0 %v2509
      %v2845 = vpop.f32.mrf.mxu0
      %v2846 = vadd.f32 %v2832, %v2845
      %v2847 = vpop.f32.mrf.mxu0
      %v2848 = vadd.f32 %v2834, %v2847
      %2849 = vdwg.mxu0
      %v2850 = vpack.c.bf16 %v2442, %v2438
      %v2851 = vpack.c.bf16 %v2443, %v2439
      %2852 = vmatpush.bf16.msra.mxu0 %v2691
      %2853 = vmatpush.bf16.msra.mxu0 %v2688
      %2854 = vmatpush.bf16.msra.mxu0 %v2685
      %2855 = vmatpush.bf16.msra.mxu0 %v2682
      %2856 = vmatpush.bf16.msra.mxu0 %v2679
      %2857 = vmatpush.bf16.msra.mxu0 %v2676
      %2858 = vmatpush.bf16.msra.mxu0 %v2673
      %2859 = vmatpush.bf16.msra.mxu0 %v2670
      %2860 = vmatmul.bf16.gmra.mxu0 %v2850
      %v2861 = vpop.f32.mrf.mxu0
      %v2862 = vadd.f32 0.0, %v2861
      %v2863 = vpop.f32.mrf.mxu0
      %v2864 = vadd.f32 0.0, %v2863
      %2865 = vdwg.mxu0
      %2866 = vmatpush.bf16.msra.mxu0 %v2715
      %2867 = vmatpush.bf16.msra.mxu0 %v2712
      %2868 = vmatpush.bf16.msra.mxu0 %v2709
      %2869 = vmatpush.bf16.msra.mxu0 %v2706
      %2870 = vmatpush.bf16.msra.mxu0 %v2703
      %2871 = vmatpush.bf16.msra.mxu0 %v2700
      %2872 = vmatpush.bf16.msra.mxu0 %v2697
      %2873 = vmatpush.bf16.msra.mxu0 %v2694
      %2874 = vmatmul.bf16.gmra.mxu0 %v2851
      %v2875 = vpop.f32.mrf.mxu0
      %v2876 = vadd.f32 %v2862, %v2875
      %v2877 = vpop.f32.mrf.mxu0
      %v2878 = vadd.f32 %v2864, %v2877
      %2879 = vdwg.mxu0
      %2880 = vmatpush.bf16.msra.mxu0 %v2692
      %2881 = vmatpush.bf16.msra.mxu0 %v2689
      %2882 = vmatpush.bf16.msra.mxu0 %v2686
      %2883 = vmatpush.bf16.msra.mxu0 %v2683
      %2884 = vmatpush.bf16.msra.mxu0 %v2680
      %2885 = vmatpush.bf16.msra.mxu0 %v2677
      %2886 = vmatpush.bf16.msra.mxu0 %v2674
      %2887 = vmatpush.bf16.msra.mxu0 %v2671
      %2888 = vmatmul.bf16.gmra.mxu0 %v2850
      %v2889 = vpop.f32.mrf.mxu0
      %v2890 = vadd.f32 0.0, %v2889
      %v2891 = vpop.f32.mrf.mxu0
      %v2892 = vadd.f32 0.0, %v2891
      %2893 = vdwg.mxu0
      %2894 = vmatpush.bf16.msra.mxu0 %v2716
      %2895 = vmatpush.bf16.msra.mxu0 %v2713
      %2896 = vmatpush.bf16.msra.mxu0 %v2710
      %2897 = vmatpush.bf16.msra.mxu0 %v2707
      %2898 = vmatpush.bf16.msra.mxu0 %v2704
      %2899 = vmatpush.bf16.msra.mxu0 %v2701
      %2900 = vmatpush.bf16.msra.mxu0 %v2698
      %2901 = vmatpush.bf16.msra.mxu0 %v2695
      %2902 = vmatmul.bf16.gmra.mxu0 %v2851
      %v2903 = vpop.f32.mrf.mxu0
      %v2904 = vadd.f32 %v2890, %v2903
      %v2905 = vpop.f32.mrf.mxu0
      %v2906 = vadd.f32 %v2892, %v2905
      %2907 = vdwg.mxu0
      %2908 = vmatpush.bf16.msra.mxu0 %v2693
      %2909 = vmatpush.bf16.msra.mxu0 %v2690
      %2910 = vmatpush.bf16.msra.mxu0 %v2687
      %2911 = vmatpush.bf16.msra.mxu0 %v2684
      %2912 = vmatpush.bf16.msra.mxu0 %v2681
      %2913 = vmatpush.bf16.msra.mxu0 %v2678
      %2914 = vmatpush.bf16.msra.mxu0 %v2675
      %2915 = vmatpush.bf16.msra.mxu0 %v2672
      %2916 = vmatmul.bf16.gmra.mxu0 %v2850
      %v2917 = vpop.f32.mrf.mxu0
      %v2918 = vadd.f32 0.0, %v2917
      %v2919 = vpop.f32.mrf.mxu0
      %v2920 = vadd.f32 0.0, %v2919
      %2921 = vdwg.mxu0
      %2922 = vmatpush.bf16.msra.mxu0 %v2717
      %2923 = vmatpush.bf16.msra.mxu0 %v2714
      %2924 = vmatpush.bf16.msra.mxu0 %v2711
      %2925 = vmatpush.bf16.msra.mxu0 %v2708
      %2926 = vmatpush.bf16.msra.mxu0 %v2705
      %2927 = vmatpush.bf16.msra.mxu0 %v2702
      %2928 = vmatpush.bf16.msra.mxu0 %v2699
      %2929 = vmatpush.bf16.msra.mxu0 %v2696
      %2930 = vmatmul.bf16.gmra.mxu0 %v2851
      %v2931 = vpop.f32.mrf.mxu0
      %v2932 = vadd.f32 %v2918, %v2931
      %v2933 = vpop.f32.mrf.mxu0
      %v2934 = vadd.f32 %v2920, %v2933
      %2935 = vdwg.mxu0
      %v2936 = vrot.slane %v2876, 7
      %v2937 = vrot.slane %v2878, 7
      %v2938 = vsel %vm451, %v2936, %v2937
      %v2939 = vsel %vm451, %v2937, %v2936
      %v2940 = vsel %vm447, 0.0, %v2939
      %v2941 = vsel %vm448, 0.0, %v2938
      %v2942 = vadd.f32 %v2940, %v2818
      %v2943 = vadd.f32 %v2941, %v2820
      %v2944 = vadd.f32 %v2942, %v2932
      %v2945 = vadd.f32 %v2943, %v2934
      %v2946 = vld [vmem:[%s8] sm:$0x1]
      %v2948 = vperm.slane %v2946, 0
      %v2950 = vadd.f32 %v2944, %v2948
      %v2951 = vadd.f32 %v2945, %v2948
      %2952 = vst [vmem:[%s332] sm:$0xff] %v2950
      %2953 = vst [vmem:[%s332 + $0x8] sm:$0xff] %v2951
      %v2954 = vadd.f32 %v2790, %v2904
      %v2955 = vadd.f32 %v2792, %v2906
      %v2956 = vrot.slane %v2846, 1
      %v2957 = vrot.slane %v2848, 1
      %v2958 = vsel %vm462, %v2956, %v2957
      %v2959 = vsel %vm462, %v2957, %v2956
      %v2960 = vsel %vm458, 0.0, %v2958
      %v2961 = vsel %vm459, 0.0, %v2959
      %v2962 = vadd.f32 %v2954, %v2960
      %v2963 = vadd.f32 %v2955, %v2961
      %v2964 = vld [vmem:[%s8] sm:$0x1]
      %v2966 = vperm.slane %v2964, 0
      %v2968 = vadd.f32 %v2962, %v2966
      %v2969 = vadd.f32 %v2963, %v2966
      %s2970 = scalar_lea.vmem %s332, 16
      %2971 = vst [vmem:[%s2970] sm:$0xff] %v2968
      %2972 = vst [vmem:[%s2970 + $0x8] sm:$0xff] %v2969
      %p2973 = scmp.lt.s32.totalorder %s20, 1
      %s2974 = scalar_select %p2973, %s20, 1
      %s2975 = smul.addr %s2974, 4
      %s2976 = smul.addr %s2975, 8
      %s2977 = scalar_lea.vmem %s9, %s2976
      // Predicated region
      $region57: #{single_network_forward.1} parent=55 // pred_check
        %p2978 = pneg %p232
      $region58: #{single_network_forward.1} parent=55 // pred_check_branch
        %2980 = sbr.rel (%p2978) target = $region60
      $region59: #{single_network_forward.1} parent=55 // pred_region
        _
      $region60: #{single_network_forward.1} parent=55 // pred_fallthru
        _
    $region56: #{single_network_forward.1} parent=5 // pred_fallthru
      _
    %p2981 = scmp.le.s32.totalorder 2, %s15
    // Predicated region
    $region61: #{single_network_forward.1} parent=5 // pred_check
      %p2982 = pneg %p2981
    $region62: #{single_network_forward.1} parent=5 // pred_check_branch
      %2984 = sbr.rel (%p2982) target = $region64
    $region63: #{single_network_forward.1} parent=5 // pred_region
      %s2985 = ssub.s32 %s15, 2
      // Predicated region
      $region65: #{single_network_forward.1} parent=63 // pred_check
        %p2986 = pneg %p238
      $region66: #{single_network_forward.1} parent=63 // pred_check_branch
        %2988 = sbr.rel (%p2986) target = $region68
      $region67: #{single_network_forward.1} parent=63 // pred_region
        %p2989 = scmp.lt.s32.totalorder %s21, 1
        %s2990 = scalar_select %p2989, %s21, 1
        %s2991 = smul.addr %s2990, 4
        %s2992 = smul.addr %s2991, 8
        %s2993 = scalar_lea.vmem %s9, %s2992
      $region68: #{single_network_forward.1} parent=63 // pred_fallthru
        _
    $region64: #{single_network_forward.1} parent=5 // pred_fallthru
      _
  $region6: #{single_network_forward.1} parent=0 // loop_footer
    %s19 = sadd.s32 1, %s15
  $region7: #{single_network_forward.1} parent=0 // loop_footer_branch
    %14 = sbr.rel target = $region3
  $region8: #{single_network_forward.1} parent=0 // loop_exit
    _

</llo_original>
